<compile_context>
chip_gen: v6e
topology: v6e:2x2x1
jax: 0.10.0
libtpu: 0.0.40
codegen_flags: <defaults>
</compile_context>

<pallas_src>
import functools
import math

import jax
import jax.numpy as jnp
from jax.experimental import pallas as pl
from jax.experimental.pallas import tpu as pltpu

_LN_EPS = 1e-5


def _pick_tile(dim, pref, align):
    """Largest multiple of `align` <= pref that divides dim, else the full dim."""
    t = min(pref, (dim // align) * align)
    while t >= align:
        if dim % t == 0:
            return t
        t -= align
    return dim  # block == full array dim is always a legal block shape


# ----------------------------------------------------------------------------
# Tiled linear:  y = x @ w + b   (bf16 MXU inputs, fp32 accumulator)
# ----------------------------------------------------------------------------
def _linear_kernel(x_ref, w_ref, b_ref, o_ref, acc_ref, *, nk):
    @pl.when(pl.program_id(2) == 0)
    def _():
        acc_ref[...] = jnp.zeros_like(acc_ref)

    acc_ref[...] += jnp.dot(x_ref[...], w_ref[...],
                            preferred_element_type=jnp.float32)

    @pl.when(pl.program_id(2) == nk - 1)
    def _():
        o_ref[...] = (acc_ref[...] + b_ref[...]).astype(o_ref.dtype)


def linear(x2d, w, b, out_dtype=jnp.float32, *, tm=256, tn=256, tk=512):
    M, K = x2d.shape
    N = w.shape[1]
    tm = _pick_tile(M, tm, 8)
    tk = _pick_tile(K, tk, 128)
    tn = _pick_tile(N, tn, 128)
    nk = K // tk
    return pl.pallas_call(
        functools.partial(_linear_kernel, nk=nk),
        grid=(M // tm, N // tn, nk),
        in_specs=[pl.BlockSpec((tm, tk), lambda i, j, k: (i, k)),
                  pl.BlockSpec((tk, tn), lambda i, j, k: (k, j)),
                  pl.BlockSpec((1, tn), lambda i, j, k: (0, j))],
        out_specs=pl.BlockSpec((tm, tn), lambda i, j, k: (i, j)),
        out_shape=jax.ShapeDtypeStruct((M, N), out_dtype),
        scratch_shapes=[pltpu.VMEM((tm, tn), jnp.float32)],
        compiler_params=pltpu.CompilerParams(
            dimension_semantics=("parallel", "parallel", "arbitrary")),
    )(x2d.astype(jnp.bfloat16), w.astype(jnp.bfloat16), b.astype(jnp.float32))


# ----------------------------------------------------------------------------
# Tiled linear with fused residual-add + LayerNorm epilogue
#   out = LayerNorm(x @ w + b + residual)
# ----------------------------------------------------------------------------
def _linear_res_ln_kernel(x_ref, w_ref, b_ref, r_ref, g_ref, beta_ref,
                          o_ref, acc_ref, *, nk, eps):
    @pl.when(pl.program_id(1) == 0)
    def _():
        acc_ref[...] = jnp.zeros_like(acc_ref)

    acc_ref[...] += jnp.dot(x_ref[...], w_ref[...],
                            preferred_element_type=jnp.float32)

    @pl.when(pl.program_id(1) == nk - 1)
    def _():
        t = acc_ref[...] + b_ref[...] + r_ref[...]
        mu = jnp.mean(t, axis=-1, keepdims=True)
        var = jnp.mean(jnp.square(t - mu), axis=-1, keepdims=True)
        o_ref[...] = ((t - mu) * jax.lax.rsqrt(var + eps)) * g_ref[...] + beta_ref[...]


def linear_residual_layernorm(x2d, w, b, residual, gamma, beta,
                              *, eps=_LN_EPS, tm=256, tk=512):
    M, K = x2d.shape
    N = w.shape[1]
    tm = _pick_tile(M, tm, 8)
    tk = _pick_tile(K, tk, 128)
    nk = K // tk
    return pl.pallas_call(
        functools.partial(_linear_res_ln_kernel, nk=nk, eps=eps),
        grid=(M // tm, nk),
        in_specs=[pl.BlockSpec((tm, tk), lambda i, k: (i, k)),
                  pl.BlockSpec((tk, N), lambda i, k: (k, 0)),
                  pl.BlockSpec((1, N), lambda i, k: (0, 0)),
                  pl.BlockSpec((tm, N), lambda i, k: (i, 0)),
                  pl.BlockSpec((1, N), lambda i, k: (0, 0)),
                  pl.BlockSpec((1, N), lambda i, k: (0, 0))],
        out_specs=pl.BlockSpec((tm, N), lambda i, k: (i, 0)),
        out_shape=jax.ShapeDtypeStruct((M, N), jnp.float32),
        scratch_shapes=[pltpu.VMEM((tm, N), jnp.float32)],
        compiler_params=pltpu.CompilerParams(
            dimension_semantics=("parallel", "arbitrary")),
    )(x2d.astype(jnp.bfloat16), w.astype(jnp.bfloat16), b.astype(jnp.float32),
      residual.astype(jnp.float32), gamma, beta)


# ----------------------------------------------------------------------------
# Relative multi-head attention (Transformer-XL / Conformer style, dropout p=0)
# ----------------------------------------------------------------------------
def _pos_score_kernel(q_ref, pe_ref, vb_ref, o_ref):
    # pos_score = (q + v_bias) @ pe^T , per head, fp32 accumulation
    qv = (q_ref[...].astype(jnp.float32) + vb_ref[...]).astype(jnp.bfloat16)
    o_ref[...] = jnp.einsum("hqd,hkd->hqk", qv, pe_ref[...],
                            preferred_element_type=jnp.float32)


def _attn_core_kernel(q_ref, k_ref, v_ref, ub_ref, pos_ref, o_ref, *, scale):
    # fused: content score + add shifted pos score + softmax + context matmul
    qu = (q_ref[...].astype(jnp.float32) + ub_ref[...]).astype(jnp.bfloat16)
    content = jnp.einsum("hqd,hkd->hqk", qu, k_ref[...],
                         preferred_element_type=jnp.float32)
    s = (content + pos_ref[...]) * scale
    m = jnp.max(s, axis=-1, keepdims=True)
    p = jnp.exp(s - m)
    attn = p * pl.reciprocal(jnp.sum(p, axis=-1, keepdims=True), approx=True)
    ctx = jnp.einsum("hqk,hkd->hqd", attn.astype(jnp.bfloat16), v_ref[...],
                     preferred_element_type=jnp.float32)
    o_ref[...] = ctx.astype(o_ref.dtype)


def _relative_shift(pos_score):
    # Exact replica of the pad + reshape + slice relative-shift trick.
    bh, s1, s2 = pos_score.shape
    zeros = jnp.zeros((bh, s1, 1), pos_score.dtype)
    padded = jnp.concatenate([zeros, pos_score], axis=-1)      # (bh, s1, s2+1)
    padded = padded.reshape(bh, s2 + 1, s1)
    return padded[:, 1:].reshape(bh, s1, s2)


def _pick_hblk(H, S):
    # keep the per-step (hblk, S, S) fp32 score block around <= 2 MiB
    cap = max(1, (2 * 1024 * 1024) // max(1, 4 * S * S))
    hblk = min(H, cap)
    while H % hblk != 0:
        hblk -= 1
    return hblk


def relative_mha_norm(x, pos_enc, p, num_heads, *, eps=_LN_EPS):
    """Returns norm1(RelativeMHA(x, x, x, pos_enc) + x) as a (B*S, D) array."""
    B, S, D = x.shape
    H = num_heads
    Dh = D // H
    BH = B * H
    N = B * S
    xf = x.reshape(N, D)

    # Fused Q|K|V projection: one tiled matmul, bf16 output feeds the MXU.
    w_qkv = jnp.concatenate([p["wq"], p["wk"], p["wv"]], axis=1)
    b_qkv = jnp.concatenate([p["bq"], p["bk"], p["bv"]], axis=1)
    qkv = linear(xf, w_qkv, b_qkv, out_dtype=jnp.bfloat16)              # (N, 3D)
    pe = linear(pos_enc.reshape(N, D), p["wp"], p["bp_zero"],
                out_dtype=jnp.bfloat16)                                 # (N, D), no bias

    # heads-first layout for per-head-chunk grid processing
    qkv = qkv.reshape(B, S, 3, H, Dh).transpose(2, 0, 3, 1, 4).reshape(3, BH, S, Dh)
    pe = pe.reshape(B, S, H, Dh).transpose(0, 2, 1, 3).reshape(BH, S, Dh)
    u_bias = p["u_bias"].reshape(H, 1, Dh)
    v_bias = p["v_bias"].reshape(H, 1, Dh)

    hblk = _pick_hblk(H, S)
    n_hb = H // hblk
    grid = (BH // hblk,)

    def blk_qkv(sel):
        return pl.BlockSpec((None, hblk, S, Dh), lambda g: (sel, g, 0, 0))

    blk_sd = pl.BlockSpec((hblk, S, Dh), lambda g: (g, 0, 0))
    blk_ss = pl.BlockSpec((hblk, S, S), lambda g: (g, 0, 0))
    blk_bias = pl.BlockSpec((hblk, 1, Dh), lambda g: (g % n_hb, 0, 0))

    pos_score = pl.pallas_call(
        _pos_score_kernel,
        grid=grid,
        in_specs=[blk_qkv(0), blk_sd, blk_bias],
        out_specs=blk_ss,
        out_shape=jax.ShapeDtypeStruct((BH, S, S), jnp.float32),
        compiler_params=pltpu.CompilerParams(dimension_semantics=("parallel",)),
    )(qkv, pe, v_bias)

    # TODO(synk): the relative shift stays as XLA glue (pure data movement); an
    # in-kernel version via strided pltpu.roll would avoid this HBM round trip.
    pos_score = _relative_shift(pos_score)

    scale = 1.0 / math.sqrt(D)  # conformer convention scales by sqrt(d_model)
    ctx = pl.pallas_call(
        functools.partial(_attn_core_kernel, scale=scale),
        grid=grid,
        in_specs=[blk_qkv(0), blk_qkv(1), blk_qkv(2), blk_bias, blk_ss],
        out_specs=blk_sd,
        out_shape=jax.ShapeDtypeStruct((BH, S, Dh), jnp.bfloat16),
        compiler_params=pltpu.CompilerParams(dimension_semantics=("parallel",)),
    )(qkv, qkv, qkv, u_bias, pos_score)

    ctx = ctx.reshape(B, H, S, Dh).transpose(0, 2, 1, 3).reshape(N, D)

    # Output projection fused with residual add + LayerNorm (norm1).
    return linear_residual_layernorm(ctx, p["wo"], p["bo"], xf,
                                     p["ln1_g"], p["ln1_b"], eps=eps)


# ----------------------------------------------------------------------------
# Mixture-of-Experts FFN (top-2 gating, 4 experts, GELU experts) with fused
# residual add + LayerNorm (norm2) epilogue.
# ----------------------------------------------------------------------------
def _moe_kernel(x_ref, gate_ref, w1_ref, w2_ref, g_ref, b_ref, o_ref, acc_ref,
                *, ne, nf, eps):
    e = pl.program_id(1)
    f = pl.program_id(2)

    @pl.when(jnp.logical_and(e == 0, f == 0))
    def _():
        acc_ref[...] = jnp.zeros_like(acc_ref)

    x = x_ref[...]                                      # (tm, D) fp32
    h = jnp.dot(x.astype(jnp.bfloat16), w1_ref[...],
                preferred_element_type=jnp.float32)     # (tm, tf)
    # TODO(synk): reference experts use exact (erf) GELU; tanh approximation is
    # used here for guaranteed Mosaic lowering (~3e-4 abs err).
    h = jax.nn.gelu(h, approximate=True)
    y = jnp.dot(h.astype(jnp.bfloat16), w2_ref[...],
                preferred_element_type=jnp.float32)     # (tm, D)

    sel = (jax.lax.broadcasted_iota(jnp.int32, gate_ref.shape, 1) == e)
    gate = jnp.sum(gate_ref[...] * sel.astype(jnp.float32), axis=1, keepdims=True)
    acc_ref[...] += gate * y

    @pl.when(jnp.logical_and(e == ne - 1, f == nf - 1))
    def _():
        t = acc_ref[...] + x          # residual: MoE input == norm1 output
        mu = jnp.mean(t, axis=-1, keepdims=True)
        var = jnp.mean(jnp.square(t - mu), axis=-1, keepdims=True)
        o_ref[...] = ((t - mu) * jax.lax.rsqrt(var + eps)) * g_ref[...] + b_ref[...]


def moe_residual_layernorm(x2d, p, *, batch, seq, num_experts=4,
                           loss_coef=0.01, eps=_LN_EPS, tm=256, tf=512):
    N, D = x2d.shape
    E = num_experts
    F = p["w1"].shape[-1]

    # --- top-2 gating (tiny, E = 4: glue) ---
    logits = linear(x2d, p["w_gate"], p["bg_zero"])              # (N, E)
    raw_gates = jax.nn.softmax(logits, axis=-1)
    top_vals, top_idx = jax.lax.top_k(raw_gates, 2)
    denom = top_vals[:, 0] + top_vals[:, 1] + 1e-9
    combine = ((top_vals[:, 0] / denom)[:, None] * jax.nn.one_hot(top_idx[:, 0], E)
               + (top_vals[:, 1] / denom)[:, None] * jax.nn.one_hot(top_idx[:, 1], E))
    # TODO(synk): the reference MoE's 'random' second-expert policy and expert
    # capacity dropping are stochastic load-balancing details; deterministic
    # top-2 dispatch with unlimited capacity is used. A grouped
    # PrefetchScalarGridSpec dispatch (skipping zero-gate experts) would halve
    # the MoE FLOPs and per-step weight residency.

    tm = _pick_tile(N, tm, 8)
    tf = _pick_tile(F, tf, 128)
    nf = F // tf
    out = pl.pallas_call(
        functools.partial(_moe_kernel, ne=E, nf=nf, eps=eps),
        grid=(N // tm, E, nf),
        in_specs=[pl.BlockSpec((tm, D), lambda i, e, f: (i, 0)),
                  pl.BlockSpec((tm, E), lambda i, e, f: (i, 0)),
                  pl.BlockSpec((None, D, tf), lambda i, e, f: (e, 0, f)),
                  pl.BlockSpec((None, tf, D), lambda i, e, f: (e, f, 0)),
                  pl.BlockSpec((1, D), lambda i, e, f: (0, 0)),
                  pl.BlockSpec((1, D), lambda i, e, f: (0, 0))],
        out_specs=pl.BlockSpec((tm, D), lambda i, e, f: (i, 0)),
        out_shape=jax.ShapeDtypeStruct((N, D), jnp.float32),
        scratch_shapes=[pltpu.VMEM((tm, D), jnp.float32)],
        compiler_params=pltpu.CompilerParams(
            dimension_semantics=("parallel", "arbitrary", "arbitrary"),
            vmem_limit_bytes=32 * 1024 * 1024),
    )(x2d.astype(jnp.float32), combine.astype(jnp.float32),
      p["w1"].astype(jnp.bfloat16), p["w2"].astype(jnp.bfloat16),
      p["ln2_g"], p["ln2_b"])

    # Auxiliary load-balancing loss (Top2Gating formula), tiny reduction -> glue.
    mask1 = jax.nn.one_hot(top_idx[:, 0], E).reshape(batch, seq, E)
    density_1 = mask1.mean(axis=1)
    density_proxy = raw_gates.reshape(batch, seq, E).mean(axis=1)
    aux_loss = (density_proxy * density_1).mean() * (E ** 2) * loss_coef
    return out, aux_loss


# ----------------------------------------------------------------------------
# EncoderLayer forward
# ----------------------------------------------------------------------------
def encoder_layer(x, pos_enc, params, *, num_heads):
    B, S, D = x.shape
    # x1 = norm1(attention(x, x, x, pos_enc) + x)   (out-proj + LN fused)
    x1 = relative_mha_norm(x, pos_enc, params, num_heads)        # (B*S, D)
    # y  = norm2(moe(x1) + x1)                      (MoE + LN fused)
    y2d, loss = moe_residual_layernorm(x1, params, batch=B, seq=S)
    return y2d.reshape(B, S, D), loss


def init_params(key, d_model, d_ff, num_heads, num_experts=4):
    dh = d_model // num_heads
    ks = jax.random.split(key, 10)

    def w(k, shape, scale=0.02):
        return scale * jax.random.normal(k, shape, jnp.float32)

    return dict(
        wq=w(ks[0], (d_model, d_model)), bq=jnp.zeros((1, d_model), jnp.float32),
        wk=w(ks[1], (d_model, d_model)), bk=jnp.zeros((1, d_model), jnp.float32),
        wv=w(ks[2], (d_model, d_model)), bv=jnp.zeros((1, d_model), jnp.float32),
        wp=w(ks[3], (d_model, d_model)), bp_zero=jnp.zeros((1, d_model), jnp.float32),
        wo=w(ks[4], (d_model, d_model)), bo=jnp.zeros((1, d_model), jnp.float32),
        u_bias=w(ks[5], (num_heads, dh)),
        v_bias=w(ks[6], (num_heads, dh)),
        ln1_g=jnp.ones((1, d_model), jnp.float32),
        ln1_b=jnp.zeros((1, d_model), jnp.float32),
        ln2_g=jnp.ones((1, d_model), jnp.float32),
        ln2_b=jnp.zeros((1, d_model), jnp.float32),
        w_gate=w(ks[7], (d_model, num_experts)),
        bg_zero=jnp.zeros((1, num_experts), jnp.float32),
        w1=w(ks[8], (num_experts, d_model, d_ff)),
        w2=w(ks[9], (num_experts, d_ff, d_model)),
    )


if __name__ == "__main__":
    B, S, D, H, F = 2, 8, 32, 4, 64
    key = jax.random.PRNGKey(0)
    kx, kp, kw = jax.random.split(key, 3)
    x = jax.random.normal(kx, (B, S, D), jnp.float32)
    pos_enc = jax.random.normal(kp, (B, S, D), jnp.float32)
    params = init_params(kw, D, F, H)

    fwd = jax.jit(functools.partial(encoder_layer, num_heads=H))
    y, loss = fwd(x, pos_enc, params)
    jax.block_until_ready((y, loss))
    assert y.shape == (B, S, D)
    assert y.dtype == jnp.float32
    print("KERNEL_OK")
</pallas_src>

<mosaic_0001>
module attributes {stable_mosaic.version = 11 : i64} {
  func.func @_linear_kernel(%arg0: i32, %arg1: i32, %arg2: i32, %arg3: memref<16x32xbf16, #tpu.memory_space<vmem>>, %arg4: memref<32x96xbf16, #tpu.memory_space<vmem>>, %arg5: memref<1x96xf32, #tpu.memory_space<vmem>>, %arg6: memref<16x96xbf16, #tpu.memory_space<vmem>>, %arg7: memref<16x96xf32, #tpu.memory_space<vmem>>) attributes {dimension_semantics = [#tpu.dimension_semantics<parallel>, #tpu.dimension_semantics<parallel>, #tpu.dimension_semantics<arbitrary>], iteration_bounds = array<i64: 1, 1, 1>, scalar_prefetch = 0 : i64, scratch_operands = 1 : i64, tpu.core_type = #tpu.core_type<tc>, window_params = [{transform_indices = @transform_0, window_bounds = array<i64: 16, 32>}, {transform_indices = @transform_1, window_bounds = array<i64: 32, 96>}, {transform_indices = @transform_2, window_bounds = array<i64: 1, 96>}, {transform_indices = @transform_3, window_bounds = array<i64: 16, 96>}]} {
    %c0_i32 = arith.constant 0 : i32
    %0 = arith.cmpi eq, %arg2, %c0_i32 : i32
    %1 = arith.extui %0 : i1 to i32
    %c0_i32_0 = arith.constant 0 : i32
    %2 = arith.cmpi ne, %1, %c0_i32_0 : i32
    scf.if %2 {
      %cst_10 = arith.constant 0.000000e+00 : f32
      %12 = vector.broadcast %cst_10 : f32 to vector<16x96xf32>
      %c0_11 = arith.constant 0 : index
      %c0_12 = arith.constant 0 : index
      %13 = vector.load %arg7[%c0_11, %c0_12] : memref<16x96xf32, #tpu.memory_space<vmem>>, vector<16x96xf32>
      tpu.vector_store %arg7[%c0_11, %c0_12], %12 {strides = array<i32>} : memref<16x96xf32, #tpu.memory_space<vmem>>, vector<16x96xf32>,
    } else {
    }
    %c0 = arith.constant 0 : index
    %c0_1 = arith.constant 0 : index
    %3 = vector.load %arg7[%c0, %c0_1] : memref<16x96xf32, #tpu.memory_space<vmem>>, vector<16x96xf32>
    %c0_2 = arith.constant 0 : index
    %c0_3 = arith.constant 0 : index
    %4 = vector.load %arg3[%c0_2, %c0_3] : memref<16x32xbf16, #tpu.memory_space<vmem>>, vector<16x32xbf16>
    %c0_4 = arith.constant 0 : index
    %c0_5 = arith.constant 0 : index
    %5 = vector.load %arg4[%c0_4, %c0_5] : memref<32x96xbf16, #tpu.memory_space<vmem>>, vector<32x96xbf16>
    %cst = arith.constant dense<0.000000e+00> : vector<16x96xf32>
    %6 = tpu.matmul %4, %5, %cst {dimension_numbers = #tpu.dot_dimension_numbers<[1], [0], [0], [1], [0, 0, 1, 1], [], []>} : vector<16x32xbf16>, vector<32x96xbf16>, vector<16x96xf32> -> vector<16x96xf32>
    %7 = arith.addf %3, %6 : vector<16x96xf32>
    %c0_6 = arith.constant 0 : index
    %c0_7 = arith.constant 0 : index
    %8 = vector.load %arg7[%c0_6, %c0_7] : memref<16x96xf32, #tpu.memory_space<vmem>>, vector<16x96xf32>
    tpu.vector_store %arg7[%c0_6, %c0_7], %7 {strides = array<i32>} : memref<16x96xf32, #tpu.memory_space<vmem>>, vector<16x96xf32>,
    %c0_i32_8 = arith.constant 0 : i32
    %9 = arith.cmpi eq, %arg2, %c0_i32_8 : i32
    %10 = arith.extui %9 : i1 to i32
    %c0_i32_9 = arith.constant 0 : i32
    %11 = arith.cmpi ne, %10, %c0_i32_9 : i32
    scf.if %11 {
      %c0_10 = arith.constant 0 : index
      %c0_11 = arith.constant 0 : index
      %12 = vector.load %arg7[%c0_10, %c0_11] : memref<16x96xf32, #tpu.memory_space<vmem>>, vector<16x96xf32>
      %c0_12 = arith.constant 0 : index
      %c0_13 = arith.constant 0 : index
      %13 = vector.load %arg5[%c0_12, %c0_13] : memref<1x96xf32, #tpu.memory_space<vmem>>, vector<1x96xf32>
      %14 = vector.broadcast %13 : vector<1x96xf32> to vector<16x96xf32>
      %15 = arith.addf %12, %14 : vector<16x96xf32>
      %16 = arith.truncf %15 : vector<16x96xf32> to vector<16x96xbf16>
      %c0_14 = arith.constant 0 : index
      %c0_15 = arith.constant 0 : index
      %17 = vector.load %arg6[%c0_14, %c0_15] : memref<16x96xbf16, #tpu.memory_space<vmem>>, vector<16x96xbf16>
      tpu.vector_store %arg6[%c0_14, %c0_15], %16 {strides = array<i32>} : memref<16x96xbf16, #tpu.memory_space<vmem>>, vector<16x96xbf16>,
    } else {
    }
    return
  }
  func.func @transform_0(%arg0: i32, %arg1: i32, %arg2: i32) -> (i32, i32) {
    %c0_i32 = arith.constant 0 : i32
    return %arg0, %arg2 : i32, i32
  }
  func.func @transform_1(%arg0: i32, %arg1: i32, %arg2: i32) -> (i32, i32) {
    %c0_i32 = arith.constant 0 : i32
    return %arg2, %arg1 : i32, i32
  }
  func.func @transform_2(%arg0: i32, %arg1: i32, %arg2: i32) -> (i32, i32) {
    %c0_i32 = arith.constant 0 : i32
    %c0_i32_0 = arith.constant 0 : i32
    return %c0_i32, %arg1 : i32, i32
  }
  func.func @transform_3(%arg0: i32, %arg1: i32, %arg2: i32) -> (i32, i32) {
    %c0_i32 = arith.constant 0 : i32
    return %arg0, %arg1 : i32, i32
  }
}

module attributes {stable_mosaic.version = 11 : i64} {
  func.func @_linear_kernel(%arg0: i32, %arg1: i32, %arg2: i32, %arg3: memref<16x32xbf16, #tpu.memory_space<vmem>>, %arg4: memref<32x32xbf16, #tpu.memory_space<vmem>>, %arg5: memref<1x32xf32, #tpu.memory_space<vmem>>, %arg6: memref<16x32xbf16, #tpu.memory_space<vmem>>, %arg7: memref<16x32xf32, #tpu.memory_space<vmem>>) attributes {dimension_semantics = [#tpu.dimension_semantics<parallel>, #tpu.dimension_semantics<parallel>, #tpu.dimension_semantics<arbitrary>], iteration_bounds = array<i64: 1, 1, 1>, scalar_prefetch = 0 : i64, scratch_operands = 1 : i64, tpu.core_type = #tpu.core_type<tc>, window_params = [{transform_indices = @transform_0, window_bounds = array<i64: 16, 32>}, {transform_indices = @transform_1, window_bounds = array<i64: 32, 32>}, {transform_indices = @transform_2, window_bounds = array<i64: 1, 32>}, {transform_indices = @transform_3, window_bounds = array<i64: 16, 32>}]} {
    %c0_i32 = arith.constant 0 : i32
    %0 = arith.cmpi eq, %arg2, %c0_i32 : i32
    %1 = arith.extui %0 : i1 to i32
    %c0_i32_0 = arith.constant 0 : i32
    %2 = arith.cmpi ne, %1, %c0_i32_0 : i32
    scf.if %2 {
      %cst_10 = arith.constant 0.000000e+00 : f32
      %12 = vector.broadcast %cst_10 : f32 to vector<16x32xf32>
      %c0_11 = arith.constant 0 : index
      %c0_12 = arith.constant 0 : index
      %13 = vector.load %arg7[%c0_11, %c0_12] : memref<16x32xf32, #tpu.memory_space<vmem>>, vector<16x32xf32>
      tpu.vector_store %arg7[%c0_11, %c0_12], %12 {strides = array<i32>} : memref<16x32xf32, #tpu.memory_space<vmem>>, vector<16x32xf32>,
    } else {
    }
    %c0 = arith.constant 0 : index
    %c0_1 = arith.constant 0 : index
    %3 = vector.load %arg7[%c0, %c0_1] : memref<16x32xf32, #tpu.memory_space<vmem>>, vector<16x32xf32>
    %c0_2 = arith.constant 0 : index
    %c0_3 = arith.constant 0 : index
    %4 = vector.load %arg3[%c0_2, %c0_3] : memref<16x32xbf16, #tpu.memory_space<vmem>>, vector<16x32xbf16>
    %c0_4 = arith.constant 0 : index
    %c0_5 = arith.constant 0 : index
    %5 = vector.load %arg4[%c0_4, %c0_5] : memref<32x32xbf16, #tpu.memory_space<vmem>>, vector<32x32xbf16>
    %cst = arith.constant dense<0.000000e+00> : vector<16x32xf32>
    %6 = tpu.matmul %4, %5, %cst {dimension_numbers = #tpu.dot_dimension_numbers<[1], [0], [0], [1], [0, 0, 1, 1], [], []>} : vector<16x32xbf16>, vector<32x32xbf16>, vector<16x32xf32> -> vector<16x32xf32>
    %7 = arith.addf %3, %6 : vector<16x32xf32>
    %c0_6 = arith.constant 0 : index
    %c0_7 = arith.constant 0 : index
    %8 = vector.load %arg7[%c0_6, %c0_7] : memref<16x32xf32, #tpu.memory_space<vmem>>, vector<16x32xf32>
    tpu.vector_store %arg7[%c0_6, %c0_7], %7 {strides = array<i32>} : memref<16x32xf32, #tpu.memory_space<vmem>>, vector<16x32xf32>,
    %c0_i32_8 = arith.constant 0 : i32
    %9 = arith.cmpi eq, %arg2, %c0_i32_8 : i32
    %10 = arith.extui %9 : i1 to i32
    %c0_i32_9 = arith.constant 0 : i32
    %11 = arith.cmpi ne, %10, %c0_i32_9 : i32
    scf.if %11 {
      %c0_10 = arith.constant 0 : index
      %c0_11 = arith.constant 0 : index
      %12 = vector.load %arg7[%c0_10, %c0_11] : memref<16x32xf32, #tpu.memory_space<vmem>>, vector<16x32xf32>
      %c0_12 = arith.constant 0 : index
      %c0_13 = arith.constant 0 : index
      %13 = vector.load %arg5[%c0_12, %c0_13] : memref<1x32xf32, #tpu.memory_space<vmem>>, vector<1x32xf32>
      %14 = vector.broadcast %13 : vector<1x32xf32> to vector<16x32xf32>
      %15 = arith.addf %12, %14 : vector<16x32xf32>
      %16 = arith.truncf %15 : vector<16x32xf32> to vector<16x32xbf16>
      %c0_14 = arith.constant 0 : index
      %c0_15 = arith.constant 0 : index
      %17 = vector.load %arg6[%c0_14, %c0_15] : memref<16x32xbf16, #tpu.memory_space<vmem>>, vector<16x32xbf16>
      tpu.vector_store %arg6[%c0_14, %c0_15], %16 {strides = array<i32>} : memref<16x32xbf16, #tpu.memory_space<vmem>>, vector<16x32xbf16>,
    } else {
    }
    return
  }
  func.func @transform_0(%arg0: i32, %arg1: i32, %arg2: i32) -> (i32, i32) {
    %c0_i32 = arith.constant 0 : i32
    return %arg0, %arg2 : i32, i32
  }
  func.func @transform_1(%arg0: i32, %arg1: i32, %arg2: i32) -> (i32, i32) {
    %c0_i32 = arith.constant 0 : i32
    return %arg2, %arg1 : i32, i32
  }
  func.func @transform_2(%arg0: i32, %arg1: i32, %arg2: i32) -> (i32, i32) {
    %c0_i32 = arith.constant 0 : i32
    %c0_i32_0 = arith.constant 0 : i32
    return %c0_i32, %arg1 : i32, i32
  }
  func.func @transform_3(%arg0: i32, %arg1: i32, %arg2: i32) -> (i32, i32) {
    %c0_i32 = arith.constant 0 : i32
    return %arg0, %arg1 : i32, i32
  }
}

module attributes {stable_mosaic.version = 11 : i64} {
  func.func @_pos_score_kernel(%arg0: i32, %arg1: memref<1x4x8x8xbf16, #tpu.memory_space<vmem>>, %arg2: memref<4x8x8xbf16, #tpu.memory_space<vmem>>, %arg3: memref<4x1x8xf32, #tpu.memory_space<vmem>>, %arg4: memref<4x8x8xf32, #tpu.memory_space<vmem>>) attributes {dimension_semantics = [#tpu.dimension_semantics<parallel>], iteration_bounds = array<i64: 2>, scalar_prefetch = 0 : i64, scratch_operands = 0 : i64, tpu.core_type = #tpu.core_type<tc>, window_params = [{transform_indices = @transform_0, window_bounds = array<i64: 1, 4, 8, 8>}, {transform_indices = @transform_1, window_bounds = array<i64: 4, 8, 8>}, {transform_indices = @transform_2, window_bounds = array<i64: 4, 1, 8>}, {transform_indices = @transform_3, window_bounds = array<i64: 4, 8, 8>}]} {
    %c0 = arith.constant 0 : index
    %c0_0 = arith.constant 0 : index
    %c0_1 = arith.constant 0 : index
    %c0_2 = arith.constant 0 : index
    %0 = vector.load %arg1[%c0, %c0_0, %c0_1, %c0_2] : memref<1x4x8x8xbf16, #tpu.memory_space<vmem>>, vector<1x4x8x8xbf16>
    %1 = vector.shape_cast %0 : vector<1x4x8x8xbf16> to vector<4x8x8xbf16>
    %2 = arith.extf %1 : vector<4x8x8xbf16> to vector<4x8x8xf32>
    %c0_3 = arith.constant 0 : index
    %c0_4 = arith.constant 0 : index
    %c0_5 = arith.constant 0 : index
    %3 = vector.load %arg3[%c0_3, %c0_4, %c0_5] : memref<4x1x8xf32, #tpu.memory_space<vmem>>, vector<4x1x8xf32>
    %4 = vector.broadcast %3 : vector<4x1x8xf32> to vector<4x8x8xf32>
    %5 = arith.addf %2, %4 : vector<4x8x8xf32>
    %6 = arith.truncf %5 : vector<4x8x8xf32> to vector<4x8x8xbf16>
    %c0_6 = arith.constant 0 : index
    %c0_7 = arith.constant 0 : index
    %c0_8 = arith.constant 0 : index
    %7 = vector.load %arg2[%c0_6, %c0_7, %c0_8] : memref<4x8x8xbf16, #tpu.memory_space<vmem>>, vector<4x8x8xbf16>
    "tpu.trace_start"() <{level = 10 : i32, message = "hqd,hkd->hqk"}> : () -> ()
    %cst = arith.constant dense<0.000000e+00> : vector<4x8x8xf32>
    %8 = tpu.matmul %6, %7, %cst {dimension_numbers = #tpu.dot_dimension_numbers<[2], [2], [1], [1], [0, 0, 0, 1, 1, 1], [0], [0]>} : vector<4x8x8xbf16>, vector<4x8x8xbf16>, vector<4x8x8xf32> -> vector<4x8x8xf32>
    "tpu.trace_stop"() : () -> ()
    %c0_9 = arith.constant 0 : index
    %c0_10 = arith.constant 0 : index
    %c0_11 = arith.constant 0 : index
    %9 = vector.load %arg4[%c0_9, %c0_10, %c0_11] : memref<4x8x8xf32, #tpu.memory_space<vmem>>, vector<4x8x8xf32>
    tpu.vector_store %arg4[%c0_9, %c0_10, %c0_11], %8 {strides = array<i32>} : memref<4x8x8xf32, #tpu.memory_space<vmem>>, vector<4x8x8xf32>,
    return
  }
  func.func @transform_0(%arg0: i32) -> (i32, i32, i32, i32) {
    %c0_i32 = arith.constant 0 : i32
    %c0_i32_0 = arith.constant 0 : i32
    %c0_i32_1 = arith.constant 0 : i32
    %c0_i32_2 = arith.constant 0 : i32
    return %c0_i32, %arg0, %c0_i32_0, %c0_i32_1 : i32, i32, i32, i32
  }
  func.func @transform_1(%arg0: i32) -> (i32, i32, i32) {
    %c0_i32 = arith.constant 0 : i32
    %c0_i32_0 = arith.constant 0 : i32
    %c0_i32_1 = arith.constant 0 : i32
    return %arg0, %c0_i32, %c0_i32_0 : i32, i32, i32
  }
  func.func @transform_2(%arg0: i32) -> (i32, i32, i32) {
    %c1_i32 = arith.constant 1 : i32
    %c0_i32 = arith.constant 0 : i32
    %0 = arith.cmpi eq, %c1_i32, %c0_i32 : i32
    %c1_i32_0 = arith.constant 1 : i32
    %1 = arith.select %0, %c1_i32_0, %c1_i32 : i32
    %2 = arith.remsi %arg0, %1 : i32
    %c0_i32_1 = arith.constant 0 : i32
    %3 = arith.cmpi ne, %2, %c0_i32_1 : i32
    %c0_i32_2 = arith.constant 0 : i32
    %4 = arith.cmpi slt, %2, %c0_i32_2 : i32
    %c0_i32_3 = arith.constant 0 : i32
    %5 = arith.cmpi slt, %1, %c0_i32_3 : i32
    %6 = arith.xori %4, %5 : i1
    %7 = arith.andi %6, %3 : i1
    %8 = arith.addi %2, %1 : i32
    %9 = arith.select %7, %8, %2 : i32
    %c0_i32_4 = arith.constant 0 : i32
    %c0_i32_5 = arith.constant 0 : i32
    %c0_i32_6 = arith.constant 0 : i32
    return %9, %c0_i32_4, %c0_i32_5 : i32, i32, i32
  }
  func.func @transform_3(%arg0: i32) -> (i32, i32, i32) {
    %c0_i32 = arith.constant 0 : i32
    %c0_i32_0 = arith.constant 0 : i32
    %c0_i32_1 = arith.constant 0 : i32
    return %arg0, %c0_i32, %c0_i32_0 : i32, i32, i32
  }
}

module attributes {stable_mosaic.version = 11 : i64} {
  func.func @_attn_core_kernel(%arg0: i32, %arg1: memref<1x4x8x8xbf16, #tpu.memory_space<vmem>>, %arg2: memref<1x4x8x8xbf16, #tpu.memory_space<vmem>>, %arg3: memref<1x4x8x8xbf16, #tpu.memory_space<vmem>>, %arg4: memref<4x1x8xf32, #tpu.memory_space<vmem>>, %arg5: memref<4x8x8xf32, #tpu.memory_space<vmem>>, %arg6: memref<4x8x8xbf16, #tpu.memory_space<vmem>>) attributes {dimension_semantics = [#tpu.dimension_semantics<parallel>], iteration_bounds = array<i64: 2>, scalar_prefetch = 0 : i64, scratch_operands = 0 : i64, tpu.core_type = #tpu.core_type<tc>, window_params = [{transform_indices = @transform_0, window_bounds = array<i64: 1, 4, 8, 8>}, {transform_indices = @transform_1, window_bounds = array<i64: 1, 4, 8, 8>}, {transform_indices = @transform_2, window_bounds = array<i64: 1, 4, 8, 8>}, {transform_indices = @transform_3, window_bounds = array<i64: 4, 1, 8>}, {transform_indices = @transform_4, window_bounds = array<i64: 4, 8, 8>}, {transform_indices = @transform_5, window_bounds = array<i64: 4, 8, 8>}]} {
    %c0 = arith.constant 0 : index
    %c0_0 = arith.constant 0 : index
    %c0_1 = arith.constant 0 : index
    %c0_2 = arith.constant 0 : index
    %0 = vector.load %arg1[%c0, %c0_0, %c0_1, %c0_2] : memref<1x4x8x8xbf16, #tpu.memory_space<vmem>>, vector<1x4x8x8xbf16>
    %1 = vector.shape_cast %0 : vector<1x4x8x8xbf16> to vector<4x8x8xbf16>
    %2 = arith.extf %1 : vector<4x8x8xbf16> to vector<4x8x8xf32>
    %c0_3 = arith.constant 0 : index
    %c0_4 = arith.constant 0 : index
    %c0_5 = arith.constant 0 : index
    %3 = vector.load %arg4[%c0_3, %c0_4, %c0_5] : memref<4x1x8xf32, #tpu.memory_space<vmem>>, vector<4x1x8xf32>
    %4 = vector.broadcast %3 : vector<4x1x8xf32> to vector<4x8x8xf32>
    %5 = arith.addf %2, %4 : vector<4x8x8xf32>
    %6 = arith.truncf %5 : vector<4x8x8xf32> to vector<4x8x8xbf16>
    %c0_6 = arith.constant 0 : index
    %c0_7 = arith.constant 0 : index
    %c0_8 = arith.constant 0 : index
    %c0_9 = arith.constant 0 : index
    %7 = vector.load %arg2[%c0_6, %c0_7, %c0_8, %c0_9] : memref<1x4x8x8xbf16, #tpu.memory_space<vmem>>, vector<1x4x8x8xbf16>
    %8 = vector.shape_cast %7 : vector<1x4x8x8xbf16> to vector<4x8x8xbf16>
    "tpu.trace_start"() <{level = 10 : i32, message = "hqd,hkd->hqk"}> : () -> ()
    %cst = arith.constant dense<0.000000e+00> : vector<4x8x8xf32>
    %9 = tpu.matmul %6, %8, %cst {dimension_numbers = #tpu.dot_dimension_numbers<[2], [2], [1], [1], [0, 0, 0, 1, 1, 1], [0], [0]>} : vector<4x8x8xbf16>, vector<4x8x8xbf16>, vector<4x8x8xf32> -> vector<4x8x8xf32>
    "tpu.trace_stop"() : () -> ()
    %c0_10 = arith.constant 0 : index
    %c0_11 = arith.constant 0 : index
    %c0_12 = arith.constant 0 : index
    %10 = vector.load %arg5[%c0_10, %c0_11, %c0_12] : memref<4x8x8xf32, #tpu.memory_space<vmem>>, vector<4x8x8xf32>
    %11 = arith.addf %9, %10 : vector<4x8x8xf32>
    %cst_13 = arith.constant 0.176776692 : f32
    %12 = vector.broadcast %cst_13 : f32 to vector<4x8x8xf32>
    %13 = arith.mulf %11, %12 : vector<4x8x8xf32>
    %cst_14 = arith.constant dense<0xFF800000> : vector<4x8xf32>
    %14 = vector.multi_reduction <maximumf>, %13, %cst_14 [2] : vector<4x8x8xf32> to vector<4x8xf32>
    %15 = vector.shape_cast %14 : vector<4x8xf32> to vector<4x8x1xf32>
    %16 = vector.broadcast %15 : vector<4x8x1xf32> to vector<4x8x8xf32>
    %17 = arith.subf %13, %16 : vector<4x8x8xf32>
    %18 = math.exp %17 : vector<4x8x8xf32>
    %cst_15 = arith.constant dense<0.000000e+00> : vector<4x8xf32>
    %19 = vector.multi_reduction <add>, %18, %cst_15 [2] : vector<4x8x8xf32> to vector<4x8xf32>
    %20 = vector.shape_cast %19 : vector<4x8xf32> to vector<4x8x1xf32>
    %21 = tpu.reciprocal %20 {approx = true} : vector<4x8x1xf32> -> vector<4x8x1xf32>
    %22 = vector.broadcast %21 : vector<4x8x1xf32> to vector<4x8x8xf32>
    %23 = arith.mulf %18, %22 : vector<4x8x8xf32>
    %24 = arith.truncf %23 : vector<4x8x8xf32> to vector<4x8x8xbf16>
    %c0_16 = arith.constant 0 : index
    %c0_17 = arith.constant 0 : index
    %c0_18 = arith.constant 0 : index
    %c0_19 = arith.constant 0 : index
    %25 = vector.load %arg3[%c0_16, %c0_17, %c0_18, %c0_19] : memref<1x4x8x8xbf16, #tpu.memory_space<vmem>>, vector<1x4x8x8xbf16>
    %26 = vector.shape_cast %25 : vector<1x4x8x8xbf16> to vector<4x8x8xbf16>
    "tpu.trace_start"() <{level = 10 : i32, message = "hqk,hkd->hqd"}> : () -> ()
    %cst_20 = arith.constant dense<0.000000e+00> : vector<4x8x8xf32>
    %27 = tpu.matmul %24, %26, %cst_20 {dimension_numbers = #tpu.dot_dimension_numbers<[2], [1], [1], [2], [0, 0, 0, 1, 1, 2], [0], [0]>} : vector<4x8x8xbf16>, vector<4x8x8xbf16>, vector<4x8x8xf32> -> vector<4x8x8xf32>
    "tpu.trace_stop"() : () -> ()
    %28 = arith.truncf %27 : vector<4x8x8xf32> to vector<4x8x8xbf16>
    %c0_21 = arith.constant 0 : index
    %c0_22 = arith.constant 0 : index
    %c0_23 = arith.constant 0 : index
    %29 = vector.load %arg6[%c0_21, %c0_22, %c0_23] : memref<4x8x8xbf16, #tpu.memory_space<vmem>>, vector<4x8x8xbf16>
    tpu.vector_store %arg6[%c0_21, %c0_22, %c0_23], %28 {strides = array<i32>} : memref<4x8x8xbf16, #tpu.memory_space<vmem>>, vector<4x8x8xbf16>,
    return
  }
  func.func @transform_0(%arg0: i32) -> (i32, i32, i32, i32) {
    %c0_i32 = arith.constant 0 : i32
    %c0_i32_0 = arith.constant 0 : i32
    %c0_i32_1 = arith.constant 0 : i32
    %c0_i32_2 = arith.constant 0 : i32
    return %c0_i32, %arg0, %c0_i32_0, %c0_i32_1 : i32, i32, i32, i32
  }
  func.func @transform_1(%arg0: i32) -> (i32, i32, i32, i32) {
    %c1_i32 = arith.constant 1 : i32
    %c0_i32 = arith.constant 0 : i32
    %c0_i32_0 = arith.constant 0 : i32
    %c0_i32_1 = arith.constant 0 : i32
    return %c1_i32, %arg0, %c0_i32, %c0_i32_0 : i32, i32, i32, i32
  }
  func.func @transform_2(%arg0: i32) -> (i32, i32, i32, i32) {
    %c2_i32 = arith.constant 2 : i32
    %c0_i32 = arith.constant 0 : i32
    %c0_i32_0 = arith.constant 0 : i32
    %c0_i32_1 = arith.constant 0 : i32
    return %c2_i32, %arg0, %c0_i32, %c0_i32_0 : i32, i32, i32, i32
  }
  func.func @transform_3(%arg0: i32) -> (i32, i32, i32) {
    %c1_i32 = arith.constant 1 : i32
    %c0_i32 = arith.constant 0 : i32
    %0 = arith.cmpi eq, %c1_i32, %c0_i32 : i32
    %c1_i32_0 = arith.constant 1 : i32
    %1 = arith.select %0, %c1_i32_0, %c1_i32 : i32
    %2 = arith.remsi %arg0, %1 : i32
    %c0_i32_1 = arith.constant 0 : i32
    %3 = arith.cmpi ne, %2, %c0_i32_1 : i32
    %c0_i32_2 = arith.constant 0 : i32
    %4 = arith.cmpi slt, %2, %c0_i32_2 : i32
    %c0_i32_3 = arith.constant 0 : i32
    %5 = arith.cmpi slt, %1, %c0_i32_3 : i32
    %6 = arith.xori %4, %5 : i1
    %7 = arith.andi %6, %3 : i1
    %8 = arith.addi %2, %1 : i32
    %9 = arith.select %7, %8, %2 : i32
    %c0_i32_4 = arith.constant 0 : i32
    %c0_i32_5 = arith.constant 0 : i32
    %c0_i32_6 = arith.constant 0 : i32
    return %9, %c0_i32_4, %c0_i32_5 : i32, i32, i32
  }
  func.func @transform_4(%arg0: i32) -> (i32, i32, i32) {
    %c0_i32 = arith.constant 0 : i32
    %c0_i32_0 = arith.constant 0 : i32
    %c0_i32_1 = arith.constant 0 : i32
    return %arg0, %c0_i32, %c0_i32_0 : i32, i32, i32
  }
  func.func @transform_5(%arg0: i32) -> (i32, i32, i32) {
    %c0_i32 = arith.constant 0 : i32
    %c0_i32_0 = arith.constant 0 : i32
    %c0_i32_1 = arith.constant 0 : i32
    return %arg0, %c0_i32, %c0_i32_0 : i32, i32, i32
  }
}

module attributes {stable_mosaic.version = 11 : i64} {
  func.func @_linear_res_ln_kernel(%arg0: i32, %arg1: i32, %arg2: memref<16x32xbf16, #tpu.memory_space<vmem>>, %arg3: memref<32x32xbf16, #tpu.memory_space<vmem>>, %arg4: memref<1x32xf32, #tpu.memory_space<vmem>>, %arg5: memref<16x32xf32, #tpu.memory_space<vmem>>, %arg6: memref<1x32xf32, #tpu.memory_space<vmem>>, %arg7: memref<1x32xf32, #tpu.memory_space<vmem>>, %arg8: memref<16x32xf32, #tpu.memory_space<vmem>>, %arg9: memref<16x32xf32, #tpu.memory_space<vmem>>) attributes {dimension_semantics = [#tpu.dimension_semantics<parallel>, #tpu.dimension_semantics<arbitrary>], iteration_bounds = array<i64: 1, 1>, scalar_prefetch = 0 : i64, scratch_operands = 1 : i64, tpu.core_type = #tpu.core_type<tc>, window_params = [{transform_indices = @transform_0, window_bounds = array<i64: 16, 32>}, {transform_indices = @transform_1, window_bounds = array<i64: 32, 32>}, {pipeline_mode = #tpu.pipeline_mode<synchronous>, transform_indices = @transform_2, window_bounds = array<i64: 1, 32>}, {transform_indices = @transform_3, window_bounds = array<i64: 16, 32>}, {pipeline_mode = #tpu.pipeline_mode<synchronous>, transform_indices = @transform_4, window_bounds = array<i64: 1, 32>}, {pipeline_mode = #tpu.pipeline_mode<synchronous>, transform_indices = @transform_5, window_bounds = array<i64: 1, 32>}, {transform_indices = @transform_6, window_bounds = array<i64: 16, 32>}]} {
    %c0_i32 = arith.constant 0 : i32
    %0 = arith.cmpi eq, %arg1, %c0_i32 : i32
    %1 = arith.extui %0 : i1 to i32
    %c0_i32_0 = arith.constant 0 : i32
    %2 = arith.cmpi ne, %1, %c0_i32_0 : i32
    scf.if %2 {
      %cst_10 = arith.constant 0.000000e+00 : f32
      %12 = vector.broadcast %cst_10 : f32 to vector<16x32xf32>
      %c0_11 = arith.constant 0 : index
      %c0_12 = arith.constant 0 : index
      %13 = vector.load %arg9[%c0_11, %c0_12] : memref<16x32xf32, #tpu.memory_space<vmem>>, vector<16x32xf32>
      tpu.vector_store %arg9[%c0_11, %c0_12], %12 {strides = array<i32>} : memref<16x32xf32, #tpu.memory_space<vmem>>, vector<16x32xf32>,
    } else {
    }
    %c0 = arith.constant 0 : index
    %c0_1 = arith.constant 0 : index
    %3 = vector.load %arg9[%c0, %c0_1] : memref<16x32xf32, #tpu.memory_space<vmem>>, vector<16x32xf32>
    %c0_2 = arith.constant 0 : index
    %c0_3 = arith.constant 0 : index
    %4 = vector.load %arg2[%c0_2, %c0_3] : memref<16x32xbf16, #tpu.memory_space<vmem>>, vector<16x32xbf16>
    %c0_4 = arith.constant 0 : index
    %c0_5 = arith.constant 0 : index
    %5 = vector.load %arg3[%c0_4, %c0_5] : memref<32x32xbf16, #tpu.memory_space<vmem>>, vector<32x32xbf16>
    %cst = arith.constant dense<0.000000e+00> : vector<16x32xf32>
    %6 = tpu.matmul %4, %5, %cst {dimension_numbers = #tpu.dot_dimension_numbers<[1], [0], [0], [1], [0, 0, 1, 1], [], []>} : vector<16x32xbf16>, vector<32x32xbf16>, vector<16x32xf32> -> vector<16x32xf32>
    %7 = arith.addf %3, %6 : vector<16x32xf32>
    %c0_6 = arith.constant 0 : index
    %c0_7 = arith.constant 0 : index
    %8 = vector.load %arg9[%c0_6, %c0_7] : memref<16x32xf32, #tpu.memory_space<vmem>>, vector<16x32xf32>
    tpu.vector_store %arg9[%c0_6, %c0_7], %7 {strides = array<i32>} : memref<16x32xf32, #tpu.memory_space<vmem>>, vector<16x32xf32>,
    %c0_i32_8 = arith.constant 0 : i32
    %9 = arith.cmpi eq, %arg1, %c0_i32_8 : i32
    %10 = arith.extui %9 : i1 to i32
    %c0_i32_9 = arith.constant 0 : i32
    %11 = arith.cmpi ne, %10, %c0_i32_9 : i32
    scf.if %11 {
      %c0_10 = arith.constant 0 : index
      %c0_11 = arith.constant 0 : index
      %12 = vector.load %arg9[%c0_10, %c0_11] : memref<16x32xf32, #tpu.memory_space<vmem>>, vector<16x32xf32>
      %c0_12 = arith.constant 0 : index
      %c0_13 = arith.constant 0 : index
      %13 = vector.load %arg4[%c0_12, %c0_13] : memref<1x32xf32, #tpu.memory_space<vmem>>, vector<1x32xf32>
      %14 = vector.broadcast %13 : vector<1x32xf32> to vector<16x32xf32>
      %15 = arith.addf %12, %14 : vector<16x32xf32>
      %c0_14 = arith.constant 0 : index
      %c0_15 = arith.constant 0 : index
      %16 = vector.load %arg5[%c0_14, %c0_15] : memref<16x32xf32, #tpu.memory_space<vmem>>, vector<16x32xf32>
      %17 = arith.addf %15, %16 : vector<16x32xf32>
      %cst_16 = arith.constant dense<0.000000e+00> : vector<16xf32>
      %18 = vector.multi_reduction <add>, %17, %cst_16 [1] : vector<16x32xf32> to vector<16xf32>
      %19 = vector.shape_cast %18 : vector<16xf32> to vector<16x1xf32>
      %cst_17 = arith.constant 3.200000e+01 : f32
      %20 = vector.broadcast %cst_17 : f32 to vector<16x1xf32>
      %21 = arith.divf %19, %20 : vector<16x1xf32>
      %22 = vector.broadcast %21 : vector<16x1xf32> to vector<16x32xf32>
      %23 = arith.subf %17, %22 : vector<16x32xf32>
      %24 = arith.mulf %23, %23 : vector<16x32xf32>
      %cst_18 = arith.constant dense<0.000000e+00> : vector<16xf32>
      %25 = vector.multi_reduction <add>, %24, %cst_18 [1] : vector<16x32xf32> to vector<16xf32>
      %26 = vector.shape_cast %25 : vector<16xf32> to vector<16x1xf32>
      %cst_19 = arith.constant 3.200000e+01 : f32
      %27 = vector.broadcast %cst_19 : f32 to vector<16x1xf32>
      %28 = arith.divf %26, %27 : vector<16x1xf32>
      %29 = vector.broadcast %21 : vector<16x1xf32> to vector<16x32xf32>
      %30 = arith.subf %17, %29 : vector<16x32xf32>
      %cst_20 = arith.constant 9.99999974E-6 : f32
      %31 = vector.broadcast %cst_20 : f32 to vector<16x1xf32>
      %32 = arith.addf %28, %31 : vector<16x1xf32>
      %33 = math.rsqrt %32 : vector<16x1xf32>
      %34 = vector.broadcast %33 : vector<16x1xf32> to vector<16x32xf32>
      %35 = arith.mulf %30, %34 : vector<16x32xf32>
      %c0_21 = arith.constant 0 : index
      %c0_22 = arith.constant 0 : index
      %36 = vector.load %arg6[%c0_21, %c0_22] : memref<1x32xf32, #tpu.memory_space<vmem>>, vector<1x32xf32>
      %37 = vector.broadcast %36 : vector<1x32xf32> to vector<16x32xf32>
      %38 = arith.mulf %35, %37 : vector<16x32xf32>
      %c0_23 = arith.constant 0 : index
      %c0_24 = arith.constant 0 : index
      %39 = vector.load %arg7[%c0_23, %c0_24] : memref<1x32xf32, #tpu.memory_space<vmem>>, vector<1x32xf32>
      %40 = vector.broadcast %39 : vector<1x32xf32> to vector<16x32xf32>
      %41 = arith.addf %38, %40 : vector<16x32xf32>
      %c0_25 = arith.constant 0 : index
      %c0_26 = arith.constant 0 : index
      %42 = vector.load %arg8[%c0_25, %c0_26] : memref<16x32xf32, #tpu.memory_space<vmem>>, vector<16x32xf32>
      tpu.vector_store %arg8[%c0_25, %c0_26], %41 {strides = array<i32>} : memref<16x32xf32, #tpu.memory_space<vmem>>, vector<16x32xf32>,
    } else {
    }
    return
  }
  func.func @transform_0(%arg0: i32, %arg1: i32) -> (i32, i32) {
    %c0_i32 = arith.constant 0 : i32
    return %arg0, %arg1 : i32, i32
  }
  func.func @transform_1(%arg0: i32, %arg1: i32) -> (i32, i32) {
    %c0_i32 = arith.constant 0 : i32
    %c0_i32_0 = arith.constant 0 : i32
    return %arg1, %c0_i32 : i32, i32
  }
  func.func @transform_2(%arg0: i32, %arg1: i32) -> (i32, i32) {
    %c0_i32 = arith.constant 0 : i32
    %c0_i32_0 = arith.constant 0 : i32
    %c0_i32_1 = arith.constant 0 : i32
    return %c0_i32, %c0_i32_0 : i32, i32
  }
  func.func @transform_3(%arg0: i32, %arg1: i32) -> (i32, i32) {
    %c0_i32 = arith.constant 0 : i32
    %c0_i32_0 = arith.constant 0 : i32
    return %arg0, %c0_i32 : i32, i32
  }
  func.func @transform_4(%arg0: i32, %arg1: i32) -> (i32, i32) {
    %c0_i32 = arith.constant 0 : i32
    %c0_i32_0 = arith.constant 0 : i32
    %c0_i32_1 = arith.constant 0 : i32
    return %c0_i32, %c0_i32_0 : i32, i32
  }
  func.func @transform_5(%arg0: i32, %arg1: i32) -> (i32, i32) {
    %c0_i32 = arith.constant 0 : i32
    %c0_i32_0 = arith.constant 0 : i32
    %c0_i32_1 = arith.constant 0 : i32
    return %c0_i32, %c0_i32_0 : i32, i32
  }
  func.func @transform_6(%arg0: i32, %arg1: i32) -> (i32, i32) {
    %c0_i32 = arith.constant 0 : i32
    %c0_i32_0 = arith.constant 0 : i32
    return %arg0, %c0_i32 : i32, i32
  }
}

module attributes {stable_mosaic.version = 11 : i64} {
  func.func @_linear_kernel(%arg0: i32, %arg1: i32, %arg2: i32, %arg3: memref<16x32xbf16, #tpu.memory_space<vmem>>, %arg4: memref<32x4xbf16, #tpu.memory_space<vmem>>, %arg5: memref<1x4xf32, #tpu.memory_space<vmem>>, %arg6: memref<16x4xf32, #tpu.memory_space<vmem>>, %arg7: memref<16x4xf32, #tpu.memory_space<vmem>>) attributes {dimension_semantics = [#tpu.dimension_semantics<parallel>, #tpu.dimension_semantics<parallel>, #tpu.dimension_semantics<arbitrary>], iteration_bounds = array<i64: 1, 1, 1>, scalar_prefetch = 0 : i64, scratch_operands = 1 : i64, tpu.core_type = #tpu.core_type<tc>, window_params = [{transform_indices = @transform_0, window_bounds = array<i64: 16, 32>}, {transform_indices = @transform_1, window_bounds = array<i64: 32, 4>}, {transform_indices = @transform_2, window_bounds = array<i64: 1, 4>}, {transform_indices = @transform_3, window_bounds = array<i64: 16, 4>}]} {
    %c0_i32 = arith.constant 0 : i32
    %0 = arith.cmpi eq, %arg2, %c0_i32 : i32
    %1 = arith.extui %0 : i1 to i32
    %c0_i32_0 = arith.constant 0 : i32
    %2 = arith.cmpi ne, %1, %c0_i32_0 : i32
    scf.if %2 {
      %cst_10 = arith.constant 0.000000e+00 : f32
      %12 = vector.broadcast %cst_10 : f32 to vector<16x4xf32>
      %c0_11 = arith.constant 0 : index
      %c0_12 = arith.constant 0 : index
      %13 = vector.load %arg7[%c0_11, %c0_12] : memref<16x4xf32, #tpu.memory_space<vmem>>, vector<16x4xf32>
      tpu.vector_store %arg7[%c0_11, %c0_12], %12 {strides = array<i32>} : memref<16x4xf32, #tpu.memory_space<vmem>>, vector<16x4xf32>,
    } else {
    }
    %c0 = arith.constant 0 : index
    %c0_1 = arith.constant 0 : index
    %3 = vector.load %arg7[%c0, %c0_1] : memref<16x4xf32, #tpu.memory_space<vmem>>, vector<16x4xf32>
    %c0_2 = arith.constant 0 : index
    %c0_3 = arith.constant 0 : index
    %4 = vector.load %arg3[%c0_2, %c0_3] : memref<16x32xbf16, #tpu.memory_space<vmem>>, vector<16x32xbf16>
    %c0_4 = arith.constant 0 : index
    %c0_5 = arith.constant 0 : index
    %5 = vector.load %arg4[%c0_4, %c0_5] : memref<32x4xbf16, #tpu.memory_space<vmem>>, vector<32x4xbf16>
    %cst = arith.constant dense<0.000000e+00> : vector<16x4xf32>
    %6 = tpu.matmul %4, %5, %cst {dimension_numbers = #tpu.dot_dimension_numbers<[1], [0], [0], [1], [0, 0, 1, 1], [], []>} : vector<16x32xbf16>, vector<32x4xbf16>, vector<16x4xf32> -> vector<16x4xf32>
    %7 = arith.addf %3, %6 : vector<16x4xf32>
    %c0_6 = arith.constant 0 : index
    %c0_7 = arith.constant 0 : index
    %8 = vector.load %arg7[%c0_6, %c0_7] : memref<16x4xf32, #tpu.memory_space<vmem>>, vector<16x4xf32>
    tpu.vector_store %arg7[%c0_6, %c0_7], %7 {strides = array<i32>} : memref<16x4xf32, #tpu.memory_space<vmem>>, vector<16x4xf32>,
    %c0_i32_8 = arith.constant 0 : i32
    %9 = arith.cmpi eq, %arg2, %c0_i32_8 : i32
    %10 = arith.extui %9 : i1 to i32
    %c0_i32_9 = arith.constant 0 : i32
    %11 = arith.cmpi ne, %10, %c0_i32_9 : i32
    scf.if %11 {
      %c0_10 = arith.constant 0 : index
      %c0_11 = arith.constant 0 : index
      %12 = vector.load %arg7[%c0_10, %c0_11] : memref<16x4xf32, #tpu.memory_space<vmem>>, vector<16x4xf32>
      %c0_12 = arith.constant 0 : index
      %c0_13 = arith.constant 0 : index
      %13 = vector.load %arg5[%c0_12, %c0_13] : memref<1x4xf32, #tpu.memory_space<vmem>>, vector<1x4xf32>
      %14 = vector.broadcast %13 : vector<1x4xf32> to vector<16x4xf32>
      %15 = arith.addf %12, %14 : vector<16x4xf32>
      %c0_14 = arith.constant 0 : index
      %c0_15 = arith.constant 0 : index
      %16 = vector.load %arg6[%c0_14, %c0_15] : memref<16x4xf32, #tpu.memory_space<vmem>>, vector<16x4xf32>
      tpu.vector_store %arg6[%c0_14, %c0_15], %15 {strides = array<i32>} : memref<16x4xf32, #tpu.memory_space<vmem>>, vector<16x4xf32>,
    } else {
    }
    return
  }
  func.func @transform_0(%arg0: i32, %arg1: i32, %arg2: i32) -> (i32, i32) {
    %c0_i32 = arith.constant 0 : i32
    return %arg0, %arg2 : i32, i32
  }
  func.func @transform_1(%arg0: i32, %arg1: i32, %arg2: i32) -> (i32, i32) {
    %c0_i32 = arith.constant 0 : i32
    return %arg2, %arg1 : i32, i32
  }
  func.func @transform_2(%arg0: i32, %arg1: i32, %arg2: i32) -> (i32, i32) {
    %c0_i32 = arith.constant 0 : i32
    %c0_i32_0 = arith.constant 0 : i32
    return %c0_i32, %arg1 : i32, i32
  }
  func.func @transform_3(%arg0: i32, %arg1: i32, %arg2: i32) -> (i32, i32) {
    %c0_i32 = arith.constant 0 : i32
    return %arg0, %arg1 : i32, i32
  }
}

module attributes {stable_mosaic.version = 11 : i64} {
  func.func @_moe_kernel(%arg0: i32, %arg1: i32, %arg2: i32, %arg3: memref<16x32xf32, #tpu.memory_space<vmem>>, %arg4: memref<16x4xf32, #tpu.memory_space<vmem>>, %arg5: memref<1x32x64xbf16, #tpu.memory_space<vmem>>, %arg6: memref<1x64x32xbf16, #tpu.memory_space<vmem>>, %arg7: memref<1x32xf32, #tpu.memory_space<vmem>>, %arg8: memref<1x32xf32, #tpu.memory_space<vmem>>, %arg9: memref<16x32xf32, #tpu.memory_space<vmem>>, %arg10: memref<16x32xf32, #tpu.memory_space<vmem>>) attributes {dimension_semantics = [#tpu.dimension_semantics<parallel>, #tpu.dimension_semantics<arbitrary>, #tpu.dimension_semantics<arbitrary>], iteration_bounds = array<i64: 1, 4, 1>, scalar_prefetch = 0 : i64, scratch_operands = 1 : i64, tpu.core_type = #tpu.core_type<tc>, window_params = [{transform_indices = @transform_0, window_bounds = array<i64: 16, 32>}, {transform_indices = @transform_1, window_bounds = array<i64: 16, 4>}, {transform_indices = @transform_2, window_bounds = array<i64: 1, 32, 64>}, {transform_indices = @transform_3, window_bounds = array<i64: 1, 64, 32>}, {pipeline_mode = #tpu.pipeline_mode<synchronous>, transform_indices = @transform_4, window_bounds = array<i64: 1, 32>}, {pipeline_mode = #tpu.pipeline_mode<synchronous>, transform_indices = @transform_5, window_bounds = array<i64: 1, 32>}, {transform_indices = @transform_6, window_bounds = array<i64: 16, 32>}]} {
    %c0_i32 = arith.constant 0 : i32
    %0 = arith.cmpi eq, %arg1, %c0_i32 : i32
    %c0_i32_0 = arith.constant 0 : i32
    %1 = arith.cmpi eq, %arg2, %c0_i32_0 : i32
    %2 = arith.andi %0, %1 : i1
    %3 = arith.extui %2 : i1 to i32
    %c0_i32_1 = arith.constant 0 : i32
    %4 = arith.cmpi ne, %3, %c0_i32_1 : i32
    scf.if %4 {
      %cst_23 = arith.constant 0.000000e+00 : f32
      %46 = vector.broadcast %cst_23 : f32 to vector<16x32xf32>
      %c0_24 = arith.constant 0 : index
      %c0_25 = arith.constant 0 : index
      %47 = vector.load %arg10[%c0_24, %c0_25] : memref<16x32xf32, #tpu.memory_space<vmem>>, vector<16x32xf32>
      tpu.vector_store %arg10[%c0_24, %c0_25], %46 {strides = array<i32>} : memref<16x32xf32, #tpu.memory_space<vmem>>, vector<16x32xf32>,
    } else {
    }
    %c0 = arith.constant 0 : index
    %c0_2 = arith.constant 0 : index
    %5 = vector.load %arg3[%c0, %c0_2] : memref<16x32xf32, #tpu.memory_space<vmem>>, vector<16x32xf32>
    %6 = arith.truncf %5 : vector<16x32xf32> to vector<16x32xbf16>
    %c0_3 = arith.constant 0 : index
    %c0_4 = arith.constant 0 : index
    %c0_5 = arith.constant 0 : index
    %7 = vector.load %arg5[%c0_3, %c0_4, %c0_5] : memref<1x32x64xbf16, #tpu.memory_space<vmem>>, vector<1x32x64xbf16>
    %8 = vector.shape_cast %7 : vector<1x32x64xbf16> to vector<32x64xbf16>
    %cst = arith.constant dense<0.000000e+00> : vector<16x64xf32>
    %9 = tpu.matmul %6, %8, %cst {dimension_numbers = #tpu.dot_dimension_numbers<[1], [0], [0], [1], [0, 0, 1, 1], [], []>} : vector<16x32xbf16>, vector<32x64xbf16>, vector<16x64xf32> -> vector<16x64xf32>
    %10 = arith.mulf %9, %9 : vector<16x64xf32>
    %11 = arith.mulf %9, %10 : vector<16x64xf32>
    %cst_6 = arith.constant 4.471500e-02 : f32
    %12 = vector.broadcast %cst_6 : f32 to vector<16x64xf32>
    %13 = arith.mulf %12, %11 : vector<16x64xf32>
    %14 = arith.addf %9, %13 : vector<16x64xf32>
    %cst_7 = arith.constant 0.797884583 : f32
    %15 = vector.broadcast %cst_7 : f32 to vector<16x64xf32>
    %16 = arith.mulf %15, %14 : vector<16x64xf32>
    %17 = math.tanh %16 : vector<16x64xf32>
    %cst_8 = arith.constant 1.000000e+00 : f32
    %18 = vector.broadcast %cst_8 : f32 to vector<16x64xf32>
    %19 = arith.addf %18, %17 : vector<16x64xf32>
    %cst_9 = arith.constant 5.000000e-01 : f32
    %20 = vector.broadcast %cst_9 : f32 to vector<16x64xf32>
    %21 = arith.mulf %20, %19 : vector<16x64xf32>
    %22 = arith.mulf %9, %21 : vector<16x64xf32>
    %23 = arith.truncf %22 : vector<16x64xf32> to vector<16x64xbf16>
    %c0_10 = arith.constant 0 : index
    %c0_11 = arith.constant 0 : index
    %c0_12 = arith.constant 0 : index
    %24 = vector.load %arg6[%c0_10, %c0_11, %c0_12] : memref<1x64x32xbf16, #tpu.memory_space<vmem>>, vector<1x64x32xbf16>
    %25 = vector.shape_cast %24 : vector<1x64x32xbf16> to vector<64x32xbf16>
    %cst_13 = arith.constant dense<0.000000e+00> : vector<16x32xf32>
    %26 = tpu.matmul %23, %25, %cst_13 {dimension_numbers = #tpu.dot_dimension_numbers<[1], [0], [0], [1], [0, 0, 1, 1], [], []>} : vector<16x64xbf16>, vector<64x32xbf16>, vector<16x32xf32> -> vector<16x32xf32>
    %27 = tpu.iota {dimensions = array<i32: 1>} : vector<16x4xi32>
    %28 = vector.broadcast %arg1 : i32 to vector<16x4xi32>
    %29 = arith.cmpi eq, %27, %28 : vector<16x4xi32>
    %c0_14 = arith.constant 0 : index
    %c0_15 = arith.constant 0 : index
    %30 = vector.load %arg4[%c0_14, %c0_15] : memref<16x4xf32, #tpu.memory_space<vmem>>, vector<16x4xf32>
    %31 = arith.extui %29 : vector<16x4xi1> to vector<16x4xi32>
    %32 = arith.sitofp %31 : vector<16x4xi32> to vector<16x4xf32>
    %33 = arith.mulf %30, %32 : vector<16x4xf32>
    %cst_16 = arith.constant dense<0.000000e+00> : vector<16xf32>
    %34 = vector.multi_reduction <add>, %33, %cst_16 [1] : vector<16x4xf32> to vector<16xf32>
    %35 = vector.shape_cast %34 : vector<16xf32> to vector<16x1xf32>
    %c0_17 = arith.constant 0 : index
    %c0_18 = arith.constant 0 : index
    %36 = vector.load %arg10[%c0_17, %c0_18] : memref<16x32xf32, #tpu.memory_space<vmem>>, vector<16x32xf32>
    %37 = vector.broadcast %35 : vector<16x1xf32> to vector<16x32xf32>
    %38 = arith.mulf %37, %26 : vector<16x32xf32>
    %39 = arith.addf %36, %38 : vector<16x32xf32>
    %c0_19 = arith.constant 0 : index
    %c0_20 = arith.constant 0 : index
    %40 = vector.load %arg10[%c0_19, %c0_20] : memref<16x32xf32, #tpu.memory_space<vmem>>, vector<16x32xf32>
    tpu.vector_store %arg10[%c0_19, %c0_20], %39 {strides = array<i32>} : memref<16x32xf32, #tpu.memory_space<vmem>>, vector<16x32xf32>,
    %c3_i32 = arith.constant 3 : i32
    %41 = arith.cmpi eq, %arg1, %c3_i32 : i32
    %c0_i32_21 = arith.constant 0 : i32
    %42 = arith.cmpi eq, %arg2, %c0_i32_21 : i32
    %43 = arith.andi %41, %42 : i1
    %44 = arith.extui %43 : i1 to i32
    %c0_i32_22 = arith.constant 0 : i32
    %45 = arith.cmpi ne, %44, %c0_i32_22 : i32
    scf.if %45 {
      %c0_23 = arith.constant 0 : index
      %c0_24 = arith.constant 0 : index
      %46 = vector.load %arg10[%c0_23, %c0_24] : memref<16x32xf32, #tpu.memory_space<vmem>>, vector<16x32xf32>
      %47 = arith.addf %46, %5 : vector<16x32xf32>
      %cst_25 = arith.constant dense<0.000000e+00> : vector<16xf32>
      %48 = vector.multi_reduction <add>, %47, %cst_25 [1] : vector<16x32xf32> to vector<16xf32>
      %49 = vector.shape_cast %48 : vector<16xf32> to vector<16x1xf32>
      %cst_26 = arith.constant 3.200000e+01 : f32
      %50 = vector.broadcast %cst_26 : f32 to vector<16x1xf32>
      %51 = arith.divf %49, %50 : vector<16x1xf32>
      %52 = vector.broadcast %51 : vector<16x1xf32> to vector<16x32xf32>
      %53 = arith.subf %47, %52 : vector<16x32xf32>
      %54 = arith.mulf %53, %53 : vector<16x32xf32>
      %cst_27 = arith.constant dense<0.000000e+00> : vector<16xf32>
      %55 = vector.multi_reduction <add>, %54, %cst_27 [1] : vector<16x32xf32> to vector<16xf32>
      %56 = vector.shape_cast %55 : vector<16xf32> to vector<16x1xf32>
      %cst_28 = arith.constant 3.200000e+01 : f32
      %57 = vector.broadcast %cst_28 : f32 to vector<16x1xf32>
      %58 = arith.divf %56, %57 : vector<16x1xf32>
      %59 = vector.broadcast %51 : vector<16x1xf32> to vector<16x32xf32>
      %60 = arith.subf %47, %59 : vector<16x32xf32>
      %cst_29 = arith.constant 9.99999974E-6 : f32
      %61 = vector.broadcast %cst_29 : f32 to vector<16x1xf32>
      %62 = arith.addf %58, %61 : vector<16x1xf32>
      %63 = math.rsqrt %62 : vector<16x1xf32>
      %64 = vector.broadcast %63 : vector<16x1xf32> to vector<16x32xf32>
      %65 = arith.mulf %60, %64 : vector<16x32xf32>
      %c0_30 = arith.constant 0 : index
      %c0_31 = arith.constant 0 : index
      %66 = vector.load %arg7[%c0_30, %c0_31] : memref<1x32xf32, #tpu.memory_space<vmem>>, vector<1x32xf32>
      %67 = vector.broadcast %66 : vector<1x32xf32> to vector<16x32xf32>
      %68 = arith.mulf %65, %67 : vector<16x32xf32>
      %c0_32 = arith.constant 0 : index
      %c0_33 = arith.constant 0 : index
      %69 = vector.load %arg8[%c0_32, %c0_33] : memref<1x32xf32, #tpu.memory_space<vmem>>, vector<1x32xf32>
      %70 = vector.broadcast %69 : vector<1x32xf32> to vector<16x32xf32>
      %71 = arith.addf %68, %70 : vector<16x32xf32>
      %c0_34 = arith.constant 0 : index
      %c0_35 = arith.constant 0 : index
      %72 = vector.load %arg9[%c0_34, %c0_35] : memref<16x32xf32, #tpu.memory_space<vmem>>, vector<16x32xf32>
      tpu.vector_store %arg9[%c0_34, %c0_35], %71 {strides = array<i32>} : memref<16x32xf32, #tpu.memory_space<vmem>>, vector<16x32xf32>,
    } else {
    }
    return
  }
  func.func @transform_0(%arg0: i32, %arg1: i32, %arg2: i32) -> (i32, i32) {
    %c0_i32 = arith.constant 0 : i32
    %c0_i32_0 = arith.constant 0 : i32
    return %arg0, %c0_i32 : i32, i32
  }
  func.func @transform_1(%arg0: i32, %arg1: i32, %arg2: i32) -> (i32, i32) {
    %c0_i32 = arith.constant 0 : i32
    %c0_i32_0 = arith.constant 0 : i32
    return %arg0, %c0_i32 : i32, i32
  }
  func.func @transform_2(%arg0: i32, %arg1: i32, %arg2: i32) -> (i32, i32, i32) {
    %c0_i32 = arith.constant 0 : i32
    %c0_i32_0 = arith.constant 0 : i32
    return %arg1, %c0_i32, %arg2 : i32, i32, i32
  }
  func.func @transform_3(%arg0: i32, %arg1: i32, %arg2: i32) -> (i32, i32, i32) {
    %c0_i32 = arith.constant 0 : i32
    %c0_i32_0 = arith.constant 0 : i32
    return %arg1, %arg2, %c0_i32 : i32, i32, i32
  }
  func.func @transform_4(%arg0: i32, %arg1: i32, %arg2: i32) -> (i32, i32) {
    %c0_i32 = arith.constant 0 : i32
    %c0_i32_0 = arith.constant 0 : i32
    %c0_i32_1 = arith.constant 0 : i32
    return %c0_i32, %c0_i32_0 : i32, i32
  }
  func.func @transform_5(%arg0: i32, %arg1: i32, %arg2: i32) -> (i32, i32) {
    %c0_i32 = arith.constant 0 : i32
    %c0_i32_0 = arith.constant 0 : i32
    %c0_i32_1 = arith.constant 0 : i32
    return %c0_i32, %c0_i32_0 : i32, i32
  }
  func.func @transform_6(%arg0: i32, %arg1: i32, %arg2: i32) -> (i32, i32) {
    %c0_i32 = arith.constant 0 : i32
    %c0_i32_0 = arith.constant 0 : i32
    return %arg0, %c0_i32 : i32, i32
  }
}

</mosaic_0001>

<llo_original>
// kernel: encoder_layer.8
$region0: #{encoder_layer.8}
  #allocation0 [shape = 'u32[]', space=smem, size = 0x4, offset = 0x4, fixed_abs, tag = 'smem constant byte address 0x4 - core index']
  #allocation1 [shape = 'u32[144,128]{1,0:T(1,128)}', space=vmem, size = 0x12000, scoped, tag = 'internal scratch']
  #allocation2 [shape = 'f32[16,32]{1,0:T(8,128)}', space=vmem, size = 0x2000, scoped, tag = 'scratch operand']
  %s0 = inlined_call_operand.vmem [shape: bf16[16,32], index: 0, kind: input, shape index: {}]
  %s1 = inlined_call_operand.vmem [shape: bf16[32,32], index: 1, kind: input, shape index: {}]
  %s2 = inlined_call_operand.vmem [shape: f32[1,32], index: 2, kind: input, shape index: {}]
  %s3 = inlined_call_operand.vmem [shape: bf16[16,32], index: 3, kind: output, shape index: {}]
  %s4 = sld [smem:[#allocation0]]
  $region30: #{encoder_layer.8} parent=0
    _
  %s6 = ssub.s32 1, %s4
  %s7 = scalar_select 0, %s6, %s4
  // Predicated region
  $region2: #{encoder_layer.8} parent=0 // pred_check
    _
  $region3: #{encoder_layer.8} parent=0 // pred_check_branch
    %9 = sbr.rel (0) target = $region5
  $region4: #{encoder_layer.8} parent=0 // pred_region
    _
  $region5: #{encoder_layer.8} parent=0 // pred_fallthru
    _
  // Predicated region
  $region6: #{encoder_layer.8} parent=0 // pred_check
    _
  $region7: #{encoder_layer.8} parent=0 // pred_check_branch
    %11 = sbr.rel (0) target = $region9
  $region8: #{encoder_layer.8} parent=0 // pred_region
    _
  $region9: #{encoder_layer.8} parent=0 // pred_fallthru
    _
  // Predicated region
  $region10: #{encoder_layer.8} parent=0 // pred_check
    _
  $region11: #{encoder_layer.8} parent=0 // pred_check_branch
    %13 = sbr.rel (0) target = $region13
  $region12: #{encoder_layer.8} parent=0 // pred_region
    _
  $region13: #{encoder_layer.8} parent=0 // pred_fallthru
    _
  %p15 = scmp.eq.s32.totalorder 0, 0
  // Predicated region
  $region14: #{encoder_layer.8} parent=0 // pred_check
    %p16 = pneg %p15
  $region15: #{encoder_layer.8} parent=0 // pred_check_branch
    %18 = sbr.rel (%p16) target = $region17
  $region16: #{encoder_layer.8} parent=0 // pred_region
    %vm19 = vcmask 261120
    %20 = vst.msk [vmem:[#allocation2] sm:$0xff] %vm19, 0.0
    %21 = vst.msk [vmem:[#allocation2 + $0x8] sm:$0xff] %vm19, 0.0
  $region17: #{encoder_layer.8} parent=0 // pred_fallthru
    _
  %v22 = vld [vmem:[#allocation2] sm:$0xff]
  %v23 = vld [vmem:[#allocation2 + $0x8] sm:$0xff]
  %v24 = vld [vmem:[%s0] sm:$0xf]
  %v25 = vld [vmem:[%s0 + $0x4] sm:$0xf]
  %v26 = vld [vmem:[%s1] sm:$0xf]
  %v27 = vld [vmem:[%s1 + $0x4] sm:$0xf]
  %v28 = vld [vmem:[%s1 + $0x8] sm:$0xf]
  %v29 = vld [vmem:[%s1 + $0xc] sm:$0xf]
  %v32 = vunpack.c.l.b16 %v24
  %v33 = vunpack.c.l.b16 %v25
  %v34 = vpack.c.b16 %v33, %v32
  %v39 = vunpack.c.l.b16 %v26
  %v40 = vunpack.c.l.b16 %v27
  %v41 = vunpack.c.l.b16 %v28
  %v42 = vunpack.c.l.b16 %v29
  %v43 = vpack.c.b16 %v40, %v39
  %v44 = vpack.c.b16 %v42, %v41
  %vm47 = vcmask 261120
  %v49 = vsel %vm47, %v34, 0
  %51 = vmatprep.subr.bf16.mxu0 0
  %52 = vmatpush1.bf16.msra.mxu0 0
  %53 = vmatprep.subr.bf16.mxu0 0
  %54 = vmatpush1.bf16.msra.mxu0 0
  %55 = vmatprep.subr.bf16.mxu0 0
  %56 = vmatpush1.bf16.msra.mxu0 0
  %57 = vmatprep.subr.bf16.mxu0 0
  %58 = vmatpush1.bf16.msra.mxu0 0
  %59 = vmatprep.subr.bf16.mxu0 0
  %60 = vmatpush1.bf16.msra.mxu0 0
  %61 = vmatprep.subr.bf16.mxu0 0
  %62 = vmatpush1.bf16.msra.mxu0 0
  %63 = vmatprep.subr.bf16.mxu0 0
  %64 = vmatpush1.bf16.msra.mxu0 %v44
  %65 = vmatprep.subr.bf16.mxu0 0
  %66 = vmatpush1.bf16.msra.mxu0 %v43
  %67 = vmatprep.subr.bf16.mxu0 0
  %68 = vmatpush2.bf16.msra.mxu0 0
  %69 = vmatprep.subr.bf16.mxu0 0
  %70 = vmatpush2.bf16.msra.mxu0 0
  %71 = vmatprep.subr.bf16.mxu0 0
  %72 = vmatpush2.bf16.msra.mxu0 0
  %73 = vmatprep.subr.bf16.mxu0 0
  %74 = vmatpush2.bf16.msra.mxu0 0
  %75 = vmatprep.subr.bf16.mxu0 0
  %76 = vmatpush2.bf16.msra.mxu0 0
  %77 = vmatprep.subr.bf16.mxu0 0
  %78 = vmatpush2.bf16.msra.mxu0 0
  %79 = vmatprep.subr.bf16.mxu0 0
  %80 = vmatpush2.bf16.msra.mxu0 0
  %81 = vmatprep.subr.bf16.mxu0 0
  %82 = vmatpush2.bf16.msra.mxu0 0
  %83 = vmatprep.mubr.bf16.mxu0 0
  %84 = vmatmul.mubr.bf16.gmra.mxu0 %v49
  %v85 = vpop.f32.mrf.mxu0
  %v86 = vadd.f32 0.0, %v85
  %v87 = vpop.f32.mrf.mxu0
  %v88 = vpop.f32.mrf.mxu0
  %v89 = vadd.f32 0.0, %v88
  %v90 = vpop.f32.mrf.mxu0
  %91 = vdwg.mxu0
  %v92 = vadd.f32 %v22, %v86
  %v93 = vadd.f32 %v23, %v89
  %94 = vst.msk [vmem:[#allocation2] sm:$0xff] %vm47, %v92
  %95 = vst.msk [vmem:[#allocation2 + $0x8] sm:$0xff] %vm47, %v93
  // Predicated region
  $region18: #{encoder_layer.8} parent=0 // pred_check
    %p96 = pneg %p15
  $region19: #{encoder_layer.8} parent=0 // pred_check_branch
    %98 = sbr.rel (%p96) target = $region21
  $region20: #{encoder_layer.8} parent=0 // pred_region
    %v99 = vld [vmem:[#allocation2] sm:$0xff]
    %v100 = vld [vmem:[#allocation2 + $0x8] sm:$0xff]
    %v101 = vld [vmem:[%s2] sm:$0x1]
    %v103 = vlaneseq
    %v104 = vshrl.u32 %v103, 7
    %v105 = vsub.s32 0, %v104
    %v106 = vrot.slane %v101, %v105
    %v108 = vadd.f32 %v99, %v106
    %v109 = vadd.f32 %v100, %v106
    %v110 = vpack.c.bf16 %v109, %v108
    %v112 = vunpack.c.l.b16 %v110
    %v113 = vunpack.c.h.b16 %v110
    %v114 = vpack.c.b16 %v112, %v112
    %v115 = vpack.c.b16 %v113, %v113
    %vm118 = vcmask 257024
    %119 = vst.msk [vmem:[%s3] sm:$0xf] %vm118, %v114
    %120 = vst.msk [vmem:[%s3 + $0x4] sm:$0xf] %vm118, %v115
  $region21: #{encoder_layer.8} parent=0 // pred_fallthru
    _
  // Predicated region
  $region22: #{encoder_layer.8} parent=0 // pred_check
    _
  $region23: #{encoder_layer.8} parent=0 // pred_check_branch
    %122 = sbr.rel (0) target = $region25
  $region24: #{encoder_layer.8} parent=0 // pred_region
    _
  $region25: #{encoder_layer.8} parent=0 // pred_fallthru
    _
  // Predicated region
  $region26: #{encoder_layer.8} parent=0 // pred_check
    _
  $region27: #{encoder_layer.8} parent=0 // pred_check_branch
    %124 = sbr.rel (0) target = $region29
  $region28: #{encoder_layer.8} parent=0 // pred_region
    _
  $region29: #{encoder_layer.8} parent=0 // pred_fallthru
    _

// kernel: encoder_layer.7
$region0: #{encoder_layer.7}
  #allocation0 [shape = 'u32[]', space=smem, size = 0x4, offset = 0x4, fixed_abs, tag = 'smem constant byte address 0x4 - core index']
  #allocation1 [shape = 'u32[144,128]{1,0:T(1,128)}', space=vmem, size = 0x12000, scoped, tag = 'internal scratch']
  #allocation2 [shape = 'f32[16,96]{1,0:T(8,128)}', space=vmem, size = 0x2000, scoped, tag = 'scratch operand']
  %s0 = inlined_call_operand.vmem [shape: bf16[16,32], index: 0, kind: input, shape index: {}]
  %s1 = inlined_call_operand.vmem [shape: bf16[32,96], index: 1, kind: input, shape index: {}]
  %s2 = inlined_call_operand.vmem [shape: f32[1,96], index: 2, kind: input, shape index: {}]
  %s3 = inlined_call_operand.vmem [shape: bf16[16,96], index: 3, kind: output, shape index: {}]
  %s4 = sld [smem:[#allocation0]]
  $region30: #{encoder_layer.7} parent=0
    _
  %s6 = ssub.s32 1, %s4
  %s7 = scalar_select 0, %s6, %s4
  // Predicated region
  $region2: #{encoder_layer.7} parent=0 // pred_check
    _
  $region3: #{encoder_layer.7} parent=0 // pred_check_branch
    %9 = sbr.rel (0) target = $region5
  $region4: #{encoder_layer.7} parent=0 // pred_region
    _
  $region5: #{encoder_layer.7} parent=0 // pred_fallthru
    _
  // Predicated region
  $region6: #{encoder_layer.7} parent=0 // pred_check
    _
  $region7: #{encoder_layer.7} parent=0 // pred_check_branch
    %11 = sbr.rel (0) target = $region9
  $region8: #{encoder_layer.7} parent=0 // pred_region
    _
  $region9: #{encoder_layer.7} parent=0 // pred_fallthru
    _
  // Predicated region
  $region10: #{encoder_layer.7} parent=0 // pred_check
    _
  $region11: #{encoder_layer.7} parent=0 // pred_check_branch
    %13 = sbr.rel (0) target = $region13
  $region12: #{encoder_layer.7} parent=0 // pred_region
    _
  $region13: #{encoder_layer.7} parent=0 // pred_fallthru
    _
  %p15 = scmp.eq.s32.totalorder 0, 0
  // Predicated region
  $region14: #{encoder_layer.7} parent=0 // pred_check
    %p16 = pneg %p15
  $region15: #{encoder_layer.7} parent=0 // pred_check_branch
    %18 = sbr.rel (%p16) target = $region17
  $region16: #{encoder_layer.7} parent=0 // pred_region
    %vm19 = vcmask 785408
    %20 = vst.msk [vmem:[#allocation2] sm:$0xff] %vm19, 0.0
    %21 = vst.msk [vmem:[#allocation2 + $0x8] sm:$0xff] %vm19, 0.0
  $region17: #{encoder_layer.7} parent=0 // pred_fallthru
    _
  %v22 = vld [vmem:[#allocation2] sm:$0xff]
  %v23 = vld [vmem:[#allocation2 + $0x8] sm:$0xff]
  %v24 = vld [vmem:[%s0] sm:$0xf]
  %v25 = vld [vmem:[%s0 + $0x4] sm:$0xf]
  %v26 = vld [vmem:[%s1] sm:$0xf]
  %v27 = vld [vmem:[%s1 + $0x4] sm:$0xf]
  %v28 = vld [vmem:[%s1 + $0x8] sm:$0xf]
  %v29 = vld [vmem:[%s1 + $0xc] sm:$0xf]
  %v32 = vunpack.c.l.b16 %v24
  %v33 = vunpack.c.l.b16 %v25
  %v34 = vpack.c.b16 %v33, %v32
  %v39 = vunpack.c.l.b16 %v26
  %v40 = vunpack.c.l.b16 %v27
  %v41 = vunpack.c.l.b16 %v28
  %v42 = vunpack.c.l.b16 %v29
  %v43 = vpack.c.b16 %v40, %v39
  %v44 = vpack.c.b16 %v42, %v41
  %vm47 = vcmask 261120
  %v49 = vsel %vm47, %v34, 0
  %51 = vmatprep.subr.bf16.mxu0 0
  %52 = vmatpush1.bf16.msra.mxu0 0
  %53 = vmatprep.subr.bf16.mxu0 0
  %54 = vmatpush1.bf16.msra.mxu0 0
  %55 = vmatprep.subr.bf16.mxu0 0
  %56 = vmatpush1.bf16.msra.mxu0 0
  %57 = vmatprep.subr.bf16.mxu0 0
  %58 = vmatpush1.bf16.msra.mxu0 0
  %59 = vmatprep.subr.bf16.mxu0 0
  %60 = vmatpush1.bf16.msra.mxu0 0
  %61 = vmatprep.subr.bf16.mxu0 0
  %62 = vmatpush1.bf16.msra.mxu0 0
  %63 = vmatprep.subr.bf16.mxu0 0
  %64 = vmatpush1.bf16.msra.mxu0 %v44
  %65 = vmatprep.subr.bf16.mxu0 0
  %66 = vmatpush1.bf16.msra.mxu0 %v43
  %67 = vmatprep.subr.bf16.mxu0 0
  %68 = vmatpush2.bf16.msra.mxu0 0
  %69 = vmatprep.subr.bf16.mxu0 0
  %70 = vmatpush2.bf16.msra.mxu0 0
  %71 = vmatprep.subr.bf16.mxu0 0
  %72 = vmatpush2.bf16.msra.mxu0 0
  %73 = vmatprep.subr.bf16.mxu0 0
  %74 = vmatpush2.bf16.msra.mxu0 0
  %75 = vmatprep.subr.bf16.mxu0 0
  %76 = vmatpush2.bf16.msra.mxu0 0
  %77 = vmatprep.subr.bf16.mxu0 0
  %78 = vmatpush2.bf16.msra.mxu0 0
  %79 = vmatprep.subr.bf16.mxu0 0
  %80 = vmatpush2.bf16.msra.mxu0 0
  %81 = vmatprep.subr.bf16.mxu0 0
  %82 = vmatpush2.bf16.msra.mxu0 0
  %83 = vmatprep.mubr.bf16.mxu0 0
  %84 = vmatmul.mubr.bf16.gmra.mxu0 %v49
  %v85 = vpop.f32.mrf.mxu0
  %v86 = vadd.f32 0.0, %v85
  %v87 = vpop.f32.mrf.mxu0
  %v88 = vpop.f32.mrf.mxu0
  %v89 = vadd.f32 0.0, %v88
  %v90 = vpop.f32.mrf.mxu0
  %91 = vdwg.mxu0
  %v92 = vadd.f32 %v22, %v86
  %v93 = vadd.f32 %v23, %v89
  %vm94 = vcmask 785408
  %95 = vst.msk [vmem:[#allocation2] sm:$0xff] %vm94, %v92
  %96 = vst.msk [vmem:[#allocation2 + $0x8] sm:$0xff] %vm94, %v93
  // Predicated region
  $region18: #{encoder_layer.7} parent=0 // pred_check
    %p97 = pneg %p15
  $region19: #{encoder_layer.7} parent=0 // pred_check_branch
    %99 = sbr.rel (%p97) target = $region21
  $region20: #{encoder_layer.7} parent=0 // pred_region
    %v100 = vld [vmem:[#allocation2] sm:$0xff]
    %v101 = vld [vmem:[#allocation2 + $0x8] sm:$0xff]
    %v102 = vld [vmem:[%s2] sm:$0x1]
    %v104 = vlaneseq
    %v105 = vshrl.u32 %v104, 7
    %v106 = vsub.s32 0, %v105
    %v107 = vrot.slane %v102, %v106
    %v109 = vadd.f32 %v100, %v107
    %v110 = vadd.f32 %v101, %v107
    %v111 = vpack.c.bf16 %v110, %v109
    %v113 = vunpack.c.l.b16 %v111
    %v114 = vunpack.c.h.b16 %v111
    %v115 = vpack.c.b16 %v113, %v113
    %v116 = vpack.c.b16 %v114, %v114
    %vm119 = vcmask 781312
    %120 = vst.msk [vmem:[%s3] sm:$0xf] %vm119, %v115
    %121 = vst.msk [vmem:[%s3 + $0x4] sm:$0xf] %vm119, %v116
  $region21: #{encoder_layer.7} parent=0 // pred_fallthru
    _
  // Predicated region
  $region22: #{encoder_layer.7} parent=0 // pred_check
    _
  $region23: #{encoder_layer.7} parent=0 // pred_check_branch
    %123 = sbr.rel (0) target = $region25
  $region24: #{encoder_layer.7} parent=0 // pred_region
    _
  $region25: #{encoder_layer.7} parent=0 // pred_fallthru
    _
  // Predicated region
  $region26: #{encoder_layer.7} parent=0 // pred_check
    _
  $region27: #{encoder_layer.7} parent=0 // pred_check_branch
    %125 = sbr.rel (0) target = $region29
  $region28: #{encoder_layer.7} parent=0 // pred_region
    _
  $region29: #{encoder_layer.7} parent=0 // pred_fallthru
    _

// kernel: encoder_layer.9
$region0: #{encoder_layer.9}
  #allocation0 [shape = 'u32[]', space=smem, size = 0x4, offset = 0x4, fixed_abs, tag = 'smem constant byte address 0x4 - core index']
  #allocation1 [shape = 'u32[144,128]{1,0:T(1,128)}', space=vmem, size = 0x12000, scoped, tag = 'internal scratch']
  %s0 = inlined_call_operand.vmem [shape: bf16[3,8,8,8], index: 0, kind: input, shape index: {}]
  %s1 = inlined_call_operand.vmem [shape: bf16[8,8,8], index: 1, kind: input, shape index: {}]
  %s2 = inlined_call_operand.vmem [shape: f32[4,1,8], index: 2, kind: input, shape index: {}]
  %s3 = inlined_call_operand.vmem [shape: f32[8,8,8], index: 3, kind: output, shape index: {}]
  %s4 = sld [smem:[#allocation0]]
  $region45: #{encoder_layer.9} parent=0
    _
  %s6 = ssub.s32 1, %s4
  %s7 = scalar_select 0, %s6, %s4
  loop: start=0, step=1, limit=4
  $region2: #{encoder_layer.9} parent=0 // loop_pre_header
    _
  $region3: #{encoder_layer.9} parent=0 // loop_header
    %s9 = sphi 0, %s13
    %p10 = scmp.ge.s32.totalorder %s9, 4
    %s19 = sphi 0, %s21
    %s22 = sphi 0, %s19
    %s23 = sphi 0, %s22
    %s39 = sphi 0, %s23
    %s45 = sphi 0, %s47
    %s48 = sphi 0, %s45
    %s49 = sphi 0, %s48
    %s65 = sphi 0, %s49
    %s69 = sphi 0, %s69
    %s71 = sphi 0, %s69
    %s72 = sphi 0, %s71
    %s86 = sphi 0, %s72
    %s92 = sphi 0, %s94
    %s95 = sphi 0, %s92
    %s96 = sphi 0, %s95
    %s112 = sphi 0, %s96
  $region4: #{encoder_layer.9} parent=0 // loop_header_branch
    %12 = sbr.rel (%p10) target = $region8
  $region5: #{encoder_layer.9} parent=0 // loop_body
    %s14 = ssub.s32 %s9, 1
    %s15 = ssub.s32 %s9, 2
    %s16 = sadd.s32 %s9, 1
    %s17 = ssub.s32 %s9, %s16
    %p18 = scmp.eq.s32.totalorder %s17, 0
    %s20 = sadd.s32 %s19, 1
    %s21 = scalar_select %p18, %s19, %s20
    %p24 = pneg %p18
    %p25 = scmp.eq.s32.totalorder %s9, 1
    %p26 = por %p24, %p25
    %p27 = scmp.ne.s32.totalorder %s19, %s22
    %p28 = scmp.eq.s32.totalorder %s9, 0
    %p29 = por %p27, %p28
    %p30 = scmp.ne.s32.totalorder %s19, %s22
    %p31 = scmp.eq.s32.totalorder %s14, 1
    %p32 = por %p30, %p31
    %p33 = scmp.ne.s32.totalorder %s22, %s23
    %p34 = scmp.eq.s32.totalorder %s14, 0
    %p35 = por %p33, %p34
    %p36 = scmp.ne.s32.totalorder %s22, %s23
    %p37 = scmp.eq.s32.totalorder %s15, 1
    %p38 = por %p36, %p37
    %p40 = scmp.ne.s32.totalorder %s23, %s39
    %p41 = scmp.eq.s32.totalorder %s15, 0
    %p42 = por %p40, %p41
    %s43 = ssub.s32 %s9, %s16
    %p44 = scmp.eq.s32.totalorder %s43, 0
    %s46 = sadd.s32 %s45, 1
    %s47 = scalar_select %p44, %s45, %s46
    %p50 = pneg %p44
    %p51 = scmp.eq.s32.totalorder %s9, 1
    %p52 = por %p50, %p51
    %p53 = scmp.ne.s32.totalorder %s45, %s48
    %p54 = scmp.eq.s32.totalorder %s9, 0
    %p55 = por %p53, %p54
    %p56 = scmp.ne.s32.totalorder %s45, %s48
    %p57 = scmp.eq.s32.totalorder %s14, 1
    %p58 = por %p56, %p57
    %p59 = scmp.ne.s32.totalorder %s48, %s49
    %p60 = scmp.eq.s32.totalorder %s14, 0
    %p61 = por %p59, %p60
    %p62 = scmp.ne.s32.totalorder %s48, %s49
    %p63 = scmp.eq.s32.totalorder %s15, 1
    %p64 = por %p62, %p63
    %p66 = scmp.ne.s32.totalorder %s49, %s65
    %p67 = scmp.eq.s32.totalorder %s15, 0
    %p68 = por %p66, %p67
    %s70 = sadd.s32 %s69, 1
    %p73 = scmp.eq.s32.totalorder %s9, 1
    %p74 = scmp.ne.s32.totalorder %s69, %s71
    %p75 = scmp.eq.s32.totalorder %s9, 0
    %p76 = por %p74, %p75
    %p77 = scmp.ne.s32.totalorder %s69, %s71
    %p78 = scmp.eq.s32.totalorder %s14, 1
    %p79 = por %p77, %p78
    %p80 = scmp.ne.s32.totalorder %s71, %s72
    %p81 = scmp.eq.s32.totalorder %s14, 0
    %p82 = por %p80, %p81
    %p83 = scmp.ne.s32.totalorder %s71, %s72
    %p84 = scmp.eq.s32.totalorder %s15, 1
    %p85 = por %p83, %p84
    %p87 = scmp.ne.s32.totalorder %s72, %s86
    %p88 = scmp.eq.s32.totalorder %s15, 0
    %p89 = por %p87, %p88
    %s90 = ssub.s32 %s9, %s16
    %p91 = scmp.eq.s32.totalorder %s90, 0
    %s93 = sadd.s32 %s92, 1
    %s94 = scalar_select %p91, %s92, %s93
    %p97 = pneg %p91
    %p98 = scmp.eq.s32.totalorder %s9, 1
    %p99 = por %p97, %p98
    %p100 = scmp.ne.s32.totalorder %s92, %s95
    %p101 = scmp.eq.s32.totalorder %s9, 0
    %p102 = por %p100, %p101
    %p103 = scmp.ne.s32.totalorder %s92, %s95
    %p104 = scmp.eq.s32.totalorder %s14, 1
    %p105 = por %p103, %p104
    %p106 = scmp.ne.s32.totalorder %s95, %s96
    %p107 = scmp.eq.s32.totalorder %s14, 0
    %p108 = por %p106, %p107
    %p109 = scmp.ne.s32.totalorder %s95, %s96
    %p110 = scmp.eq.s32.totalorder %s15, 1
    %p111 = por %p109, %p110
    %p113 = scmp.ne.s32.totalorder %s96, %s112
    %p114 = scmp.eq.s32.totalorder %s15, 0
    %p115 = por %p113, %p114
    %p116 = scmp.le.s32.totalorder 1, %s9
    %p117 = scmp.lt.s32.totalorder %s9, 3
    %p118 = pnand %p116, %p117
    %p119 = pneg %p118
    // Predicated region
    $region9: #{encoder_layer.9} parent=5 // pred_check
      _
    $region10: #{encoder_layer.9} parent=5 // pred_check_branch
      %121 = sbr.rel (%p118) target = $region12
    $region11: #{encoder_layer.9} parent=5 // pred_region
      %s122 = ssub.s32 %s9, 1
      // Predicated region
      $region13: #{encoder_layer.9} parent=11 // pred_check
        %p123 = pneg %p82
      $region14: #{encoder_layer.9} parent=11 // pred_check_branch
        %125 = sbr.rel (%p123) target = $region16
      $region15: #{encoder_layer.9} parent=11 // pred_region
        _
      $region16: #{encoder_layer.9} parent=11 // pred_fallthru
        _
    $region12: #{encoder_layer.9} parent=5 // pred_fallthru
      _
    %p126 = scmp.lt.s32.totalorder %s9, 2
    // Predicated region
    $region17: #{encoder_layer.9} parent=5 // pred_check
      %p127 = pneg %p126
    $region18: #{encoder_layer.9} parent=5 // pred_check_branch
      %129 = sbr.rel (%p127) target = $region20
    $region19: #{encoder_layer.9} parent=5 // pred_region
      // Predicated region
      $region21: #{encoder_layer.9} parent=19 // pred_check
        %p130 = pneg %p29
      $region22: #{encoder_layer.9} parent=19 // pred_check_branch
        %132 = sbr.rel (%p130) target = $region24
      $region23: #{encoder_layer.9} parent=19 // pred_region
        %s133 = smul.u32 4, %s9
        %p134 = scmp.lt.s32.totalorder %s133, 7
        %s135 = scalar_select %p134, %s133, 7
        %s136 = smul.addr %s135, 4
        %s137 = scalar_lea.vmem %s0, %s136
        %s138 = smul.u32 4, %s9
      $region24: #{encoder_layer.9} parent=19 // pred_fallthru
        _
      // Predicated region
      $region25: #{encoder_layer.9} parent=19 // pred_check
        %p139 = pneg %p55
      $region26: #{encoder_layer.9} parent=19 // pred_check_branch
        %141 = sbr.rel (%p139) target = $region28
      $region27: #{encoder_layer.9} parent=19 // pred_region
        %s142 = smul.u32 4, %s9
        %p143 = scmp.lt.s32.totalorder %s142, 7
        %s144 = scalar_select %p143, %s142, 7
        %s145 = smul.addr %s144, 4
        %s146 = scalar_lea.vmem %s1, %s145
        %s147 = smul.u32 4, %s9
      $region28: #{encoder_layer.9} parent=19 // pred_fallthru
        _
    $region20: #{encoder_layer.9} parent=5 // pred_fallthru
      _
    %p148 = scmp.le.s32.totalorder 1, %s9
    %p149 = scmp.lt.s32.totalorder %s9, 3
    %p150 = pnand %p148, %p149
    %p151 = pneg %p150
    // Predicated region
    $region29: #{encoder_layer.9} parent=5 // pred_check
      _
    $region30: #{encoder_layer.9} parent=5 // pred_check_branch
      %153 = sbr.rel (%p150) target = $region32
    $region31: #{encoder_layer.9} parent=5 // pred_region
      %s154 = ssub.s32 %s9, 1
      %s155 = smul.u32 4, %s14
      %p156 = scmp.lt.s32.totalorder %s155, 7
      %s157 = scalar_select %p156, %s155, 7
      %s158 = smul.addr %s157, 4
      %s159 = scalar_lea.vmem %s0, %s158
      %p160 = pneg %p35
      %p161 = pneg %p32
      %s162 = smul.u32 4, %s14
      %p163 = scmp.lt.s32.totalorder %s162, 7
      %s164 = scalar_select %p163, %s162, 7
      %s165 = smul.addr %s164, 4
      %s166 = scalar_lea.vmem %s1, %s165
      %p167 = pneg %p61
      %p168 = pneg %p58
      %p169 = pneg %p82
      %p170 = pneg %p79
      %p171 = pneg %p108
      %p172 = pneg %p105
      %s173 = smul.u32 4, %s14
      %p174 = scmp.lt.s32.totalorder %s173, 7
      %s175 = scalar_select %p174, %s173, 7
      %s176 = smul.addr %s175, 8
      %s177 = scalar_lea.vmem %s3, %s176
      %s178 = smul.u32 4, %s14
      %p179 = scmp.lt.s32.totalorder %s178, 7
      %s180 = scalar_select %p179, %s178, 7
      %s181 = smul.addr %s180, 4
      %s182 = scalar_lea.vmem %s0, %s181
      %s183 = smul.u32 4, %s14
      %s184 = smul.u32 4, %s14
      %p185 = scmp.lt.s32.totalorder %s184, 7
      %s186 = scalar_select %p185, %s184, 7
      %s187 = smul.addr %s186, 4
      %s188 = scalar_lea.vmem %s1, %s187
      %s189 = smul.u32 4, %s14
      %s190 = smul.u32 4, %s14
      %p191 = scmp.lt.s32.totalorder %s190, 7
      %s192 = scalar_select %p191, %s190, 7
      %s193 = smul.addr %s192, 8
      %s194 = scalar_lea.vmem %s3, %s193
      %s195 = smul.u32 4, %s14
      %v197 = vld [vmem:[%s182] sm:$0xf]
      %v198 = vld [vmem:[%s182 + $0x4] sm:$0xf]
      %v199 = vld [vmem:[%s182 + $0x8] sm:$0xf]
      %v200 = vld [vmem:[%s182 + $0xc] sm:$0xf]
      %v201 = vunpack.c.l.bf16 %v197
      %v202 = vunpack.c.l.bf16 %v198
      %v203 = vunpack.c.l.bf16 %v199
      %v204 = vunpack.c.l.bf16 %v200
      %v205 = vld [vmem:[%s2] sm:$0x1]
      %v206 = vld [vmem:[%s2 + $0x1] sm:$0x1]
      %v207 = vld [vmem:[%s2 + $0x2] sm:$0x1]
      %v208 = vld [vmem:[%s2 + $0x3] sm:$0x1]
      %v213 = vlaneseq
      %v214 = vshrl.u32 %v213, 7
      %v215 = vsub.s32 0, %v214
      %v216 = vrot.slane %v205, %v215
      %v217 = vlaneseq
      %v218 = vshrl.u32 %v217, 7
      %v219 = vsub.s32 0, %v218
      %v220 = vrot.slane %v206, %v219
      %v221 = vlaneseq
      %v222 = vshrl.u32 %v221, 7
      %v223 = vsub.s32 0, %v222
      %v224 = vrot.slane %v207, %v223
      %v225 = vlaneseq
      %v226 = vshrl.u32 %v225, 7
      %v227 = vsub.s32 0, %v226
      %v228 = vrot.slane %v208, %v227
      %v233 = vadd.f32 %v201, %v216
      %v234 = vadd.f32 %v202, %v220
      %v235 = vadd.f32 %v203, %v224
      %v236 = vadd.f32 %v204, %v228
      %v237 = vpack.c.bf16 %v233, %v233
      %v238 = vpack.c.bf16 %v234, %v234
      %v239 = vpack.c.bf16 %v235, %v235
      %v240 = vpack.c.bf16 %v236, %v236
      %v241 = vld [vmem:[%s188] sm:$0xf]
      %v242 = vld [vmem:[%s188 + $0x4] sm:$0xf]
      %v243 = vld [vmem:[%s188 + $0x8] sm:$0xf]
      %v244 = vld [vmem:[%s188 + $0xc] sm:$0xf]
      %vm245 = vcmask 64512
      %v247 = vsel %vm245, %v237, 0
      %v250 = vsel %vm245, %v241, 0
      %252 = vmatprep.subr.bf16.mxu0 0
      %253 = vmatpush1.bf16.xpose.msra.mxu0 0
      %254 = vmatprep.subr.bf16.mxu0 0
      %255 = vmatpush1.bf16.xpose.msra.mxu0 0
      %256 = vmatprep.subr.bf16.mxu0 0
      %257 = vmatpush1.bf16.xpose.msra.mxu0 0
      %258 = vmatprep.subr.bf16.mxu0 0
      %259 = vmatpush1.bf16.xpose.msra.mxu0 0
      %260 = vmatprep.subr.bf16.mxu0 0
      %261 = vmatpush1.bf16.xpose.msra.mxu0 0
      %262 = vmatprep.subr.bf16.mxu0 0
      %263 = vmatpush1.bf16.xpose.msra.mxu0 0
      %264 = vmatprep.subr.bf16.mxu0 0
      %265 = vmatpush1.bf16.xpose.msra.mxu0 0
      %266 = vmatprep.subr.bf16.mxu0 0
      %267 = vmatpush1.bf16.xpose.msra.mxu0 %v250
      %268 = vmatprep.subr.bf16.mxu0 0
      %269 = vmatpush2.bf16.xpose.msra.mxu0 0
      %270 = vmatprep.subr.bf16.mxu0 0
      %271 = vmatpush2.bf16.xpose.msra.mxu0 0
      %272 = vmatprep.subr.bf16.mxu0 0
      %273 = vmatpush2.bf16.xpose.msra.mxu0 0
      %274 = vmatprep.subr.bf16.mxu0 0
      %275 = vmatpush2.bf16.xpose.msra.mxu0 0
      %276 = vmatprep.subr.bf16.mxu0 0
      %277 = vmatpush2.bf16.xpose.msra.mxu0 0
      %278 = vmatprep.subr.bf16.mxu0 0
      %279 = vmatpush2.bf16.xpose.msra.mxu0 0
      %280 = vmatprep.subr.bf16.mxu0 0
      %281 = vmatpush2.bf16.xpose.msra.mxu0 0
      %282 = vmatprep.subr.bf16.mxu0 0
      %283 = vmatpush2.bf16.xpose.msra.mxu0 0
      %284 = vmatprep.mubr.bf16.mxu0 0
      %285 = vmatmul.mubr.bf16.gmra.mxu0 %v247
      %v286 = vpop.f32.mrf.mxu0
      %v287 = vadd.f32 0.0, %v286
      %v288 = vpop.f32.mrf.mxu0
      %v289 = vpop.f32.mrf.mxu0
      %v290 = vpop.f32.mrf.mxu0
      %291 = vdwg.mxu0
      %v293 = vsel %vm245, %v238, 0
      %v296 = vsel %vm245, %v242, 0
      %298 = vmatprep.subr.bf16.mxu0 0
      %299 = vmatpush1.bf16.xpose.msra.mxu0 0
      %300 = vmatprep.subr.bf16.mxu0 0
      %301 = vmatpush1.bf16.xpose.msra.mxu0 0
      %302 = vmatprep.subr.bf16.mxu0 0
      %303 = vmatpush1.bf16.xpose.msra.mxu0 0
      %304 = vmatprep.subr.bf16.mxu0 0
      %305 = vmatpush1.bf16.xpose.msra.mxu0 0
      %306 = vmatprep.subr.bf16.mxu0 0
      %307 = vmatpush1.bf16.xpose.msra.mxu0 0
      %308 = vmatprep.subr.bf16.mxu0 0
      %309 = vmatpush1.bf16.xpose.msra.mxu0 0
      %310 = vmatprep.subr.bf16.mxu0 0
      %311 = vmatpush1.bf16.xpose.msra.mxu0 0
      %312 = vmatprep.subr.bf16.mxu0 0
      %313 = vmatpush1.bf16.xpose.msra.mxu0 %v296
      %314 = vmatprep.subr.bf16.mxu0 0
      %315 = vmatpush2.bf16.xpose.msra.mxu0 0
      %316 = vmatprep.subr.bf16.mxu0 0
      %317 = vmatpush2.bf16.xpose.msra.mxu0 0
      %318 = vmatprep.subr.bf16.mxu0 0
      %319 = vmatpush2.bf16.xpose.msra.mxu0 0
      %320 = vmatprep.subr.bf16.mxu0 0
      %321 = vmatpush2.bf16.xpose.msra.mxu0 0
      %322 = vmatprep.subr.bf16.mxu0 0
      %323 = vmatpush2.bf16.xpose.msra.mxu0 0
      %324 = vmatprep.subr.bf16.mxu0 0
      %325 = vmatpush2.bf16.xpose.msra.mxu0 0
      %326 = vmatprep.subr.bf16.mxu0 0
      %327 = vmatpush2.bf16.xpose.msra.mxu0 0
      %328 = vmatprep.subr.bf16.mxu0 0
      %329 = vmatpush2.bf16.xpose.msra.mxu0 0
      %330 = vmatprep.mubr.bf16.mxu0 0
      %331 = vmatmul.mubr.bf16.gmra.mxu0 %v293
      %v332 = vpop.f32.mrf.mxu0
      %v333 = vadd.f32 0.0, %v332
      %v334 = vpop.f32.mrf.mxu0
      %v335 = vpop.f32.mrf.mxu0
      %v336 = vpop.f32.mrf.mxu0
      %337 = vdwg.mxu0
      %v339 = vsel %vm245, %v239, 0
      %v342 = vsel %vm245, %v243, 0
      %344 = vmatprep.subr.bf16.mxu0 0
      %345 = vmatpush1.bf16.xpose.msra.mxu0 0
      %346 = vmatprep.subr.bf16.mxu0 0
      %347 = vmatpush1.bf16.xpose.msra.mxu0 0
      %348 = vmatprep.subr.bf16.mxu0 0
      %349 = vmatpush1.bf16.xpose.msra.mxu0 0
      %350 = vmatprep.subr.bf16.mxu0 0
      %351 = vmatpush1.bf16.xpose.msra.mxu0 0
      %352 = vmatprep.subr.bf16.mxu0 0
      %353 = vmatpush1.bf16.xpose.msra.mxu0 0
      %354 = vmatprep.subr.bf16.mxu0 0
      %355 = vmatpush1.bf16.xpose.msra.mxu0 0
      %356 = vmatprep.subr.bf16.mxu0 0
      %357 = vmatpush1.bf16.xpose.msra.mxu0 0
      %358 = vmatprep.subr.bf16.mxu0 0
      %359 = vmatpush1.bf16.xpose.msra.mxu0 %v342
      %360 = vmatprep.subr.bf16.mxu0 0
      %361 = vmatpush2.bf16.xpose.msra.mxu0 0
      %362 = vmatprep.subr.bf16.mxu0 0
      %363 = vmatpush2.bf16.xpose.msra.mxu0 0
      %364 = vmatprep.subr.bf16.mxu0 0
      %365 = vmatpush2.bf16.xpose.msra.mxu0 0
      %366 = vmatprep.subr.bf16.mxu0 0
      %367 = vmatpush2.bf16.xpose.msra.mxu0 0
      %368 = vmatprep.subr.bf16.mxu0 0
      %369 = vmatpush2.bf16.xpose.msra.mxu0 0
      %370 = vmatprep.subr.bf16.mxu0 0
      %371 = vmatpush2.bf16.xpose.msra.mxu0 0
      %372 = vmatprep.subr.bf16.mxu0 0
      %373 = vmatpush2.bf16.xpose.msra.mxu0 0
      %374 = vmatprep.subr.bf16.mxu0 0
      %375 = vmatpush2.bf16.xpose.msra.mxu0 0
      %376 = vmatprep.mubr.bf16.mxu0 0
      %377 = vmatmul.mubr.bf16.gmra.mxu0 %v339
      %v378 = vpop.f32.mrf.mxu0
      %v379 = vadd.f32 0.0, %v378
      %v380 = vpop.f32.mrf.mxu0
      %v381 = vpop.f32.mrf.mxu0
      %v382 = vpop.f32.mrf.mxu0
      %383 = vdwg.mxu0
      %v385 = vsel %vm245, %v240, 0
      %v388 = vsel %vm245, %v244, 0
      %390 = vmatprep.subr.bf16.mxu0 0
      %391 = vmatpush1.bf16.xpose.msra.mxu0 0
      %392 = vmatprep.subr.bf16.mxu0 0
      %393 = vmatpush1.bf16.xpose.msra.mxu0 0
      %394 = vmatprep.subr.bf16.mxu0 0
      %395 = vmatpush1.bf16.xpose.msra.mxu0 0
      %396 = vmatprep.subr.bf16.mxu0 0
      %397 = vmatpush1.bf16.xpose.msra.mxu0 0
      %398 = vmatprep.subr.bf16.mxu0 0
      %399 = vmatpush1.bf16.xpose.msra.mxu0 0
      %400 = vmatprep.subr.bf16.mxu0 0
      %401 = vmatpush1.bf16.xpose.msra.mxu0 0
      %402 = vmatprep.subr.bf16.mxu0 0
      %403 = vmatpush1.bf16.xpose.msra.mxu0 0
      %404 = vmatprep.subr.bf16.mxu0 0
      %405 = vmatpush1.bf16.xpose.msra.mxu0 %v388
      %406 = vmatprep.subr.bf16.mxu0 0
      %407 = vmatpush2.bf16.xpose.msra.mxu0 0
      %408 = vmatprep.subr.bf16.mxu0 0
      %409 = vmatpush2.bf16.xpose.msra.mxu0 0
      %410 = vmatprep.subr.bf16.mxu0 0
      %411 = vmatpush2.bf16.xpose.msra.mxu0 0
      %412 = vmatprep.subr.bf16.mxu0 0
      %413 = vmatpush2.bf16.xpose.msra.mxu0 0
      %414 = vmatprep.subr.bf16.mxu0 0
      %415 = vmatpush2.bf16.xpose.msra.mxu0 0
      %416 = vmatprep.subr.bf16.mxu0 0
      %417 = vmatpush2.bf16.xpose.msra.mxu0 0
      %418 = vmatprep.subr.bf16.mxu0 0
      %419 = vmatpush2.bf16.xpose.msra.mxu0 0
      %420 = vmatprep.subr.bf16.mxu0 0
      %421 = vmatpush2.bf16.xpose.msra.mxu0 0
      %422 = vmatprep.mubr.bf16.mxu0 0
      %423 = vmatmul.mubr.bf16.gmra.mxu0 %v385
      %v424 = vpop.f32.mrf.mxu0
      %v425 = vadd.f32 0.0, %v424
      %v426 = vpop.f32.mrf.mxu0
      %v427 = vpop.f32.mrf.mxu0
      %v428 = vpop.f32.mrf.mxu0
      %429 = vdwg.mxu0
      %430 = vst.msk [vmem:[%s194] sm:$0xff] %vm245, %v287
      %431 = vst.msk [vmem:[%s194 + $0x8] sm:$0xff] %vm245, %v333
      %432 = vst.msk [vmem:[%s194 + $0x10] sm:$0xff] %vm245, %v379
      %433 = vst.msk [vmem:[%s194 + $0x18] sm:$0xff] %vm245, %v425
      %s434 = smul.u32 4, %s14
      %p435 = scmp.lt.s32.totalorder %s434, 7
      %s436 = scalar_select %p435, %s434, 7
      %s437 = smul.addr %s436, 8
      %s438 = scalar_lea.vmem %s3, %s437
      // Predicated region
      $region33: #{encoder_layer.9} parent=31 // pred_check
        %p439 = pneg %p105
      $region34: #{encoder_layer.9} parent=31 // pred_check_branch
        %441 = sbr.rel (%p439) target = $region36
      $region35: #{encoder_layer.9} parent=31 // pred_region
        %s442 = smul.u32 4, %s14
      $region36: #{encoder_layer.9} parent=31 // pred_fallthru
        _
    $region32: #{encoder_layer.9} parent=5 // pred_fallthru
      _
    %p443 = scmp.le.s32.totalorder 2, %s9
    // Predicated region
    $region37: #{encoder_layer.9} parent=5 // pred_check
      %p444 = pneg %p443
    $region38: #{encoder_layer.9} parent=5 // pred_check_branch
      %446 = sbr.rel (%p444) target = $region40
    $region39: #{encoder_layer.9} parent=5 // pred_region
      %s447 = ssub.s32 %s9, 2
      // Predicated region
      $region41: #{encoder_layer.9} parent=39 // pred_check
        %p448 = pneg %p111
      $region42: #{encoder_layer.9} parent=39 // pred_check_branch
        %450 = sbr.rel (%p448) target = $region44
      $region43: #{encoder_layer.9} parent=39 // pred_region
        %s451 = smul.u32 4, %s15
        %p452 = scmp.lt.s32.totalorder %s451, 7
        %s453 = scalar_select %p452, %s451, 7
        %s454 = smul.addr %s453, 8
        %s455 = scalar_lea.vmem %s3, %s454
      $region44: #{encoder_layer.9} parent=39 // pred_fallthru
        _
    $region40: #{encoder_layer.9} parent=5 // pred_fallthru
      _
  $region6: #{encoder_layer.9} parent=0 // loop_footer
    %s13 = sadd.s32 1, %s9
  $region7: #{encoder_layer.9} parent=0 // loop_footer_branch
    %8 = sbr.rel target = $region3
  $region8: #{encoder_layer.9} parent=0 // loop_exit
    _

// kernel: encoder_layer.11
$region0: #{encoder_layer.11}
  #allocation0 [shape = 'u32[]', space=smem, size = 0x4, offset = 0x4, fixed_abs, tag = 'smem constant byte address 0x4 - core index']
  #allocation1 [shape = 'u32[144,128]{1,0:T(1,128)}', space=vmem, size = 0x12000, scoped, tag = 'internal scratch']
  #allocation2 [shape = 'f32[16,32]{1,0:T(8,128)}', space=vmem, size = 0x2000, scoped, tag = 'scratch operand']
  %s0 = inlined_call_operand.vmem [shape: bf16[16,32], index: 0, kind: input, shape index: {}]
  %s1 = inlined_call_operand.vmem [shape: bf16[32,32], index: 1, kind: input, shape index: {}]
  %s2 = inlined_call_operand.vmem [shape: f32[1,32], index: 2, kind: input, shape index: {}]
  %s3 = inlined_call_operand.vmem [shape: f32[16,32], index: 3, kind: input, shape index: {}]
  %s4 = inlined_call_operand.vmem [shape: f32[1,32], index: 4, kind: input, shape index: {}]
  %s5 = inlined_call_operand.vmem [shape: f32[1,32], index: 5, kind: input, shape index: {}]
  %s6 = inlined_call_operand.vmem [shape: f32[16,32], index: 6, kind: output, shape index: {}]
  %s7 = sld [smem:[#allocation0]]
  $region42: #{encoder_layer.11} parent=0
    _
  %s9 = ssub.s32 1, %s7
  %s10 = scalar_select 0, %s9, %s7
  // Predicated region
  $region2: #{encoder_layer.11} parent=0 // pred_check
    _
  $region3: #{encoder_layer.11} parent=0 // pred_check_branch
    %12 = sbr.rel (0) target = $region5
  $region4: #{encoder_layer.11} parent=0 // pred_region
    _
  $region5: #{encoder_layer.11} parent=0 // pred_fallthru
    _
  // Predicated region
  $region6: #{encoder_layer.11} parent=0 // pred_check
    _
  $region7: #{encoder_layer.11} parent=0 // pred_check_branch
    %14 = sbr.rel (0) target = $region9
  $region8: #{encoder_layer.11} parent=0 // pred_region
    _
  $region9: #{encoder_layer.11} parent=0 // pred_fallthru
    _
  // Predicated region
  $region10: #{encoder_layer.11} parent=0 // pred_check
    _
  $region11: #{encoder_layer.11} parent=0 // pred_check_branch
    %16 = sbr.rel (0) target = $region13
  $region12: #{encoder_layer.11} parent=0 // pred_region
    _
  $region13: #{encoder_layer.11} parent=0 // pred_fallthru
    _
  // Predicated region
  $region14: #{encoder_layer.11} parent=0 // pred_check
    _
  $region15: #{encoder_layer.11} parent=0 // pred_check_branch
    %18 = sbr.rel (0) target = $region17
  $region16: #{encoder_layer.11} parent=0 // pred_region
    _
  $region17: #{encoder_layer.11} parent=0 // pred_fallthru
    _
  // Predicated region
  $region18: #{encoder_layer.11} parent=0 // pred_check
    _
  $region19: #{encoder_layer.11} parent=0 // pred_check_branch
    %20 = sbr.rel (0) target = $region21
  $region20: #{encoder_layer.11} parent=0 // pred_region
    _
  $region21: #{encoder_layer.11} parent=0 // pred_fallthru
    _
  // Predicated region
  $region22: #{encoder_layer.11} parent=0 // pred_check
    _
  $region23: #{encoder_layer.11} parent=0 // pred_check_branch
    %22 = sbr.rel (0) target = $region25
  $region24: #{encoder_layer.11} parent=0 // pred_region
    _
  $region25: #{encoder_layer.11} parent=0 // pred_fallthru
    _
  %p24 = scmp.eq.s32.totalorder 0, 0
  // Predicated region
  $region26: #{encoder_layer.11} parent=0 // pred_check
    %p25 = pneg %p24
  $region27: #{encoder_layer.11} parent=0 // pred_check_branch
    %27 = sbr.rel (%p25) target = $region29
  $region28: #{encoder_layer.11} parent=0 // pred_region
    %vm28 = vcmask 261120
    %29 = vst.msk [vmem:[#allocation2] sm:$0xff] %vm28, 0.0
    %30 = vst.msk [vmem:[#allocation2 + $0x8] sm:$0xff] %vm28, 0.0
  $region29: #{encoder_layer.11} parent=0 // pred_fallthru
    _
  %v31 = vld [vmem:[#allocation2] sm:$0xff]
  %v32 = vld [vmem:[#allocation2 + $0x8] sm:$0xff]
  %v33 = vld [vmem:[%s0] sm:$0xf]
  %v34 = vld [vmem:[%s0 + $0x4] sm:$0xf]
  %v35 = vld [vmem:[%s1] sm:$0xf]
  %v36 = vld [vmem:[%s1 + $0x4] sm:$0xf]
  %v37 = vld [vmem:[%s1 + $0x8] sm:$0xf]
  %v38 = vld [vmem:[%s1 + $0xc] sm:$0xf]
  %v41 = vunpack.c.l.b16 %v33
  %v42 = vunpack.c.l.b16 %v34
  %v43 = vpack.c.b16 %v42, %v41
  %v48 = vunpack.c.l.b16 %v35
  %v49 = vunpack.c.l.b16 %v36
  %v50 = vunpack.c.l.b16 %v37
  %v51 = vunpack.c.l.b16 %v38
  %v52 = vpack.c.b16 %v49, %v48
  %v53 = vpack.c.b16 %v51, %v50
  %vm56 = vcmask 261120
  %v58 = vsel %vm56, %v43, 0
  %60 = vmatprep.subr.bf16.mxu0 0
  %61 = vmatpush1.bf16.msra.mxu0 0
  %62 = vmatprep.subr.bf16.mxu0 0
  %63 = vmatpush1.bf16.msra.mxu0 0
  %64 = vmatprep.subr.bf16.mxu0 0
  %65 = vmatpush1.bf16.msra.mxu0 0
  %66 = vmatprep.subr.bf16.mxu0 0
  %67 = vmatpush1.bf16.msra.mxu0 0
  %68 = vmatprep.subr.bf16.mxu0 0
  %69 = vmatpush1.bf16.msra.mxu0 0
  %70 = vmatprep.subr.bf16.mxu0 0
  %71 = vmatpush1.bf16.msra.mxu0 0
  %72 = vmatprep.subr.bf16.mxu0 0
  %73 = vmatpush1.bf16.msra.mxu0 %v53
  %74 = vmatprep.subr.bf16.mxu0 0
  %75 = vmatpush1.bf16.msra.mxu0 %v52
  %76 = vmatprep.subr.bf16.mxu0 0
  %77 = vmatpush2.bf16.msra.mxu0 0
  %78 = vmatprep.subr.bf16.mxu0 0
  %79 = vmatpush2.bf16.msra.mxu0 0
  %80 = vmatprep.subr.bf16.mxu0 0
  %81 = vmatpush2.bf16.msra.mxu0 0
  %82 = vmatprep.subr.bf16.mxu0 0
  %83 = vmatpush2.bf16.msra.mxu0 0
  %84 = vmatprep.subr.bf16.mxu0 0
  %85 = vmatpush2.bf16.msra.mxu0 0
  %86 = vmatprep.subr.bf16.mxu0 0
  %87 = vmatpush2.bf16.msra.mxu0 0
  %88 = vmatprep.subr.bf16.mxu0 0
  %89 = vmatpush2.bf16.msra.mxu0 0
  %90 = vmatprep.subr.bf16.mxu0 0
  %91 = vmatpush2.bf16.msra.mxu0 0
  %92 = vmatprep.mubr.bf16.mxu0 0
  %93 = vmatmul.mubr.bf16.gmra.mxu0 %v58
  %v94 = vpop.f32.mrf.mxu0
  %v95 = vadd.f32 0.0, %v94
  %v96 = vpop.f32.mrf.mxu0
  %v97 = vpop.f32.mrf.mxu0
  %v98 = vadd.f32 0.0, %v97
  %v99 = vpop.f32.mrf.mxu0
  %100 = vdwg.mxu0
  %v101 = vadd.f32 %v31, %v95
  %v102 = vadd.f32 %v32, %v98
  %103 = vst.msk [vmem:[#allocation2] sm:$0xff] %vm56, %v101
  %104 = vst.msk [vmem:[#allocation2 + $0x8] sm:$0xff] %vm56, %v102
  // Predicated region
  $region30: #{encoder_layer.11} parent=0 // pred_check
    %p105 = pneg %p24
  $region31: #{encoder_layer.11} parent=0 // pred_check_branch
    %107 = sbr.rel (%p105) target = $region33
  $region32: #{encoder_layer.11} parent=0 // pred_region
    %v108 = vld [vmem:[#allocation2] sm:$0xff]
    %v109 = vld [vmem:[#allocation2 + $0x8] sm:$0xff]
    %v110 = vld [vmem:[%s2] sm:$0x1]
    %v112 = vlaneseq
    %v113 = vshrl.u32 %v112, 7
    %v114 = vsub.s32 0, %v113
    %v115 = vrot.slane %v110, %v114
    %v117 = vadd.f32 %v108, %v115
    %v118 = vadd.f32 %v109, %v115
    %v119 = vld [vmem:[%s3] sm:$0xff]
    %v120 = vld [vmem:[%s3 + $0x8] sm:$0xff]
    %v121 = vadd.f32 %v117, %v119
    %v122 = vadd.f32 %v118, %v120
    %v123 = vsel %vm56, %v121, 0.0
    %124 = vadd.xlane.f32.xlu0 %v123
    %v125 = vpop.xlane.xlu0 %124
    %v126 = vsel %vm56, %v122, 0.0
    %127 = vadd.xlane.f32.xlu0 %v126
    %v128 = vpop.xlane.xlu0 %127
    %v129 = vrcp.pop 32.0
    %v130 = vmul.f32 %v125, %v129
    %v131 = vmul.f32 %v128, %v129
    %v132 = vsub.f32 %v121, %v130
    %v133 = vsub.f32 %v122, %v131
    %v134 = vmul.f32 %v132, %v132
    %v135 = vmul.f32 %v133, %v133
    %v136 = vsel %vm56, %v134, 0.0
    %137 = vadd.xlane.f32.xlu0 %v136
    %v138 = vpop.xlane.xlu0 %137
    %v139 = vsel %vm56, %v135, 0.0
    %140 = vadd.xlane.f32.xlu0 %v139
    %v141 = vpop.xlane.xlu0 %140
    %v142 = vmul.f32 %v138, %v129
    %v143 = vmul.f32 %v141, %v129
    %v144 = vadd.f32 %v142, 1e-05
    %v145 = vadd.f32 %v143, 1e-05
    %v146 = vrsqrt.pop %v144
    %v147 = vrsqrt.pop %v145
    %v148 = vmul.f32 %v132, %v146
    %v149 = vmul.f32 %v133, %v147
    %v150 = vld [vmem:[%s4] sm:$0x1]
    %v152 = vlaneseq
    %v153 = vshrl.u32 %v152, 7
    %v154 = vsub.s32 0, %v153
    %v155 = vrot.slane %v150, %v154
    %v157 = vmul.f32 %v148, %v155
    %v158 = vmul.f32 %v149, %v155
    %v159 = vld [vmem:[%s5] sm:$0x1]
    %v161 = vlaneseq
    %v162 = vshrl.u32 %v161, 7
    %v163 = vsub.s32 0, %v162
    %v164 = vrot.slane %v159, %v163
    %v166 = vadd.f32 %v157, %v164
    %v167 = vadd.f32 %v158, %v164
    %168 = vst.msk [vmem:[%s6] sm:$0xff] %vm56, %v166
    %169 = vst.msk [vmem:[%s6 + $0x8] sm:$0xff] %vm56, %v167
  $region33: #{encoder_layer.11} parent=0 // pred_fallthru
    _
  // Predicated region
  $region34: #{encoder_layer.11} parent=0 // pred_check
    _
  $region35: #{encoder_layer.11} parent=0 // pred_check_branch
    %171 = sbr.rel (0) target = $region37
  $region36: #{encoder_layer.11} parent=0 // pred_region
    _
  $region37: #{encoder_layer.11} parent=0 // pred_fallthru
    _
  // Predicated region
  $region38: #{encoder_layer.11} parent=0 // pred_check
    _
  $region39: #{encoder_layer.11} parent=0 // pred_check_branch
    %173 = sbr.rel (0) target = $region41
  $region40: #{encoder_layer.11} parent=0 // pred_region
    _
  $region41: #{encoder_layer.11} parent=0 // pred_fallthru
    _

// kernel: encoder_layer.10
$region0: #{encoder_layer.10}
  #allocation0 [shape = 'u32[]', space=smem, size = 0x4, offset = 0x4, fixed_abs, tag = 'smem constant byte address 0x4 - core index']
  #allocation1 [shape = 'u32[144,128]{1,0:T(1,128)}', space=vmem, size = 0x12000, scoped, tag = 'internal scratch']
  %s0 = inlined_call_operand.vmem [shape: bf16[3,8,8,8], index: 0, kind: input, shape index: {}, may-alias: {0,1,2}]
  %s1 = inlined_call_operand.vmem [shape: bf16[3,8,8,8], index: 1, kind: input, shape index: {}, may-alias: {0,1,2}]
  %s2 = inlined_call_operand.vmem [shape: bf16[3,8,8,8], index: 2, kind: input, shape index: {}, may-alias: {0,1,2}]
  %s3 = inlined_call_operand.vmem [shape: f32[4,1,8], index: 3, kind: input, shape index: {}]
  %s4 = inlined_call_operand.vmem [shape: f32[8,8,8], index: 4, kind: input, shape index: {}]
  %s5 = inlined_call_operand.vmem [shape: bf16[8,8,8], index: 5, kind: output, shape index: {}]
  %s6 = sld [smem:[#allocation0]]
  $region53: #{encoder_layer.10} parent=0
    _
  %s8 = ssub.s32 1, %s6
  %s9 = scalar_select 0, %s8, %s6
  loop: start=0, step=1, limit=4
  $region2: #{encoder_layer.10} parent=0 // loop_pre_header
    _
  $region3: #{encoder_layer.10} parent=0 // loop_header
    %s11 = sphi 0, %s15
    %p12 = scmp.ge.s32.totalorder %s11, 4
    %s21 = sphi 0, %s23
    %s24 = sphi 0, %s21
    %s25 = sphi 0, %s24
    %s41 = sphi 0, %s25
    %s47 = sphi 0, %s49
    %s50 = sphi 0, %s47
    %s51 = sphi 0, %s50
    %s67 = sphi 0, %s51
    %s73 = sphi 0, %s75
    %s76 = sphi 0, %s73
    %s77 = sphi 0, %s76
    %s93 = sphi 0, %s77
    %s97 = sphi 0, %s97
    %s99 = sphi 0, %s97
    %s100 = sphi 0, %s99
    %s114 = sphi 0, %s100
    %s120 = sphi 0, %s122
    %s123 = sphi 0, %s120
    %s124 = sphi 0, %s123
    %s140 = sphi 0, %s124
    %s146 = sphi 0, %s148
    %s149 = sphi 0, %s146
    %s150 = sphi 0, %s149
    %s166 = sphi 0, %s150
  $region4: #{encoder_layer.10} parent=0 // loop_header_branch
    %14 = sbr.rel (%p12) target = $region8
  $region5: #{encoder_layer.10} parent=0 // loop_body
    %s16 = ssub.s32 %s11, 1
    %s17 = ssub.s32 %s11, 2
    %s18 = sadd.s32 %s11, 1
    %s19 = ssub.s32 %s11, %s18
    %p20 = scmp.eq.s32.totalorder %s19, 0
    %s22 = sadd.s32 %s21, 1
    %s23 = scalar_select %p20, %s21, %s22
    %p26 = pneg %p20
    %p27 = scmp.eq.s32.totalorder %s11, 1
    %p28 = por %p26, %p27
    %p29 = scmp.ne.s32.totalorder %s21, %s24
    %p30 = scmp.eq.s32.totalorder %s11, 0
    %p31 = por %p29, %p30
    %p32 = scmp.ne.s32.totalorder %s21, %s24
    %p33 = scmp.eq.s32.totalorder %s16, 1
    %p34 = por %p32, %p33
    %p35 = scmp.ne.s32.totalorder %s24, %s25
    %p36 = scmp.eq.s32.totalorder %s16, 0
    %p37 = por %p35, %p36
    %p38 = scmp.ne.s32.totalorder %s24, %s25
    %p39 = scmp.eq.s32.totalorder %s17, 1
    %p40 = por %p38, %p39
    %p42 = scmp.ne.s32.totalorder %s25, %s41
    %p43 = scmp.eq.s32.totalorder %s17, 0
    %p44 = por %p42, %p43
    %s45 = ssub.s32 %s11, %s18
    %p46 = scmp.eq.s32.totalorder %s45, 0
    %s48 = sadd.s32 %s47, 1
    %s49 = scalar_select %p46, %s47, %s48
    %p52 = pneg %p46
    %p53 = scmp.eq.s32.totalorder %s11, 1
    %p54 = por %p52, %p53
    %p55 = scmp.ne.s32.totalorder %s47, %s50
    %p56 = scmp.eq.s32.totalorder %s11, 0
    %p57 = por %p55, %p56
    %p58 = scmp.ne.s32.totalorder %s47, %s50
    %p59 = scmp.eq.s32.totalorder %s16, 1
    %p60 = por %p58, %p59
    %p61 = scmp.ne.s32.totalorder %s50, %s51
    %p62 = scmp.eq.s32.totalorder %s16, 0
    %p63 = por %p61, %p62
    %p64 = scmp.ne.s32.totalorder %s50, %s51
    %p65 = scmp.eq.s32.totalorder %s17, 1
    %p66 = por %p64, %p65
    %p68 = scmp.ne.s32.totalorder %s51, %s67
    %p69 = scmp.eq.s32.totalorder %s17, 0
    %p70 = por %p68, %p69
    %s71 = ssub.s32 %s11, %s18
    %p72 = scmp.eq.s32.totalorder %s71, 0
    %s74 = sadd.s32 %s73, 1
    %s75 = scalar_select %p72, %s73, %s74
    %p78 = pneg %p72
    %p79 = scmp.eq.s32.totalorder %s11, 1
    %p80 = por %p78, %p79
    %p81 = scmp.ne.s32.totalorder %s73, %s76
    %p82 = scmp.eq.s32.totalorder %s11, 0
    %p83 = por %p81, %p82
    %p84 = scmp.ne.s32.totalorder %s73, %s76
    %p85 = scmp.eq.s32.totalorder %s16, 1
    %p86 = por %p84, %p85
    %p87 = scmp.ne.s32.totalorder %s76, %s77
    %p88 = scmp.eq.s32.totalorder %s16, 0
    %p89 = por %p87, %p88
    %p90 = scmp.ne.s32.totalorder %s76, %s77
    %p91 = scmp.eq.s32.totalorder %s17, 1
    %p92 = por %p90, %p91
    %p94 = scmp.ne.s32.totalorder %s77, %s93
    %p95 = scmp.eq.s32.totalorder %s17, 0
    %p96 = por %p94, %p95
    %s98 = sadd.s32 %s97, 1
    %p101 = scmp.eq.s32.totalorder %s11, 1
    %p102 = scmp.ne.s32.totalorder %s97, %s99
    %p103 = scmp.eq.s32.totalorder %s11, 0
    %p104 = por %p102, %p103
    %p105 = scmp.ne.s32.totalorder %s97, %s99
    %p106 = scmp.eq.s32.totalorder %s16, 1
    %p107 = por %p105, %p106
    %p108 = scmp.ne.s32.totalorder %s99, %s100
    %p109 = scmp.eq.s32.totalorder %s16, 0
    %p110 = por %p108, %p109
    %p111 = scmp.ne.s32.totalorder %s99, %s100
    %p112 = scmp.eq.s32.totalorder %s17, 1
    %p113 = por %p111, %p112
    %p115 = scmp.ne.s32.totalorder %s100, %s114
    %p116 = scmp.eq.s32.totalorder %s17, 0
    %p117 = por %p115, %p116
    %s118 = ssub.s32 %s11, %s18
    %p119 = scmp.eq.s32.totalorder %s118, 0
    %s121 = sadd.s32 %s120, 1
    %s122 = scalar_select %p119, %s120, %s121
    %p125 = pneg %p119
    %p126 = scmp.eq.s32.totalorder %s11, 1
    %p127 = por %p125, %p126
    %p128 = scmp.ne.s32.totalorder %s120, %s123
    %p129 = scmp.eq.s32.totalorder %s11, 0
    %p130 = por %p128, %p129
    %p131 = scmp.ne.s32.totalorder %s120, %s123
    %p132 = scmp.eq.s32.totalorder %s16, 1
    %p133 = por %p131, %p132
    %p134 = scmp.ne.s32.totalorder %s123, %s124
    %p135 = scmp.eq.s32.totalorder %s16, 0
    %p136 = por %p134, %p135
    %p137 = scmp.ne.s32.totalorder %s123, %s124
    %p138 = scmp.eq.s32.totalorder %s17, 1
    %p139 = por %p137, %p138
    %p141 = scmp.ne.s32.totalorder %s124, %s140
    %p142 = scmp.eq.s32.totalorder %s17, 0
    %p143 = por %p141, %p142
    %s144 = ssub.s32 %s11, %s18
    %p145 = scmp.eq.s32.totalorder %s144, 0
    %s147 = sadd.s32 %s146, 1
    %s148 = scalar_select %p145, %s146, %s147
    %p151 = pneg %p145
    %p152 = scmp.eq.s32.totalorder %s11, 1
    %p153 = por %p151, %p152
    %p154 = scmp.ne.s32.totalorder %s146, %s149
    %p155 = scmp.eq.s32.totalorder %s11, 0
    %p156 = por %p154, %p155
    %p157 = scmp.ne.s32.totalorder %s146, %s149
    %p158 = scmp.eq.s32.totalorder %s16, 1
    %p159 = por %p157, %p158
    %p160 = scmp.ne.s32.totalorder %s149, %s150
    %p161 = scmp.eq.s32.totalorder %s16, 0
    %p162 = por %p160, %p161
    %p163 = scmp.ne.s32.totalorder %s149, %s150
    %p164 = scmp.eq.s32.totalorder %s17, 1
    %p165 = por %p163, %p164
    %p167 = scmp.ne.s32.totalorder %s150, %s166
    %p168 = scmp.eq.s32.totalorder %s17, 0
    %p169 = por %p167, %p168
    %p170 = scmp.le.s32.totalorder 1, %s11
    %p171 = scmp.lt.s32.totalorder %s11, 3
    %p172 = pnand %p170, %p171
    %p173 = pneg %p172
    // Predicated region
    $region9: #{encoder_layer.10} parent=5 // pred_check
      _
    $region10: #{encoder_layer.10} parent=5 // pred_check_branch
      %175 = sbr.rel (%p172) target = $region12
    $region11: #{encoder_layer.10} parent=5 // pred_region
      %s176 = ssub.s32 %s11, 1
      // Predicated region
      $region13: #{encoder_layer.10} parent=11 // pred_check
        %p177 = pneg %p110
      $region14: #{encoder_layer.10} parent=11 // pred_check_branch
        %179 = sbr.rel (%p177) target = $region16
      $region15: #{encoder_layer.10} parent=11 // pred_region
        _
      $region16: #{encoder_layer.10} parent=11 // pred_fallthru
        _
    $region12: #{encoder_layer.10} parent=5 // pred_fallthru
      _
    %p180 = scmp.lt.s32.totalorder %s11, 2
    // Predicated region
    $region17: #{encoder_layer.10} parent=5 // pred_check
      %p181 = pneg %p180
    $region18: #{encoder_layer.10} parent=5 // pred_check_branch
      %183 = sbr.rel (%p181) target = $region20
    $region19: #{encoder_layer.10} parent=5 // pred_region
      // Predicated region
      $region21: #{encoder_layer.10} parent=19 // pred_check
        %p184 = pneg %p31
      $region22: #{encoder_layer.10} parent=19 // pred_check_branch
        %186 = sbr.rel (%p184) target = $region24
      $region23: #{encoder_layer.10} parent=19 // pred_region
        %s187 = smul.u32 4, %s11
        %p188 = scmp.lt.s32.totalorder %s187, 7
        %s189 = scalar_select %p188, %s187, 7
        %s190 = smul.addr %s189, 4
        %s191 = scalar_lea.vmem %s0, %s190
        %s192 = smul.u32 4, %s11
      $region24: #{encoder_layer.10} parent=19 // pred_fallthru
        _
      // Predicated region
      $region25: #{encoder_layer.10} parent=19 // pred_check
        %p193 = pneg %p57
      $region26: #{encoder_layer.10} parent=19 // pred_check_branch
        %195 = sbr.rel (%p193) target = $region28
      $region27: #{encoder_layer.10} parent=19 // pred_region
        %s196 = smul.u32 4, %s11
        %p197 = scmp.lt.s32.totalorder %s196, 7
        %s198 = scalar_select %p197, %s196, 7
        %s199 = sadd.s32 %s198, 8
        %s200 = smul.addr %s199, 4
        %s201 = scalar_lea.vmem %s1, %s200
        %s202 = smul.u32 4, %s11
      $region28: #{encoder_layer.10} parent=19 // pred_fallthru
        _
      // Predicated region
      $region29: #{encoder_layer.10} parent=19 // pred_check
        %p203 = pneg %p83
      $region30: #{encoder_layer.10} parent=19 // pred_check_branch
        %205 = sbr.rel (%p203) target = $region32
      $region31: #{encoder_layer.10} parent=19 // pred_region
        %s206 = smul.u32 4, %s11
        %p207 = scmp.lt.s32.totalorder %s206, 7
        %s208 = scalar_select %p207, %s206, 7
        %s209 = sadd.s32 %s208, 16
        %s210 = smul.addr %s209, 4
        %s211 = scalar_lea.vmem %s2, %s210
        %s212 = smul.u32 4, %s11
      $region32: #{encoder_layer.10} parent=19 // pred_fallthru
        _
      // Predicated region
      $region33: #{encoder_layer.10} parent=19 // pred_check
        %p213 = pneg %p130
      $region34: #{encoder_layer.10} parent=19 // pred_check_branch
        %215 = sbr.rel (%p213) target = $region36
      $region35: #{encoder_layer.10} parent=19 // pred_region
        %s216 = smul.u32 4, %s11
        %p217 = scmp.lt.s32.totalorder %s216, 7
        %s218 = scalar_select %p217, %s216, 7
        %s219 = smul.addr %s218, 8
        %s220 = scalar_lea.vmem %s4, %s219
        %s221 = smul.u32 4, %s11
      $region36: #{encoder_layer.10} parent=19 // pred_fallthru
        _
    $region20: #{encoder_layer.10} parent=5 // pred_fallthru
      _
    %p222 = scmp.le.s32.totalorder 1, %s11
    %p223 = scmp.lt.s32.totalorder %s11, 3
    %p224 = pnand %p222, %p223
    %p225 = pneg %p224
    // Predicated region
    $region37: #{encoder_layer.10} parent=5 // pred_check
      _
    $region38: #{encoder_layer.10} parent=5 // pred_check_branch
      %227 = sbr.rel (%p224) target = $region40
    $region39: #{encoder_layer.10} parent=5 // pred_region
      %s228 = ssub.s32 %s11, 1
      %s229 = smul.u32 4, %s16
      %p230 = scmp.lt.s32.totalorder %s229, 7
      %s231 = scalar_select %p230, %s229, 7
      %s232 = smul.addr %s231, 4
      %s233 = scalar_lea.vmem %s0, %s232
      %p234 = pneg %p37
      %p235 = pneg %p34
      %s236 = smul.u32 4, %s16
      %p237 = scmp.lt.s32.totalorder %s236, 7
      %s238 = scalar_select %p237, %s236, 7
      %s239 = sadd.s32 %s238, 8
      %s240 = smul.addr %s239, 4
      %s241 = scalar_lea.vmem %s1, %s240
      %p242 = pneg %p63
      %p243 = pneg %p60
      %s244 = smul.u32 4, %s16
      %p245 = scmp.lt.s32.totalorder %s244, 7
      %s246 = scalar_select %p245, %s244, 7
      %s247 = sadd.s32 %s246, 16
      %s248 = smul.addr %s247, 4
      %s249 = scalar_lea.vmem %s2, %s248
      %p250 = pneg %p89
      %p251 = pneg %p86
      %p252 = pneg %p110
      %p253 = pneg %p107
      %s254 = smul.u32 4, %s16
      %p255 = scmp.lt.s32.totalorder %s254, 7
      %s256 = scalar_select %p255, %s254, 7
      %s257 = smul.addr %s256, 8
      %s258 = scalar_lea.vmem %s4, %s257
      %p259 = pneg %p136
      %p260 = pneg %p133
      %p261 = pneg %p162
      %p262 = pneg %p159
      %s263 = smul.u32 4, %s16
      %p264 = scmp.lt.s32.totalorder %s263, 7
      %s265 = scalar_select %p264, %s263, 7
      %s266 = smul.addr %s265, 4
      %s267 = scalar_lea.vmem %s5, %s266
      %s268 = smul.u32 4, %s16
      %p269 = scmp.lt.s32.totalorder %s268, 7
      %s270 = scalar_select %p269, %s268, 7
      %s271 = smul.addr %s270, 4
      %s272 = scalar_lea.vmem %s0, %s271
      %s273 = smul.u32 4, %s16
      %s274 = smul.u32 4, %s16
      %p275 = scmp.lt.s32.totalorder %s274, 7
      %s276 = scalar_select %p275, %s274, 7
      %s277 = sadd.s32 %s276, 8
      %s278 = smul.addr %s277, 4
      %s279 = scalar_lea.vmem %s1, %s278
      %s280 = smul.u32 4, %s16
      %s281 = smul.u32 4, %s16
      %p282 = scmp.lt.s32.totalorder %s281, 7
      %s283 = scalar_select %p282, %s281, 7
      %s284 = sadd.s32 %s283, 16
      %s285 = smul.addr %s284, 4
      %s286 = scalar_lea.vmem %s2, %s285
      %s287 = smul.u32 4, %s16
      %s288 = smul.u32 4, %s16
      %p289 = scmp.lt.s32.totalorder %s288, 7
      %s290 = scalar_select %p289, %s288, 7
      %s291 = smul.addr %s290, 8
      %s292 = scalar_lea.vmem %s4, %s291
      %s293 = smul.u32 4, %s16
      %s294 = smul.u32 4, %s16
      %p295 = scmp.lt.s32.totalorder %s294, 7
      %s296 = scalar_select %p295, %s294, 7
      %s297 = smul.addr %s296, 4
      %s298 = scalar_lea.vmem %s5, %s297
      %s299 = smul.u32 4, %s16
      %v301 = vld [vmem:[%s272] sm:$0xf]
      %v302 = vld [vmem:[%s272 + $0x4] sm:$0xf]
      %v303 = vld [vmem:[%s272 + $0x8] sm:$0xf]
      %v304 = vld [vmem:[%s272 + $0xc] sm:$0xf]
      %v305 = vunpack.c.l.bf16 %v301
      %v306 = vunpack.c.l.bf16 %v302
      %v307 = vunpack.c.l.bf16 %v303
      %v308 = vunpack.c.l.bf16 %v304
      %v309 = vld [vmem:[%s3] sm:$0x1]
      %v310 = vld [vmem:[%s3 + $0x1] sm:$0x1]
      %v311 = vld [vmem:[%s3 + $0x2] sm:$0x1]
      %v312 = vld [vmem:[%s3 + $0x3] sm:$0x1]
      %v317 = vlaneseq
      %v318 = vshrl.u32 %v317, 7
      %v319 = vsub.s32 0, %v318
      %v320 = vrot.slane %v309, %v319
      %v321 = vlaneseq
      %v322 = vshrl.u32 %v321, 7
      %v323 = vsub.s32 0, %v322
      %v324 = vrot.slane %v310, %v323
      %v325 = vlaneseq
      %v326 = vshrl.u32 %v325, 7
      %v327 = vsub.s32 0, %v326
      %v328 = vrot.slane %v311, %v327
      %v329 = vlaneseq
      %v330 = vshrl.u32 %v329, 7
      %v331 = vsub.s32 0, %v330
      %v332 = vrot.slane %v312, %v331
      %v337 = vadd.f32 %v305, %v320
      %v338 = vadd.f32 %v306, %v324
      %v339 = vadd.f32 %v307, %v328
      %v340 = vadd.f32 %v308, %v332
      %v341 = vpack.c.bf16 %v337, %v337
      %v342 = vpack.c.bf16 %v338, %v338
      %v343 = vpack.c.bf16 %v339, %v339
      %v344 = vpack.c.bf16 %v340, %v340
      %v345 = vld [vmem:[%s279] sm:$0xf]
      %v346 = vld [vmem:[%s279 + $0x4] sm:$0xf]
      %v347 = vld [vmem:[%s279 + $0x8] sm:$0xf]
      %v348 = vld [vmem:[%s279 + $0xc] sm:$0xf]
      %v349 = vld [vmem:[%s292] sm:$0xff]
      %v350 = vld [vmem:[%s292 + $0x8] sm:$0xff]
      %v351 = vld [vmem:[%s292 + $0x10] sm:$0xff]
      %v352 = vld [vmem:[%s292 + $0x18] sm:$0xff]
      %vm353 = vcmask 64512
      %v355 = vsel %vm353, %v341, 0
      %v358 = vsel %vm353, %v345, 0
      %360 = vmatprep.subr.bf16.mxu0 0
      %361 = vmatpush1.bf16.xpose.msra.mxu0 0
      %362 = vmatprep.subr.bf16.mxu0 0
      %363 = vmatpush1.bf16.xpose.msra.mxu0 0
      %364 = vmatprep.subr.bf16.mxu0 0
      %365 = vmatpush1.bf16.xpose.msra.mxu0 0
      %366 = vmatprep.subr.bf16.mxu0 0
      %367 = vmatpush1.bf16.xpose.msra.mxu0 0
      %368 = vmatprep.subr.bf16.mxu0 0
      %369 = vmatpush1.bf16.xpose.msra.mxu0 0
      %370 = vmatprep.subr.bf16.mxu0 0
      %371 = vmatpush1.bf16.xpose.msra.mxu0 0
      %372 = vmatprep.subr.bf16.mxu0 0
      %373 = vmatpush1.bf16.xpose.msra.mxu0 0
      %374 = vmatprep.subr.bf16.mxu0 0
      %375 = vmatpush1.bf16.xpose.msra.mxu0 %v358
      %376 = vmatprep.subr.bf16.mxu0 0
      %377 = vmatpush2.bf16.xpose.msra.mxu0 0
      %378 = vmatprep.subr.bf16.mxu0 0
      %379 = vmatpush2.bf16.xpose.msra.mxu0 0
      %380 = vmatprep.subr.bf16.mxu0 0
      %381 = vmatpush2.bf16.xpose.msra.mxu0 0
      %382 = vmatprep.subr.bf16.mxu0 0
      %383 = vmatpush2.bf16.xpose.msra.mxu0 0
      %384 = vmatprep.subr.bf16.mxu0 0
      %385 = vmatpush2.bf16.xpose.msra.mxu0 0
      %386 = vmatprep.subr.bf16.mxu0 0
      %387 = vmatpush2.bf16.xpose.msra.mxu0 0
      %388 = vmatprep.subr.bf16.mxu0 0
      %389 = vmatpush2.bf16.xpose.msra.mxu0 0
      %390 = vmatprep.subr.bf16.mxu0 0
      %391 = vmatpush2.bf16.xpose.msra.mxu0 0
      %392 = vmatprep.mubr.bf16.mxu0 0
      %393 = vmatmul.mubr.bf16.gmra.mxu0 %v355
      %v394 = vpop.f32.mrf.mxu0
      %v395 = vadd.f32 %v349, %v394
      %v396 = vpop.f32.mrf.mxu0
      %v397 = vpop.f32.mrf.mxu0
      %v398 = vpop.f32.mrf.mxu0
      %399 = vdwg.mxu0
      %v401 = vsel %vm353, %v342, 0
      %v404 = vsel %vm353, %v346, 0
      %406 = vmatprep.subr.bf16.mxu0 0
      %407 = vmatpush1.bf16.xpose.msra.mxu0 0
      %408 = vmatprep.subr.bf16.mxu0 0
      %409 = vmatpush1.bf16.xpose.msra.mxu0 0
      %410 = vmatprep.subr.bf16.mxu0 0
      %411 = vmatpush1.bf16.xpose.msra.mxu0 0
      %412 = vmatprep.subr.bf16.mxu0 0
      %413 = vmatpush1.bf16.xpose.msra.mxu0 0
      %414 = vmatprep.subr.bf16.mxu0 0
      %415 = vmatpush1.bf16.xpose.msra.mxu0 0
      %416 = vmatprep.subr.bf16.mxu0 0
      %417 = vmatpush1.bf16.xpose.msra.mxu0 0
      %418 = vmatprep.subr.bf16.mxu0 0
      %419 = vmatpush1.bf16.xpose.msra.mxu0 0
      %420 = vmatprep.subr.bf16.mxu0 0
      %421 = vmatpush1.bf16.xpose.msra.mxu0 %v404
      %422 = vmatprep.subr.bf16.mxu0 0
      %423 = vmatpush2.bf16.xpose.msra.mxu0 0
      %424 = vmatprep.subr.bf16.mxu0 0
      %425 = vmatpush2.bf16.xpose.msra.mxu0 0
      %426 = vmatprep.subr.bf16.mxu0 0
      %427 = vmatpush2.bf16.xpose.msra.mxu0 0
      %428 = vmatprep.subr.bf16.mxu0 0
      %429 = vmatpush2.bf16.xpose.msra.mxu0 0
      %430 = vmatprep.subr.bf16.mxu0 0
      %431 = vmatpush2.bf16.xpose.msra.mxu0 0
      %432 = vmatprep.subr.bf16.mxu0 0
      %433 = vmatpush2.bf16.xpose.msra.mxu0 0
      %434 = vmatprep.subr.bf16.mxu0 0
      %435 = vmatpush2.bf16.xpose.msra.mxu0 0
      %436 = vmatprep.subr.bf16.mxu0 0
      %437 = vmatpush2.bf16.xpose.msra.mxu0 0
      %438 = vmatprep.mubr.bf16.mxu0 0
      %439 = vmatmul.mubr.bf16.gmra.mxu0 %v401
      %v440 = vpop.f32.mrf.mxu0
      %v441 = vadd.f32 %v350, %v440
      %v442 = vpop.f32.mrf.mxu0
      %v443 = vpop.f32.mrf.mxu0
      %v444 = vpop.f32.mrf.mxu0
      %445 = vdwg.mxu0
      %v447 = vsel %vm353, %v343, 0
      %v450 = vsel %vm353, %v347, 0
      %452 = vmatprep.subr.bf16.mxu0 0
      %453 = vmatpush1.bf16.xpose.msra.mxu0 0
      %454 = vmatprep.subr.bf16.mxu0 0
      %455 = vmatpush1.bf16.xpose.msra.mxu0 0
      %456 = vmatprep.subr.bf16.mxu0 0
      %457 = vmatpush1.bf16.xpose.msra.mxu0 0
      %458 = vmatprep.subr.bf16.mxu0 0
      %459 = vmatpush1.bf16.xpose.msra.mxu0 0
      %460 = vmatprep.subr.bf16.mxu0 0
      %461 = vmatpush1.bf16.xpose.msra.mxu0 0
      %462 = vmatprep.subr.bf16.mxu0 0
      %463 = vmatpush1.bf16.xpose.msra.mxu0 0
      %464 = vmatprep.subr.bf16.mxu0 0
      %465 = vmatpush1.bf16.xpose.msra.mxu0 0
      %466 = vmatprep.subr.bf16.mxu0 0
      %467 = vmatpush1.bf16.xpose.msra.mxu0 %v450
      %468 = vmatprep.subr.bf16.mxu0 0
      %469 = vmatpush2.bf16.xpose.msra.mxu0 0
      %470 = vmatprep.subr.bf16.mxu0 0
      %471 = vmatpush2.bf16.xpose.msra.mxu0 0
      %472 = vmatprep.subr.bf16.mxu0 0
      %473 = vmatpush2.bf16.xpose.msra.mxu0 0
      %474 = vmatprep.subr.bf16.mxu0 0
      %475 = vmatpush2.bf16.xpose.msra.mxu0 0
      %476 = vmatprep.subr.bf16.mxu0 0
      %477 = vmatpush2.bf16.xpose.msra.mxu0 0
      %478 = vmatprep.subr.bf16.mxu0 0
      %479 = vmatpush2.bf16.xpose.msra.mxu0 0
      %480 = vmatprep.subr.bf16.mxu0 0
      %481 = vmatpush2.bf16.xpose.msra.mxu0 0
      %482 = vmatprep.subr.bf16.mxu0 0
      %483 = vmatpush2.bf16.xpose.msra.mxu0 0
      %484 = vmatprep.mubr.bf16.mxu0 0
      %485 = vmatmul.mubr.bf16.gmra.mxu0 %v447
      %v486 = vpop.f32.mrf.mxu0
      %v487 = vadd.f32 %v351, %v486
      %v488 = vpop.f32.mrf.mxu0
      %v489 = vpop.f32.mrf.mxu0
      %v490 = vpop.f32.mrf.mxu0
      %491 = vdwg.mxu0
      %v493 = vsel %vm353, %v344, 0
      %v496 = vsel %vm353, %v348, 0
      %498 = vmatprep.subr.bf16.mxu0 0
      %499 = vmatpush1.bf16.xpose.msra.mxu0 0
      %500 = vmatprep.subr.bf16.mxu0 0
      %501 = vmatpush1.bf16.xpose.msra.mxu0 0
      %502 = vmatprep.subr.bf16.mxu0 0
      %503 = vmatpush1.bf16.xpose.msra.mxu0 0
      %504 = vmatprep.subr.bf16.mxu0 0
      %505 = vmatpush1.bf16.xpose.msra.mxu0 0
      %506 = vmatprep.subr.bf16.mxu0 0
      %507 = vmatpush1.bf16.xpose.msra.mxu0 0
      %508 = vmatprep.subr.bf16.mxu0 0
      %509 = vmatpush1.bf16.xpose.msra.mxu0 0
      %510 = vmatprep.subr.bf16.mxu0 0
      %511 = vmatpush1.bf16.xpose.msra.mxu0 0
      %512 = vmatprep.subr.bf16.mxu0 0
      %513 = vmatpush1.bf16.xpose.msra.mxu0 %v496
      %514 = vmatprep.subr.bf16.mxu0 0
      %515 = vmatpush2.bf16.xpose.msra.mxu0 0
      %516 = vmatprep.subr.bf16.mxu0 0
      %517 = vmatpush2.bf16.xpose.msra.mxu0 0
      %518 = vmatprep.subr.bf16.mxu0 0
      %519 = vmatpush2.bf16.xpose.msra.mxu0 0
      %520 = vmatprep.subr.bf16.mxu0 0
      %521 = vmatpush2.bf16.xpose.msra.mxu0 0
      %522 = vmatprep.subr.bf16.mxu0 0
      %523 = vmatpush2.bf16.xpose.msra.mxu0 0
      %524 = vmatprep.subr.bf16.mxu0 0
      %525 = vmatpush2.bf16.xpose.msra.mxu0 0
      %526 = vmatprep.subr.bf16.mxu0 0
      %527 = vmatpush2.bf16.xpose.msra.mxu0 0
      %528 = vmatprep.subr.bf16.mxu0 0
      %529 = vmatpush2.bf16.xpose.msra.mxu0 0
      %530 = vmatprep.mubr.bf16.mxu0 0
      %531 = vmatmul.mubr.bf16.gmra.mxu0 %v493
      %v532 = vpop.f32.mrf.mxu0
      %v533 = vadd.f32 %v352, %v532
      %v534 = vpop.f32.mrf.mxu0
      %v535 = vpop.f32.mrf.mxu0
      %v536 = vpop.f32.mrf.mxu0
      %537 = vdwg.mxu0
      %v538 = vmul.f32 %v395, 0.17677669
      %v539 = vmul.f32 %v441, 0.17677669
      %v540 = vmul.f32 %v487, 0.17677669
      %v541 = vmul.f32 %v533, 0.17677669
      %v542 = vsel %vm353, %v538, -inf
      %543 = vmax.xlane.f32.xlu0 %v542
      %v544 = vpop.xlane.xlu0 %543
      %v545 = vsel %vm353, %v539, -inf
      %546 = vmax.xlane.f32.xlu0 %v545
      %v547 = vpop.xlane.xlu0 %546
      %v548 = vsel %vm353, %v540, -inf
      %549 = vmax.xlane.f32.xlu0 %v548
      %v550 = vpop.xlane.xlu0 %549
      %v551 = vsel %vm353, %v541, -inf
      %552 = vmax.xlane.f32.xlu0 %v551
      %v553 = vpop.xlane.xlu0 %552
      %v554 = vsub.f32 %v538, %v544
      %v555 = vsub.f32 %v539, %v547
      %v556 = vsub.f32 %v540, %v550
      %v557 = vsub.f32 %v541, %v553
      %v558 = vmul.f32 %v554, 1.442695
      %v559 = vpow.pop %v558
      %v560 = vmul.f32 %v555, 1.442695
      %v561 = vpow.pop %v560
      %v562 = vmul.f32 %v556, 1.442695
      %v563 = vpow.pop %v562
      %v564 = vmul.f32 %v557, 1.442695
      %v565 = vpow.pop %v564
      %v566 = vsel %vm353, %v559, 0.0
      %567 = vadd.xlane.f32.xlu0 %v566
      %v568 = vpop.xlane.xlu0 %567
      %v569 = vsel %vm353, %v561, 0.0
      %570 = vadd.xlane.f32.xlu0 %v569
      %v571 = vpop.xlane.xlu0 %570
      %v572 = vsel %vm353, %v563, 0.0
      %573 = vadd.xlane.f32.xlu0 %v572
      %v574 = vpop.xlane.xlu0 %573
      %v575 = vsel %vm353, %v565, 0.0
      %576 = vadd.xlane.f32.xlu0 %v575
      %v577 = vpop.xlane.xlu0 %576
      %v578 = vrcp.pop %v568
      %v579 = vrcp.pop %v571
      %v580 = vrcp.pop %v574
      %v581 = vrcp.pop %v577
      %v582 = vmul.f32 %v559, %v578
      %v583 = vmul.f32 %v561, %v579
      %v584 = vmul.f32 %v563, %v580
      %v585 = vmul.f32 %v565, %v581
      %v586 = vpack.c.bf16 %v582, %v582
      %v587 = vpack.c.bf16 %v583, %v583
      %v588 = vpack.c.bf16 %v584, %v584
      %v589 = vpack.c.bf16 %v585, %v585
      %v590 = vld [vmem:[%s286] sm:$0xf]
      %v591 = vld [vmem:[%s286 + $0x4] sm:$0xf]
      %v592 = vld [vmem:[%s286 + $0x8] sm:$0xf]
      %v593 = vld [vmem:[%s286 + $0xc] sm:$0xf]
      %v595 = vsel %vm353, %v586, 0
      %vm597 = vcmask 1043456
      %v599 = vsel %vm597, %v590, 0
      %601 = vmatprep.subr.bf16.mxu0 0
      %602 = vmatpush1.bf16.msra.mxu0 0
      %603 = vmatprep.subr.bf16.mxu0 0
      %604 = vmatpush1.bf16.msra.mxu0 0
      %605 = vmatprep.subr.bf16.mxu0 0
      %606 = vmatpush1.bf16.msra.mxu0 0
      %607 = vmatprep.subr.bf16.mxu0 0
      %608 = vmatpush1.bf16.msra.mxu0 0
      %609 = vmatprep.subr.bf16.mxu0 0
      %610 = vmatpush1.bf16.msra.mxu0 0
      %611 = vmatprep.subr.bf16.mxu0 0
      %612 = vmatpush1.bf16.msra.mxu0 0
      %613 = vmatprep.subr.bf16.mxu0 0
      %614 = vmatpush1.bf16.msra.mxu0 0
      %615 = vmatprep.subr.bf16.mxu0 0
      %616 = vmatpush1.bf16.msra.mxu0 %v599
      %617 = vmatprep.subr.bf16.mxu0 0
      %618 = vmatpush2.bf16.msra.mxu0 0
      %619 = vmatprep.subr.bf16.mxu0 0
      %620 = vmatpush2.bf16.msra.mxu0 0
      %621 = vmatprep.subr.bf16.mxu0 0
      %622 = vmatpush2.bf16.msra.mxu0 0
      %623 = vmatprep.subr.bf16.mxu0 0
      %624 = vmatpush2.bf16.msra.mxu0 0
      %625 = vmatprep.subr.bf16.mxu0 0
      %626 = vmatpush2.bf16.msra.mxu0 0
      %627 = vmatprep.subr.bf16.mxu0 0
      %628 = vmatpush2.bf16.msra.mxu0 0
      %629 = vmatprep.subr.bf16.mxu0 0
      %630 = vmatpush2.bf16.msra.mxu0 0
      %631 = vmatprep.subr.bf16.mxu0 0
      %632 = vmatpush2.bf16.msra.mxu0 0
      %633 = vmatprep.mubr.bf16.mxu0 0
      %634 = vmatmul.mubr.bf16.gmra.mxu0 %v595
      %v635 = vpop.f32.mrf.mxu0
      %v636 = vadd.f32 0.0, %v635
      %v637 = vpop.f32.mrf.mxu0
      %v638 = vpop.f32.mrf.mxu0
      %v639 = vpop.f32.mrf.mxu0
      %640 = vdwg.mxu0
      %v642 = vsel %vm353, %v587, 0
      %v645 = vsel %vm597, %v591, 0
      %647 = vmatprep.subr.bf16.mxu0 0
      %648 = vmatpush1.bf16.msra.mxu0 0
      %649 = vmatprep.subr.bf16.mxu0 0
      %650 = vmatpush1.bf16.msra.mxu0 0
      %651 = vmatprep.subr.bf16.mxu0 0
      %652 = vmatpush1.bf16.msra.mxu0 0
      %653 = vmatprep.subr.bf16.mxu0 0
      %654 = vmatpush1.bf16.msra.mxu0 0
      %655 = vmatprep.subr.bf16.mxu0 0
      %656 = vmatpush1.bf16.msra.mxu0 0
      %657 = vmatprep.subr.bf16.mxu0 0
      %658 = vmatpush1.bf16.msra.mxu0 0
      %659 = vmatprep.subr.bf16.mxu0 0
      %660 = vmatpush1.bf16.msra.mxu0 0
      %661 = vmatprep.subr.bf16.mxu0 0
      %662 = vmatpush1.bf16.msra.mxu0 %v645
      %663 = vmatprep.subr.bf16.mxu0 0
      %664 = vmatpush2.bf16.msra.mxu0 0
      %665 = vmatprep.subr.bf16.mxu0 0
      %666 = vmatpush2.bf16.msra.mxu0 0
      %667 = vmatprep.subr.bf16.mxu0 0
      %668 = vmatpush2.bf16.msra.mxu0 0
      %669 = vmatprep.subr.bf16.mxu0 0
      %670 = vmatpush2.bf16.msra.mxu0 0
      %671 = vmatprep.subr.bf16.mxu0 0
      %672 = vmatpush2.bf16.msra.mxu0 0
      %673 = vmatprep.subr.bf16.mxu0 0
      %674 = vmatpush2.bf16.msra.mxu0 0
      %675 = vmatprep.subr.bf16.mxu0 0
      %676 = vmatpush2.bf16.msra.mxu0 0
      %677 = vmatprep.subr.bf16.mxu0 0
      %678 = vmatpush2.bf16.msra.mxu0 0
      %679 = vmatprep.mubr.bf16.mxu0 0
      %680 = vmatmul.mubr.bf16.gmra.mxu0 %v642
      %v681 = vpop.f32.mrf.mxu0
      %v682 = vadd.f32 0.0, %v681
      %v683 = vpop.f32.mrf.mxu0
      %v684 = vpop.f32.mrf.mxu0
      %v685 = vpop.f32.mrf.mxu0
      %686 = vdwg.mxu0
      %v688 = vsel %vm353, %v588, 0
      %v691 = vsel %vm597, %v592, 0
      %693 = vmatprep.subr.bf16.mxu0 0
      %694 = vmatpush1.bf16.msra.mxu0 0
      %695 = vmatprep.subr.bf16.mxu0 0
      %696 = vmatpush1.bf16.msra.mxu0 0
      %697 = vmatprep.subr.bf16.mxu0 0
      %698 = vmatpush1.bf16.msra.mxu0 0
      %699 = vmatprep.subr.bf16.mxu0 0
      %700 = vmatpush1.bf16.msra.mxu0 0
      %701 = vmatprep.subr.bf16.mxu0 0
      %702 = vmatpush1.bf16.msra.mxu0 0
      %703 = vmatprep.subr.bf16.mxu0 0
      %704 = vmatpush1.bf16.msra.mxu0 0
      %705 = vmatprep.subr.bf16.mxu0 0
      %706 = vmatpush1.bf16.msra.mxu0 0
      %707 = vmatprep.subr.bf16.mxu0 0
      %708 = vmatpush1.bf16.msra.mxu0 %v691
      %709 = vmatprep.subr.bf16.mxu0 0
      %710 = vmatpush2.bf16.msra.mxu0 0
      %711 = vmatprep.subr.bf16.mxu0 0
      %712 = vmatpush2.bf16.msra.mxu0 0
      %713 = vmatprep.subr.bf16.mxu0 0
      %714 = vmatpush2.bf16.msra.mxu0 0
      %715 = vmatprep.subr.bf16.mxu0 0
      %716 = vmatpush2.bf16.msra.mxu0 0
      %717 = vmatprep.subr.bf16.mxu0 0
      %718 = vmatpush2.bf16.msra.mxu0 0
      %719 = vmatprep.subr.bf16.mxu0 0
      %720 = vmatpush2.bf16.msra.mxu0 0
      %721 = vmatprep.subr.bf16.mxu0 0
      %722 = vmatpush2.bf16.msra.mxu0 0
      %723 = vmatprep.subr.bf16.mxu0 0
      %724 = vmatpush2.bf16.msra.mxu0 0
      %725 = vmatprep.mubr.bf16.mxu0 0
      %726 = vmatmul.mubr.bf16.gmra.mxu0 %v688
      %v727 = vpop.f32.mrf.mxu0
      %v728 = vadd.f32 0.0, %v727
      %v729 = vpop.f32.mrf.mxu0
      %v730 = vpop.f32.mrf.mxu0
      %v731 = vpop.f32.mrf.mxu0
      %732 = vdwg.mxu0
      %v734 = vsel %vm353, %v589, 0
      %v737 = vsel %vm597, %v593, 0
      %739 = vmatprep.subr.bf16.mxu0 0
      %740 = vmatpush1.bf16.msra.mxu0 0
      %741 = vmatprep.subr.bf16.mxu0 0
      %742 = vmatpush1.bf16.msra.mxu0 0
      %743 = vmatprep.subr.bf16.mxu0 0
      %744 = vmatpush1.bf16.msra.mxu0 0
      %745 = vmatprep.subr.bf16.mxu0 0
      %746 = vmatpush1.bf16.msra.mxu0 0
      %747 = vmatprep.subr.bf16.mxu0 0
      %748 = vmatpush1.bf16.msra.mxu0 0
      %749 = vmatprep.subr.bf16.mxu0 0
      %750 = vmatpush1.bf16.msra.mxu0 0
      %751 = vmatprep.subr.bf16.mxu0 0
      %752 = vmatpush1.bf16.msra.mxu0 0
      %753 = vmatprep.subr.bf16.mxu0 0
      %754 = vmatpush1.bf16.msra.mxu0 %v737
      %755 = vmatprep.subr.bf16.mxu0 0
      %756 = vmatpush2.bf16.msra.mxu0 0
      %757 = vmatprep.subr.bf16.mxu0 0
      %758 = vmatpush2.bf16.msra.mxu0 0
      %759 = vmatprep.subr.bf16.mxu0 0
      %760 = vmatpush2.bf16.msra.mxu0 0
      %761 = vmatprep.subr.bf16.mxu0 0
      %762 = vmatpush2.bf16.msra.mxu0 0
      %763 = vmatprep.subr.bf16.mxu0 0
      %764 = vmatpush2.bf16.msra.mxu0 0
      %765 = vmatprep.subr.bf16.mxu0 0
      %766 = vmatpush2.bf16.msra.mxu0 0
      %767 = vmatprep.subr.bf16.mxu0 0
      %768 = vmatpush2.bf16.msra.mxu0 0
      %769 = vmatprep.subr.bf16.mxu0 0
      %770 = vmatpush2.bf16.msra.mxu0 0
      %771 = vmatprep.mubr.bf16.mxu0 0
      %772 = vmatmul.mubr.bf16.gmra.mxu0 %v734
      %v773 = vpop.f32.mrf.mxu0
      %v774 = vadd.f32 0.0, %v773
      %v775 = vpop.f32.mrf.mxu0
      %v776 = vpop.f32.mrf.mxu0
      %v777 = vpop.f32.mrf.mxu0
      %778 = vdwg.mxu0
      %v779 = vpack.c.bf16 %v636, %v636
      %v780 = vpack.c.bf16 %v682, %v682
      %v781 = vpack.c.bf16 %v728, %v728
      %v782 = vpack.c.bf16 %v774, %v774
      %vm783 = vcmask 60416
      %784 = vst.msk [vmem:[%s298] sm:$0xf] %vm783, %v779
      %785 = vst.msk [vmem:[%s298 + $0x4] sm:$0xf] %vm783, %v780
      %786 = vst.msk [vmem:[%s298 + $0x8] sm:$0xf] %vm783, %v781
      %787 = vst.msk [vmem:[%s298 + $0xc] sm:$0xf] %vm783, %v782
      %s788 = smul.u32 4, %s16
      %p789 = scmp.lt.s32.totalorder %s788, 7
      %s790 = scalar_select %p789, %s788, 7
      %s791 = smul.addr %s790, 4
      %s792 = scalar_lea.vmem %s5, %s791
      // Predicated region
      $region41: #{encoder_layer.10} parent=39 // pred_check
        %p793 = pneg %p159
      $region42: #{encoder_layer.10} parent=39 // pred_check_branch
        %795 = sbr.rel (%p793) target = $region44
      $region43: #{encoder_layer.10} parent=39 // pred_region
        %s796 = smul.u32 4, %s16
      $region44: #{encoder_layer.10} parent=39 // pred_fallthru
        _
    $region40: #{encoder_layer.10} parent=5 // pred_fallthru
      _
    %p797 = scmp.le.s32.totalorder 2, %s11
    // Predicated region
    $region45: #{encoder_layer.10} parent=5 // pred_check
      %p798 = pneg %p797
    $region46: #{encoder_layer.10} parent=5 // pred_check_branch
      %800 = sbr.rel (%p798) target = $region48
    $region47: #{encoder_layer.10} parent=5 // pred_region
      %s801 = ssub.s32 %s11, 2
      // Predicated region
      $region49: #{encoder_layer.10} parent=47 // pred_check
        %p802 = pneg %p165
      $region50: #{encoder_layer.10} parent=47 // pred_check_branch
        %804 = sbr.rel (%p802) target = $region52
      $region51: #{encoder_layer.10} parent=47 // pred_region
        %s805 = smul.u32 4, %s17
        %p806 = scmp.lt.s32.totalorder %s805, 7
        %s807 = scalar_select %p806, %s805, 7
        %s808 = smul.addr %s807, 4
        %s809 = scalar_lea.vmem %s5, %s808
      $region52: #{encoder_layer.10} parent=47 // pred_fallthru
        _
    $region48: #{encoder_layer.10} parent=5 // pred_fallthru
      _
  $region6: #{encoder_layer.10} parent=0 // loop_footer
    %s15 = sadd.s32 1, %s11
  $region7: #{encoder_layer.10} parent=0 // loop_footer_branch
    %10 = sbr.rel target = $region3
  $region8: #{encoder_layer.10} parent=0 // loop_exit
    _

// kernel: encoder_layer.12
$region0: #{encoder_layer.12}
  #allocation0 [shape = 'u32[]', space=smem, size = 0x4, offset = 0x4, fixed_abs, tag = 'smem constant byte address 0x4 - core index']
  #allocation1 [shape = 'u32[144,128]{1,0:T(1,128)}', space=vmem, size = 0x12000, scoped, tag = 'internal scratch']
  #allocation2 [shape = 'f32[16,4]{1,0:T(8,128)}', space=vmem, size = 0x2000, scoped, tag = 'scratch operand']
  %s0 = inlined_call_operand.vmem [shape: bf16[16,32], index: 0, kind: input, shape index: {}]
  %s1 = inlined_call_operand.vmem [shape: bf16[32,4], index: 1, kind: input, shape index: {}]
  %s2 = inlined_call_operand.vmem [shape: f32[1,4], index: 2, kind: input, shape index: {}]
  %s3 = inlined_call_operand.vmem [shape: f32[16,4], index: 3, kind: output, shape index: {}]
  %s4 = sld [smem:[#allocation0]]
  $region30: #{encoder_layer.12} parent=0
    _
  %s6 = ssub.s32 1, %s4
  %s7 = scalar_select 0, %s6, %s4
  // Predicated region
  $region2: #{encoder_layer.12} parent=0 // pred_check
    _
  $region3: #{encoder_layer.12} parent=0 // pred_check_branch
    %9 = sbr.rel (0) target = $region5
  $region4: #{encoder_layer.12} parent=0 // pred_region
    _
  $region5: #{encoder_layer.12} parent=0 // pred_fallthru
    _
  // Predicated region
  $region6: #{encoder_layer.12} parent=0 // pred_check
    _
  $region7: #{encoder_layer.12} parent=0 // pred_check_branch
    %11 = sbr.rel (0) target = $region9
  $region8: #{encoder_layer.12} parent=0 // pred_region
    _
  $region9: #{encoder_layer.12} parent=0 // pred_fallthru
    _
  // Predicated region
  $region10: #{encoder_layer.12} parent=0 // pred_check
    _
  $region11: #{encoder_layer.12} parent=0 // pred_check_branch
    %13 = sbr.rel (0) target = $region13
  $region12: #{encoder_layer.12} parent=0 // pred_region
    _
  $region13: #{encoder_layer.12} parent=0 // pred_fallthru
    _
  %p15 = scmp.eq.s32.totalorder 0, 0
  // Predicated region
  $region14: #{encoder_layer.12} parent=0 // pred_check
    %p16 = pneg %p15
  $region15: #{encoder_layer.12} parent=0 // pred_check_branch
    %18 = sbr.rel (%p16) target = $region17
  $region16: #{encoder_layer.12} parent=0 // pred_region
    %vm19 = vcmask 31744
    %20 = vst.msk [vmem:[#allocation2] sm:$0xff] %vm19, 0.0
    %21 = vst.msk [vmem:[#allocation2 + $0x8] sm:$0xff] %vm19, 0.0
  $region17: #{encoder_layer.12} parent=0 // pred_fallthru
    _
  %v22 = vld [vmem:[#allocation2] sm:$0xff]
  %v23 = vld [vmem:[#allocation2 + $0x8] sm:$0xff]
  %v24 = vld [vmem:[%s0] sm:$0xf]
  %v25 = vld [vmem:[%s0 + $0x4] sm:$0xf]
  %v26 = vld [vmem:[%s1] sm:$0xf]
  %v27 = vld [vmem:[%s1 + $0x4] sm:$0xf]
  %v28 = vld [vmem:[%s1 + $0x8] sm:$0xf]
  %v29 = vld [vmem:[%s1 + $0xc] sm:$0xf]
  %v32 = vunpack.c.l.b16 %v24
  %v33 = vunpack.c.l.b16 %v25
  %v34 = vpack.c.b16 %v33, %v32
  %v39 = vunpack.c.l.b16 %v26
  %v40 = vunpack.c.l.b16 %v27
  %v41 = vunpack.c.l.b16 %v28
  %v42 = vunpack.c.l.b16 %v29
  %v43 = vpack.c.b16 %v40, %v39
  %v44 = vpack.c.b16 %v42, %v41
  %vm47 = vcmask 261120
  %v49 = vsel %vm47, %v34, 0
  %51 = vmatprep.subr.bf16.mxu0 0
  %52 = vmatpush1.bf16.msra.mxu0 0
  %53 = vmatprep.subr.bf16.mxu0 0
  %54 = vmatpush1.bf16.msra.mxu0 0
  %55 = vmatprep.subr.bf16.mxu0 0
  %56 = vmatpush1.bf16.msra.mxu0 0
  %57 = vmatprep.subr.bf16.mxu0 0
  %58 = vmatpush1.bf16.msra.mxu0 0
  %59 = vmatprep.subr.bf16.mxu0 0
  %60 = vmatpush1.bf16.msra.mxu0 0
  %61 = vmatprep.subr.bf16.mxu0 0
  %62 = vmatpush1.bf16.msra.mxu0 0
  %63 = vmatprep.subr.bf16.mxu0 0
  %64 = vmatpush1.bf16.msra.mxu0 %v44
  %65 = vmatprep.subr.bf16.mxu0 0
  %66 = vmatpush1.bf16.msra.mxu0 %v43
  %67 = vmatprep.subr.bf16.mxu0 0
  %68 = vmatpush2.bf16.msra.mxu0 0
  %69 = vmatprep.subr.bf16.mxu0 0
  %70 = vmatpush2.bf16.msra.mxu0 0
  %71 = vmatprep.subr.bf16.mxu0 0
  %72 = vmatpush2.bf16.msra.mxu0 0
  %73 = vmatprep.subr.bf16.mxu0 0
  %74 = vmatpush2.bf16.msra.mxu0 0
  %75 = vmatprep.subr.bf16.mxu0 0
  %76 = vmatpush2.bf16.msra.mxu0 0
  %77 = vmatprep.subr.bf16.mxu0 0
  %78 = vmatpush2.bf16.msra.mxu0 0
  %79 = vmatprep.subr.bf16.mxu0 0
  %80 = vmatpush2.bf16.msra.mxu0 0
  %81 = vmatprep.subr.bf16.mxu0 0
  %82 = vmatpush2.bf16.msra.mxu0 0
  %83 = vmatprep.mubr.bf16.mxu0 0
  %84 = vmatmul.mubr.bf16.gmra.mxu0 %v49
  %v85 = vpop.f32.mrf.mxu0
  %v86 = vadd.f32 0.0, %v85
  %v87 = vpop.f32.mrf.mxu0
  %v88 = vpop.f32.mrf.mxu0
  %v89 = vadd.f32 0.0, %v88
  %v90 = vpop.f32.mrf.mxu0
  %91 = vdwg.mxu0
  %v92 = vadd.f32 %v22, %v86
  %v93 = vadd.f32 %v23, %v89
  %vm94 = vcmask 31744
  %95 = vst.msk [vmem:[#allocation2] sm:$0xff] %vm94, %v92
  %96 = vst.msk [vmem:[#allocation2 + $0x8] sm:$0xff] %vm94, %v93
  // Predicated region
  $region18: #{encoder_layer.12} parent=0 // pred_check
    %p97 = pneg %p15
  $region19: #{encoder_layer.12} parent=0 // pred_check_branch
    %99 = sbr.rel (%p97) target = $region21
  $region20: #{encoder_layer.12} parent=0 // pred_region
    %v100 = vld [vmem:[#allocation2] sm:$0xff]
    %v101 = vld [vmem:[#allocation2 + $0x8] sm:$0xff]
    %v102 = vld [vmem:[%s2] sm:$0x1]
    %v104 = vlaneseq
    %v105 = vshrl.u32 %v104, 7
    %v106 = vsub.s32 0, %v105
    %v107 = vrot.slane %v102, %v106
    %v109 = vadd.f32 %v100, %v107
    %v110 = vadd.f32 %v101, %v107
    %111 = vst.msk [vmem:[%s3] sm:$0xff] %vm94, %v109
    %112 = vst.msk [vmem:[%s3 + $0x8] sm:$0xff] %vm94, %v110
  $region21: #{encoder_layer.12} parent=0 // pred_fallthru
    _
  // Predicated region
  $region22: #{encoder_layer.12} parent=0 // pred_check
    _
  $region23: #{encoder_layer.12} parent=0 // pred_check_branch
    %114 = sbr.rel (0) target = $region25
  $region24: #{encoder_layer.12} parent=0 // pred_region
    _
  $region25: #{encoder_layer.12} parent=0 // pred_fallthru
    _
  // Predicated region
  $region26: #{encoder_layer.12} parent=0 // pred_check
    _
  $region27: #{encoder_layer.12} parent=0 // pred_check_branch
    %116 = sbr.rel (0) target = $region29
  $region28: #{encoder_layer.12} parent=0 // pred_region
    _
  $region29: #{encoder_layer.12} parent=0 // pred_fallthru
    _

// kernel: encoder_layer.13
$region0: #{encoder_layer.13}
  #allocation0 [shape = 'u32[]', space=smem, size = 0x4, offset = 0x4, fixed_abs, tag = 'smem constant byte address 0x4 - core index']
  #allocation1 [shape = 'u32[144,128]{1,0:T(1,128)}', space=vmem, size = 0x12000, scoped, tag = 'internal scratch']
  #allocation2 [shape = 'f32[16,32]{1,0:T(8,128)}', space=vmem, size = 0x2000, scoped, tag = 'scratch operand']
  %s0 = inlined_call_operand.vmem [shape: f32[16,32], index: 0, kind: input, shape index: {}]
  %s1 = inlined_call_operand.vmem [shape: f32[16,4], index: 1, kind: input, shape index: {}]
  %s2 = inlined_call_operand.vmem [shape: bf16[4,32,64], index: 2, kind: input, shape index: {}]
  %s3 = inlined_call_operand.vmem [shape: bf16[4,64,32], index: 3, kind: input, shape index: {}]
  %s4 = inlined_call_operand.vmem [shape: f32[1,32], index: 4, kind: input, shape index: {}]
  %s5 = inlined_call_operand.vmem [shape: f32[1,32], index: 5, kind: input, shape index: {}]
  %s6 = inlined_call_operand.hbm [shape: f32[16,32], index: 6, kind: output, shape index: {}]
  %s7 = sld [smem:[#allocation0]]
  $region65: #{encoder_layer.13} parent=0
    _
  %s9 = ssub.s32 1, %s7
  %s10 = scalar_select 0, %s9, %s7
  $region1: #{encoder_layer.13} parent=0
    #allocation3 [shape = 'u8[8192]{0}', space=vmem, size = 0x2000, scoped, tag = 'output window, operand 0, single buffered']
    #allocation4 [shape = 's32[2]{0}', space=sflag, size = 0x8, scoped, tag = 'scoped memory for encoder_layer.13']
    %11 = vsyncpa [#allocation4], 0
    loop: start=0, step=1, limit=6
    $region2: #{encoder_layer.13} parent=1 // loop_pre_header
      _
    $region3: #{encoder_layer.13} parent=1 // loop_header
      %s13 = sphi 0, %s17
      %p14 = scmp.ge.s32.totalorder %s13, 6
      %s20 = sphi 0, %s39
      %s21 = sphi 0, %s35
      %s22 = sphi 0, %s31
      %s23 = sphi 0, %s20
      %s24 = sphi 0, %s21
      %s25 = sphi 0, %s22
      %s26 = sphi 0, %s23
      %s27 = sphi 0, %s24
      %s28 = sphi 0, %s25
      %s42 = sphi 0, %s44
      %s45 = sphi 0, %s42
      %s46 = sphi 0, %s45
      %s62 = sphi 0, %s46
      %s68 = sphi 0, %s70
      %s71 = sphi 0, %s68
      %s72 = sphi 0, %s71
      %s88 = sphi 0, %s72
      %s96 = sphi 0, %s98
      %s99 = sphi 0, %s96
      %s100 = sphi 0, %s99
      %s116 = sphi 0, %s100
      %s124 = sphi 0, %s126
      %s127 = sphi 0, %s124
      %s128 = sphi 0, %s127
      %s144 = sphi 0, %s128
      %s148 = sphi 0, %s148
      %s150 = sphi 0, %s148
      %s151 = sphi 0, %s150
      %s165 = sphi 0, %s151
      %s169 = sphi 0, %s169
      %s171 = sphi 0, %s169
      %s172 = sphi 0, %s171
      %s186 = sphi 0, %s172
      %s192 = sphi 0, %s194
      %s195 = sphi 0, %s192
      %s196 = sphi 0, %s195
      %s212 = sphi 0, %s196
    $region4: #{encoder_layer.13} parent=1 // loop_header_branch
      %16 = sbr.rel (%p14) target = $region8
    $region5: #{encoder_layer.13} parent=1 // loop_body
      %s18 = ssub.s32 %s13, 1
      %s19 = ssub.s32 %s13, 2
      %s29 = sadd.s32 1, %s22
      %p30 = scmp.ge.s32.totalorder %s29, 1
      %s31 = scalar_select %p30, 0, %s29
      %s32 = sadd.s32 1, %s21
      %s33 = scalar_select %p30, %s32, %s21
      %p34 = scmp.ge.s32.totalorder %s33, 4
      %s35 = scalar_select %p34, 0, %s33
      %s36 = sadd.s32 1, %s20
      %s37 = scalar_select %p34, %s36, %s20
      %p38 = scmp.ge.s32.totalorder %s37, 1
      %s39 = scalar_select %p38, 0, %s37
      %s40 = ssub.s32 %s20, %s39
      %p41 = scmp.eq.s32.totalorder %s40, 0
      %s43 = sadd.s32 %s42, 1
      %s44 = scalar_select %p41, %s42, %s43
      %p47 = pneg %p41
      %p48 = scmp.eq.s32.totalorder %s13, 3
      %p49 = por %p47, %p48
      %p50 = scmp.ne.s32.totalorder %s42, %s45
      %p51 = scmp.eq.s32.totalorder %s13, 0
      %p52 = por %p50, %p51
      %p53 = scmp.ne.s32.totalorder %s42, %s45
      %p54 = scmp.eq.s32.totalorder %s18, 3
      %p55 = por %p53, %p54
      %p56 = scmp.ne.s32.totalorder %s45, %s46
      %p57 = scmp.eq.s32.totalorder %s18, 0
      %p58 = por %p56, %p57
      %p59 = scmp.ne.s32.totalorder %s45, %s46
      %p60 = scmp.eq.s32.totalorder %s19, 3
      %p61 = por %p59, %p60
      %p63 = scmp.ne.s32.totalorder %s46, %s62
      %p64 = scmp.eq.s32.totalorder %s19, 0
      %p65 = por %p63, %p64
      %s66 = ssub.s32 %s20, %s39
      %p67 = scmp.eq.s32.totalorder %s66, 0
      %s69 = sadd.s32 %s68, 1
      %s70 = scalar_select %p67, %s68, %s69
      %p73 = pneg %p67
      %p74 = scmp.eq.s32.totalorder %s13, 3
      %p75 = por %p73, %p74
      %p76 = scmp.ne.s32.totalorder %s68, %s71
      %p77 = scmp.eq.s32.totalorder %s13, 0
      %p78 = por %p76, %p77
      %p79 = scmp.ne.s32.totalorder %s68, %s71
      %p80 = scmp.eq.s32.totalorder %s18, 3
      %p81 = por %p79, %p80
      %p82 = scmp.ne.s32.totalorder %s71, %s72
      %p83 = scmp.eq.s32.totalorder %s18, 0
      %p84 = por %p82, %p83
      %p85 = scmp.ne.s32.totalorder %s71, %s72
      %p86 = scmp.eq.s32.totalorder %s19, 3
      %p87 = por %p85, %p86
      %p89 = scmp.ne.s32.totalorder %s72, %s88
      %p90 = scmp.eq.s32.totalorder %s19, 0
      %p91 = por %p89, %p90
      %s92 = ssub.s32 %s21, %s35
      %s93 = ssub.s32 %s22, %s31
      %s94 = sor.u32 %s92, %s93
      %p95 = scmp.eq.s32.totalorder %s94, 0
      %s97 = sadd.s32 %s96, 1
      %s98 = scalar_select %p95, %s96, %s97
      %p101 = pneg %p95
      %p102 = scmp.eq.s32.totalorder %s13, 3
      %p103 = por %p101, %p102
      %p104 = scmp.ne.s32.totalorder %s96, %s99
      %p105 = scmp.eq.s32.totalorder %s13, 0
      %p106 = por %p104, %p105
      %p107 = scmp.ne.s32.totalorder %s96, %s99
      %p108 = scmp.eq.s32.totalorder %s18, 3
      %p109 = por %p107, %p108
      %p110 = scmp.ne.s32.totalorder %s99, %s100
      %p111 = scmp.eq.s32.totalorder %s18, 0
      %p112 = por %p110, %p111
      %p113 = scmp.ne.s32.totalorder %s99, %s100
      %p114 = scmp.eq.s32.totalorder %s19, 3
      %p115 = por %p113, %p114
      %p117 = scmp.ne.s32.totalorder %s100, %s116
      %p118 = scmp.eq.s32.totalorder %s19, 0
      %p119 = por %p117, %p118
      %s120 = ssub.s32 %s21, %s35
      %s121 = ssub.s32 %s22, %s31
      %s122 = sor.u32 %s120, %s121
      %p123 = scmp.eq.s32.totalorder %s122, 0
      %s125 = sadd.s32 %s124, 1
      %s126 = scalar_select %p123, %s124, %s125
      %p129 = pneg %p123
      %p130 = scmp.eq.s32.totalorder %s13, 3
      %p131 = por %p129, %p130
      %p132 = scmp.ne.s32.totalorder %s124, %s127
      %p133 = scmp.eq.s32.totalorder %s13, 0
      %p134 = por %p132, %p133
      %p135 = scmp.ne.s32.totalorder %s124, %s127
      %p136 = scmp.eq.s32.totalorder %s18, 3
      %p137 = por %p135, %p136
      %p138 = scmp.ne.s32.totalorder %s127, %s128
      %p139 = scmp.eq.s32.totalorder %s18, 0
      %p140 = por %p138, %p139
      %p141 = scmp.ne.s32.totalorder %s127, %s128
      %p142 = scmp.eq.s32.totalorder %s19, 3
      %p143 = por %p141, %p142
      %p145 = scmp.ne.s32.totalorder %s128, %s144
      %p146 = scmp.eq.s32.totalorder %s19, 0
      %p147 = por %p145, %p146
      %s149 = sadd.s32 %s148, 1
      %p152 = scmp.eq.s32.totalorder %s13, 3
      %p153 = scmp.ne.s32.totalorder %s148, %s150
      %p154 = scmp.eq.s32.totalorder %s13, 0
      %p155 = por %p153, %p154
      %p156 = scmp.ne.s32.totalorder %s148, %s150
      %p157 = scmp.eq.s32.totalorder %s18, 3
      %p158 = por %p156, %p157
      %p159 = scmp.ne.s32.totalorder %s150, %s151
      %p160 = scmp.eq.s32.totalorder %s18, 0
      %p161 = por %p159, %p160
      %p162 = scmp.ne.s32.totalorder %s150, %s151
      %p163 = scmp.eq.s32.totalorder %s19, 3
      %p164 = por %p162, %p163
      %p166 = scmp.ne.s32.totalorder %s151, %s165
      %p167 = scmp.eq.s32.totalorder %s19, 0
      %p168 = por %p166, %p167
      %s170 = sadd.s32 %s169, 1
      %p173 = scmp.eq.s32.totalorder %s13, 3
      %p174 = scmp.ne.s32.totalorder %s169, %s171
      %p175 = scmp.eq.s32.totalorder %s13, 0
      %p176 = por %p174, %p175
      %p177 = scmp.ne.s32.totalorder %s169, %s171
      %p178 = scmp.eq.s32.totalorder %s18, 3
      %p179 = por %p177, %p178
      %p180 = scmp.ne.s32.totalorder %s171, %s172
      %p181 = scmp.eq.s32.totalorder %s18, 0
      %p182 = por %p180, %p181
      %p183 = scmp.ne.s32.totalorder %s171, %s172
      %p184 = scmp.eq.s32.totalorder %s19, 3
      %p185 = por %p183, %p184
      %p187 = scmp.ne.s32.totalorder %s172, %s186
      %p188 = scmp.eq.s32.totalorder %s19, 0
      %p189 = por %p187, %p188
      %s190 = ssub.s32 %s20, %s39
      %p191 = scmp.eq.s32.totalorder %s190, 0
      %s193 = sadd.s32 %s192, 1
      %s194 = scalar_select %p191, %s192, %s193
      %p197 = pneg %p191
      %p198 = scmp.eq.s32.totalorder %s13, 3
      %p199 = por %p197, %p198
      %p200 = scmp.ne.s32.totalorder %s192, %s195
      %p201 = scmp.eq.s32.totalorder %s13, 0
      %p202 = por %p200, %p201
      %p203 = scmp.ne.s32.totalorder %s192, %s195
      %p204 = scmp.eq.s32.totalorder %s18, 3
      %p205 = por %p203, %p204
      %p206 = scmp.ne.s32.totalorder %s195, %s196
      %p207 = scmp.eq.s32.totalorder %s18, 0
      %p208 = por %p206, %p207
      %p209 = scmp.ne.s32.totalorder %s195, %s196
      %p210 = scmp.eq.s32.totalorder %s19, 3
      %p211 = por %p209, %p210
      %p213 = scmp.ne.s32.totalorder %s196, %s212
      %p214 = scmp.eq.s32.totalorder %s19, 0
      %p215 = por %p213, %p214
      %p216 = scmp.le.s32.totalorder 1, %s13
      %p217 = scmp.lt.s32.totalorder %s13, 5
      %p218 = pnand %p216, %p217
      %p219 = pneg %p218
      // Predicated region
      $region9: #{encoder_layer.13} parent=5 // pred_check
        _
      $region10: #{encoder_layer.13} parent=5 // pred_check_branch
        %221 = sbr.rel (%p218) target = $region12
      $region11: #{encoder_layer.13} parent=5 // pred_region
        %s222 = ssub.s32 %s13, 1
        // Predicated region
        $region13: #{encoder_layer.13} parent=11 // pred_check
          %p223 = pneg %p58
        $region14: #{encoder_layer.13} parent=11 // pred_check_branch
          %225 = sbr.rel (%p223) target = $region16
        $region15: #{encoder_layer.13} parent=11 // pred_region
          %s226 = smul.u32 2, %s23
          %p227 = scmp.lt.s32.totalorder %s226, 1
          %s228 = scalar_select %p227, %s226, 1
          %s229 = smul.addr %s228, 8
          %s230 = scalar_lea.vmem %s0, %s229
          %s231 = smul.u32 2, %s23
        $region16: #{encoder_layer.13} parent=11 // pred_fallthru
          _
        // Predicated region
        $region17: #{encoder_layer.13} parent=11 // pred_check
          %p232 = pneg %p84
        $region18: #{encoder_layer.13} parent=11 // pred_check_branch
          %234 = sbr.rel (%p232) target = $region20
        $region19: #{encoder_layer.13} parent=11 // pred_region
          %s235 = smul.u32 2, %s23
          %p236 = scmp.lt.s32.totalorder %s235, 1
          %s237 = scalar_select %p236, %s235, 1
          %s238 = smul.addr %s237, 8
          %s239 = scalar_lea.vmem %s1, %s238
          %s240 = smul.u32 2, %s23
        $region20: #{encoder_layer.13} parent=11 // pred_fallthru
          _
        // Predicated region
        $region21: #{encoder_layer.13} parent=11 // pred_check
          %p241 = pneg %p161
        $region22: #{encoder_layer.13} parent=11 // pred_check_branch
          %243 = sbr.rel (%p241) target = $region24
        $region23: #{encoder_layer.13} parent=11 // pred_region
          _
        $region24: #{encoder_layer.13} parent=11 // pred_fallthru
          _
        // Predicated region
        $region25: #{encoder_layer.13} parent=11 // pred_check
          %p244 = pneg %p182
        $region26: #{encoder_layer.13} parent=11 // pred_check_branch
          %246 = sbr.rel (%p244) target = $region28
        $region27: #{encoder_layer.13} parent=11 // pred_region
          _
        $region28: #{encoder_layer.13} parent=11 // pred_fallthru
          _
      $region12: #{encoder_layer.13} parent=5 // pred_fallthru
        _
      %p247 = scmp.lt.s32.totalorder %s13, 4
      // Predicated region
      $region29: #{encoder_layer.13} parent=5 // pred_check
        %p248 = pneg %p247
      $region30: #{encoder_layer.13} parent=5 // pred_check_branch
        %250 = sbr.rel (%p248) target = $region32
      $region31: #{encoder_layer.13} parent=5 // pred_region
        // Predicated region
        $region33: #{encoder_layer.13} parent=31 // pred_check
          %p251 = pneg %p106
        $region34: #{encoder_layer.13} parent=31 // pred_check_branch
          %253 = sbr.rel (%p251) target = $region36
        $region35: #{encoder_layer.13} parent=31 // pred_region
          %p254 = scmp.lt.s32.totalorder %s21, 3
          %s255 = scalar_select %p254, %s21, 3
          %p256 = scmp.lt.s32.totalorder %s22, 0
          %s257 = scalar_select %p256, %s22, 0
          %s258 = smul.addr %s255, 4
          %s259 = sadd.s32 %s257, %s258
          %s260 = smul.addr %s259, 4
          %s261 = scalar_lea.vmem %s2, %s260
        $region36: #{encoder_layer.13} parent=31 // pred_fallthru
          _
        // Predicated region
        $region37: #{encoder_layer.13} parent=31 // pred_check
          %p262 = pneg %p134
        $region38: #{encoder_layer.13} parent=31 // pred_check_branch
          %264 = sbr.rel (%p262) target = $region40
        $region39: #{encoder_layer.13} parent=31 // pred_region
          %s265 = smul.u32 8, %s22
          %p266 = scmp.lt.s32.totalorder %s21, 3
          %s267 = scalar_select %p266, %s21, 3
          %p268 = scmp.lt.s32.totalorder %s265, 7
          %s269 = scalar_select %p268, %s265, 7
          %s270 = smul.addr %s267, 8
          %s271 = sadd.s32 %s269, %s270
          %s272 = smul.addr %s271, 4
          %s273 = scalar_lea.vmem %s3, %s272
          %s274 = smul.u32 8, %s22
        $region40: #{encoder_layer.13} parent=31 // pred_fallthru
          _
      $region32: #{encoder_layer.13} parent=5 // pred_fallthru
        _
      %p275 = scmp.le.s32.totalorder 1, %s13
      %p276 = scmp.lt.s32.totalorder %s13, 5
      %p277 = pnand %p275, %p276
      %p278 = pneg %p277
      // Predicated region
      $region41: #{encoder_layer.13} parent=5 // pred_check
        _
      $region42: #{encoder_layer.13} parent=5 // pred_check_branch
        %280 = sbr.rel (%p277) target = $region44
      $region43: #{encoder_layer.13} parent=5 // pred_region
        %s281 = ssub.s32 %s13, 1
        %s282 = smul.u32 2, %s23
        %p283 = scmp.lt.s32.totalorder %s282, 1
        %s284 = scalar_select %p283, %s282, 1
        %s285 = smul.addr %s284, 8
        %s286 = scalar_lea.vmem %s0, %s285
        %p287 = pneg %p58
        %p288 = pneg %p55
        %s289 = smul.u32 2, %s23
        %p290 = scmp.lt.s32.totalorder %s289, 1
        %s291 = scalar_select %p290, %s289, 1
        %s292 = smul.addr %s291, 8
        %s293 = scalar_lea.vmem %s1, %s292
        %p294 = pneg %p84
        %p295 = pneg %p81
        %p296 = scmp.lt.s32.totalorder %s24, 3
        %s297 = scalar_select %p296, %s24, 3
        %p298 = scmp.lt.s32.totalorder %s25, 0
        %s299 = scalar_select %p298, %s25, 0
        %s300 = smul.addr %s297, 4
        %s301 = sadd.s32 %s299, %s300
        %s302 = smul.addr %s301, 4
        %s303 = scalar_lea.vmem %s2, %s302
        %p304 = pneg %p112
        %p305 = pneg %p109
        %s306 = smul.u32 8, %s25
        %p307 = scmp.lt.s32.totalorder %s24, 3
        %s308 = scalar_select %p307, %s24, 3
        %p309 = scmp.lt.s32.totalorder %s306, 7
        %s310 = scalar_select %p309, %s306, 7
        %s311 = smul.addr %s308, 8
        %s312 = sadd.s32 %s310, %s311
        %s313 = smul.addr %s312, 4
        %s314 = scalar_lea.vmem %s3, %s313
        %p315 = pneg %p140
        %p316 = pneg %p137
        %p317 = pneg %p161
        %p318 = pneg %p158
        %p319 = pneg %p182
        %p320 = pneg %p179
        %p321 = pneg %p208
        %p322 = pneg %p205
        %s323 = smul.u32 2, %s23
        %p324 = scmp.lt.s32.totalorder %s323, 1
        %s325 = scalar_select %p324, %s323, 1
        %s326 = smul.addr %s325, 8
        %s327 = scalar_lea.vmem %s0, %s326
        %s328 = smul.u32 2, %s23
        %s329 = smul.u32 2, %s23
        %p330 = scmp.lt.s32.totalorder %s329, 1
        %s331 = scalar_select %p330, %s329, 1
        %s332 = smul.addr %s331, 8
        %s333 = scalar_lea.vmem %s1, %s332
        %s334 = smul.u32 2, %s23
        %p335 = scmp.lt.s32.totalorder %s24, 3
        %s336 = scalar_select %p335, %s24, 3
        %p337 = scmp.lt.s32.totalorder %s25, 0
        %s338 = scalar_select %p337, %s25, 0
        %s339 = smul.addr %s336, 4
        %s340 = sadd.s32 %s338, %s339
        %s341 = smul.addr %s340, 4
        %s342 = scalar_lea.vmem %s2, %s341
        %s343 = smul.u32 8, %s25
        %p344 = scmp.lt.s32.totalorder %s24, 3
        %s345 = scalar_select %p344, %s24, 3
        %p346 = scmp.lt.s32.totalorder %s343, 7
        %s347 = scalar_select %p346, %s343, 7
        %s348 = smul.addr %s345, 8
        %s349 = sadd.s32 %s347, %s348
        %s350 = smul.addr %s349, 4
        %s351 = scalar_lea.vmem %s3, %s350
        %s352 = smul.u32 8, %s25
        %s353 = smul.u32 2, %s23
        %p355 = scmp.eq.s32.totalorder %s24, 0
        %p356 = scmp.eq.s32.totalorder %s25, 0
        %p357 = pnand %p355, %p356
        %p358 = pneg %p357
        // Predicated region
        $region45: #{encoder_layer.13} parent=43 // pred_check
          _
        $region46: #{encoder_layer.13} parent=43 // pred_check_branch
          %360 = sbr.rel (%p357) target = $region48
        $region47: #{encoder_layer.13} parent=43 // pred_region
          %vm361 = vcmask 261120
          %362 = vst.msk [vmem:[#allocation2] sm:$0xff] %vm361, 0.0
          %363 = vst.msk [vmem:[#allocation2 + $0x8] sm:$0xff] %vm361, 0.0
        $region48: #{encoder_layer.13} parent=43 // pred_fallthru
          _
        %v364 = vld [vmem:[%s327] sm:$0xff]
        %v365 = vld [vmem:[%s327 + $0x8] sm:$0xff]
        %v366 = vpack.c.bf16 %v365, %v364
        %v367 = vld [vmem:[%s342] sm:$0xf]
        %v368 = vld [vmem:[%s342 + $0x4] sm:$0xf]
        %v369 = vld [vmem:[%s342 + $0x8] sm:$0xf]
        %v370 = vld [vmem:[%s342 + $0xc] sm:$0xf]
        %v375 = vunpack.c.l.b16 %v367
        %v376 = vunpack.c.l.b16 %v368
        %v377 = vunpack.c.l.b16 %v369
        %v378 = vunpack.c.l.b16 %v370
        %v379 = vpack.c.b16 %v376, %v375
        %v380 = vpack.c.b16 %v378, %v377
        %vm383 = vcmask 261120
        %v385 = vsel %vm383, %v366, 0
        %387 = vmatprep.subr.bf16.mxu0 0
        %388 = vmatpush1.bf16.msra.mxu0 0
        %389 = vmatprep.subr.bf16.mxu0 0
        %390 = vmatpush1.bf16.msra.mxu0 0
        %391 = vmatprep.subr.bf16.mxu0 0
        %392 = vmatpush1.bf16.msra.mxu0 0
        %393 = vmatprep.subr.bf16.mxu0 0
        %394 = vmatpush1.bf16.msra.mxu0 0
        %395 = vmatprep.subr.bf16.mxu0 0
        %396 = vmatpush1.bf16.msra.mxu0 0
        %397 = vmatprep.subr.bf16.mxu0 0
        %398 = vmatpush1.bf16.msra.mxu0 0
        %399 = vmatprep.subr.bf16.mxu0 0
        %400 = vmatpush1.bf16.msra.mxu0 %v380
        %401 = vmatprep.subr.bf16.mxu0 0
        %402 = vmatpush1.bf16.msra.mxu0 %v379
        %403 = vmatprep.subr.bf16.mxu0 0
        %404 = vmatpush2.bf16.msra.mxu0 0
        %405 = vmatprep.subr.bf16.mxu0 0
        %406 = vmatpush2.bf16.msra.mxu0 0
        %407 = vmatprep.subr.bf16.mxu0 0
        %408 = vmatpush2.bf16.msra.mxu0 0
        %409 = vmatprep.subr.bf16.mxu0 0
        %410 = vmatpush2.bf16.msra.mxu0 0
        %411 = vmatprep.subr.bf16.mxu0 0
        %412 = vmatpush2.bf16.msra.mxu0 0
        %413 = vmatprep.subr.bf16.mxu0 0
        %414 = vmatpush2.bf16.msra.mxu0 0
        %415 = vmatprep.subr.bf16.mxu0 0
        %416 = vmatpush2.bf16.msra.mxu0 0
        %417 = vmatprep.subr.bf16.mxu0 0
        %418 = vmatpush2.bf16.msra.mxu0 0
        %419 = vmatprep.mubr.bf16.mxu0 0
        %420 = vmatmul.mubr.bf16.gmra.mxu0 %v385
        %v421 = vpop.f32.mrf.mxu0
        %v422 = vadd.f32 0.0, %v421
        %v423 = vpop.f32.mrf.mxu0
        %v424 = vpop.f32.mrf.mxu0
        %v425 = vadd.f32 0.0, %v424
        %v426 = vpop.f32.mrf.mxu0
        %427 = vdwg.mxu0
        %v428 = vmul.f32 %v422, %v422
        %v429 = vmul.f32 %v425, %v425
        %v430 = vmul.f32 %v422, %v428
        %v431 = vmul.f32 %v425, %v429
        %v432 = vmul.f32 %v430, 0.044715
        %v433 = vmul.f32 %v431, 0.044715
        %v434 = vadd.f32 %v422, %v432
        %v435 = vadd.f32 %v425, %v433
        %v436 = vmul.f32 %v434, 0.7978846
        %v437 = vmul.f32 %v435, 0.7978846
        %v438 = vtanh.pop %v436
        %v439 = vtanh.pop %v437
        %v440 = vadd.f32 %v438, 1.0
        %v441 = vadd.f32 %v439, 1.0
        %v442 = vmul.f32 %v440, 0.5
        %v443 = vmul.f32 %v441, 0.5
        %v444 = vmul.f32 %v422, %v442
        %v445 = vmul.f32 %v425, %v443
        %v446 = vpack.c.bf16 %v445, %v444
        %v447 = vld [vmem:[%s351] sm:$0xf]
        %v448 = vld [vmem:[%s351 + $0x4] sm:$0xf]
        %v449 = vld [vmem:[%s351 + $0x8] sm:$0xf]
        %v450 = vld [vmem:[%s351 + $0xc] sm:$0xf]
        %v451 = vld [vmem:[%s351 + $0x10] sm:$0xf]
        %v452 = vld [vmem:[%s351 + $0x14] sm:$0xf]
        %v453 = vld [vmem:[%s351 + $0x18] sm:$0xf]
        %v454 = vld [vmem:[%s351 + $0x1c] sm:$0xf]
        %v463 = vunpack.c.l.b16 %v447
        %v464 = vunpack.c.l.b16 %v448
        %v465 = vunpack.c.l.b16 %v449
        %v466 = vunpack.c.l.b16 %v450
        %v467 = vunpack.c.l.b16 %v451
        %v468 = vunpack.c.l.b16 %v452
        %v469 = vunpack.c.l.b16 %v453
        %v470 = vunpack.c.l.b16 %v454
        %v471 = vpack.c.b16 %v464, %v463
        %v472 = vpack.c.b16 %v466, %v465
        %v473 = vpack.c.b16 %v468, %v467
        %v474 = vpack.c.b16 %v470, %v469
        %vm479 = vcmask 523264
        %v481 = vsel %vm479, %v446, 0
        %483 = vmatprep.subr.bf16.mxu0 0
        %484 = vmatpush1.bf16.msra.mxu0 0
        %485 = vmatprep.subr.bf16.mxu0 0
        %486 = vmatpush1.bf16.msra.mxu0 0
        %487 = vmatprep.subr.bf16.mxu0 0
        %488 = vmatpush1.bf16.msra.mxu0 0
        %489 = vmatprep.subr.bf16.mxu0 0
        %490 = vmatpush1.bf16.msra.mxu0 0
        %491 = vmatprep.subr.bf16.mxu0 0
        %492 = vmatpush1.bf16.msra.mxu0 %v474
        %493 = vmatprep.subr.bf16.mxu0 0
        %494 = vmatpush1.bf16.msra.mxu0 %v473
        %495 = vmatprep.subr.bf16.mxu0 0
        %496 = vmatpush1.bf16.msra.mxu0 %v472
        %497 = vmatprep.subr.bf16.mxu0 0
        %498 = vmatpush1.bf16.msra.mxu0 %v471
        %499 = vmatprep.subr.bf16.mxu0 0
        %500 = vmatpush2.bf16.msra.mxu0 0
        %501 = vmatprep.subr.bf16.mxu0 0
        %502 = vmatpush2.bf16.msra.mxu0 0
        %503 = vmatprep.subr.bf16.mxu0 0
        %504 = vmatpush2.bf16.msra.mxu0 0
        %505 = vmatprep.subr.bf16.mxu0 0
        %506 = vmatpush2.bf16.msra.mxu0 0
        %507 = vmatprep.subr.bf16.mxu0 0
        %508 = vmatpush2.bf16.msra.mxu0 0
        %509 = vmatprep.subr.bf16.mxu0 0
        %510 = vmatpush2.bf16.msra.mxu0 0
        %511 = vmatprep.subr.bf16.mxu0 0
        %512 = vmatpush2.bf16.msra.mxu0 0
        %513 = vmatprep.subr.bf16.mxu0 0
        %514 = vmatpush2.bf16.msra.mxu0 0
        %515 = vmatprep.mubr.bf16.mxu0 0
        %516 = vmatmul.mubr.bf16.gmra.mxu0 %v481
        %v517 = vpop.f32.mrf.mxu0
        %v518 = vadd.f32 0.0, %v517
        %v519 = vpop.f32.mrf.mxu0
        %v520 = vpop.f32.mrf.mxu0
        %v521 = vadd.f32 0.0, %v520
        %v522 = vpop.f32.mrf.mxu0
        %523 = vdwg.mxu0
        %v524 = vlaneseq
        %v525 = vand.u32 %v524, 127
        %v526 = vstv %s24
        %vm527 = vcmp.eq.s32.totalorder %v525, %v526
        %v528 = vld [vmem:[%s333] sm:$0xff]
        %v529 = vld [vmem:[%s333 + $0x8] sm:$0xff]
        %v530 = vsel %vm527, 1, 0
        %v531 = vcvt.s32.f32 %v530
        %v532 = vmul.f32 %v528, %v531
        %v533 = vmul.f32 %v529, %v531
        %vm534 = vcmask 31744
        %v535 = vsel %vm534, %v532, 0.0
        %536 = vadd.xlane.f32.xlu0 %v535
        %v537 = vpop.xlane.xlu0 %536
        %v538 = vsel %vm534, %v533, 0.0
        %539 = vadd.xlane.f32.xlu0 %v538
        %v540 = vpop.xlane.xlu0 %539
        %v541 = vld [vmem:[#allocation2] sm:$0xff]
        %v542 = vld [vmem:[#allocation2 + $0x8] sm:$0xff]
        %v543 = vmul.f32 %v537, %v518
        %v544 = vmul.f32 %v540, %v521
        %v545 = vadd.f32 %v541, %v543
        %v546 = vadd.f32 %v542, %v544
        %547 = vst.msk [vmem:[#allocation2] sm:$0xff] %vm383, %v545
        %548 = vst.msk [vmem:[#allocation2 + $0x8] sm:$0xff] %vm383, %v546
        %p549 = scmp.eq.s32.totalorder %s24, 3
        %p550 = pnand %p549, %p356
        %p551 = pneg %p550
        // Predicated region
        $region49: #{encoder_layer.13} parent=43 // pred_check
          _
        $region50: #{encoder_layer.13} parent=43 // pred_check_branch
          %553 = sbr.rel (%p550) target = $region52
        $region51: #{encoder_layer.13} parent=43 // pred_region
          %v554 = vld [vmem:[#allocation2] sm:$0xff]
          %v555 = vld [vmem:[#allocation2 + $0x8] sm:$0xff]
          %v556 = vadd.f32 %v554, %v364
          %v557 = vadd.f32 %v555, %v365
          %v558 = vsel %vm383, %v556, 0.0
          %559 = vadd.xlane.f32.xlu0 %v558
          %v560 = vpop.xlane.xlu0 %559
          %v561 = vsel %vm383, %v557, 0.0
          %562 = vadd.xlane.f32.xlu0 %v561
          %v563 = vpop.xlane.xlu0 %562
          %v564 = vrcp.pop 32.0
          %v565 = vmul.f32 %v560, %v564
          %v566 = vmul.f32 %v563, %v564
          %v567 = vsub.f32 %v556, %v565
          %v568 = vsub.f32 %v557, %v566
          %v569 = vmul.f32 %v567, %v567
          %v570 = vmul.f32 %v568, %v568
          %v571 = vsel %vm383, %v569, 0.0
          %572 = vadd.xlane.f32.xlu0 %v571
          %v573 = vpop.xlane.xlu0 %572
          %v574 = vsel %vm383, %v570, 0.0
          %575 = vadd.xlane.f32.xlu0 %v574
          %v576 = vpop.xlane.xlu0 %575
          %v577 = vmul.f32 %v573, %v564
          %v578 = vmul.f32 %v576, %v564
          %v579 = vadd.f32 %v577, 1e-05
          %v580 = vadd.f32 %v578, 1e-05
          %v581 = vrsqrt.pop %v579
          %v582 = vrsqrt.pop %v580
          %v583 = vmul.f32 %v567, %v581
          %v584 = vmul.f32 %v568, %v582
          %v585 = vld [vmem:[%s4] sm:$0x1]
          %v587 = vlaneseq
          %v588 = vshrl.u32 %v587, 7
          %v589 = vsub.s32 0, %v588
          %v590 = vrot.slane %v585, %v589
          %v592 = vmul.f32 %v583, %v590
          %v593 = vmul.f32 %v584, %v590
          %v594 = vld [vmem:[%s5] sm:$0x1]
          %v596 = vlaneseq
          %v597 = vshrl.u32 %v596, 7
          %v598 = vsub.s32 0, %v597
          %v599 = vrot.slane %v594, %v598
          %v601 = vadd.f32 %v592, %v599
          %v602 = vadd.f32 %v593, %v599
          %603 = vst.msk [vmem:[#allocation3] sm:$0xff] %vm383, %v601
          %604 = vst.msk [vmem:[#allocation3 + $0x8] sm:$0xff] %vm383, %v602
        $region52: #{encoder_layer.13} parent=43 // pred_fallthru
          _
        // Predicated region
        $region53: #{encoder_layer.13} parent=43 // pred_check
          %p605 = pneg %p205
        $region54: #{encoder_layer.13} parent=43 // pred_check_branch
          %607 = sbr.rel (%p605) target = $region56
        $region55: #{encoder_layer.13} parent=43 // pred_region
          %s608 = smul.u32 2, %s23
          %s610 = ssub.s32 256, 256
          %611 = vsyncadd [#allocation4], %s610
          %s612 = smul.addr %s608, 128
          %s613 = scalar_lea.hbm %s6, %s612
          %s614 = sshll.u32 [#allocation3], 4
          %s615 = int_to_ptr.vmem [resolvable:$true] %s614
          %620 = dma.vmem_to_hbm [thread:$0]  %s615, 256, %s613, [#allocation4], 128, 128, 8
        $region56: #{encoder_layer.13} parent=43 // pred_fallthru
          _
        // Predicated region
        $region57: #{encoder_layer.13} parent=43 // pred_check
          %p621 = pneg %p205
        $region58: #{encoder_layer.13} parent=43 // pred_check_branch
          %623 = sbr.rel (%p621) target = $region60
        $region59: #{encoder_layer.13} parent=43 // pred_region
          %624 = dma.done [#allocation4], 256
        $region60: #{encoder_layer.13} parent=43 // pred_fallthru
          _
      $region44: #{encoder_layer.13} parent=5 // pred_fallthru
        _
      %p625 = scmp.le.s32.totalorder 2, %s13
      // Predicated region
      $region61: #{encoder_layer.13} parent=5 // pred_check
        %p626 = pneg %p625
      $region62: #{encoder_layer.13} parent=5 // pred_check_branch
        %628 = sbr.rel (%p626) target = $region64
      $region63: #{encoder_layer.13} parent=5 // pred_region
        %s629 = ssub.s32 %s13, 2
      $region64: #{encoder_layer.13} parent=5 // pred_fallthru
        _
    $region6: #{encoder_layer.13} parent=1 // loop_footer
      %s17 = sadd.s32 1, %s13
    $region7: #{encoder_layer.13} parent=1 // loop_footer_branch
      %12 = sbr.rel target = $region3
    $region8: #{encoder_layer.13} parent=1 // loop_exit
      _
    %630 = vsyncpa [#allocation4], 1
    %s631 = scalar_lea.sflag [#allocation4], 1
    %632 = vsyncpa %s631, 1

</llo_original>
